<compile_context>
chip_gen: v7x
topology: tpu7x:2x2x1
jax: 0.10.0
libtpu: 0.0.40
codegen_flags: <defaults>
</compile_context>

<pallas_src>
import functools
import math

import jax
import jax.numpy as jnp
from jax import lax
from jax.experimental import pallas as pl
from jax.experimental.pallas import tpu as pltpu


def lstm_chunk_kernel(xs_ref, wi_ref, wh_ref, bi_ref, bh_ref,
                      y_ref, hf_ref, cf_ref,
                      gbuf, h_s, c_s,
                      *, seq_len, needs_mask):
    """One grid step == one (batch_block, t_chunk) tile of the LSTM.

    Grid is (batch_blocks, time_chunks); the time axis is the serial recurrence.

    xs_ref : (tc, bb, I)   raw inputs for this chunk
    wi_ref : (I, 4H)       input->gates weights  (grid-invariant, VMEM resident)
    wh_ref : (H, 4H)       hidden->gates weights (grid-invariant, VMEM resident)
    bi_ref : (1, 4H)       input-path bias
    bh_ref : (1, 4H)       hidden-path bias
    y_ref  : (tc, bb, H)   per-step hidden outputs h_t
    hf_ref : (bb, H)       final hidden state (written only on the last chunk)
    cf_ref : (bb, H)       final cell state   (written only on the last chunk)
    gbuf   : (tc, bb, 4H)  fp32 VMEM buffer holding the fused input projection
    h_s,c_s: (bb, H)       fp32 VMEM cross-chunk carry of the recurrent state
    Gate order along 4H is [i, f, g, o].
    """
    H = h_s.shape[-1]
    tc, bb, _ = y_ref.shape
    i_dim = xs_ref.shape[-1]
    t_pid = pl.program_id(1)

    # ---- Fused input projection for the whole chunk: one big (tc*bb, I)x(I,4H)
    #      MXU matmul with no serial dependence (off the recurrence chain).
    #      b_i + b_h folded in for every step; t==0 corrected below.
    wi = wi_ref[...]
    x2 = xs_ref[...].reshape(tc * bb, i_dim).astype(wi.dtype)
    b_all = bi_ref[...].astype(jnp.float32) + bh_ref[...].astype(jnp.float32)
    g_in = jnp.dot(x2, wi, preferred_element_type=jnp.float32) + b_all
    gbuf[...] = g_in.reshape(tc, bb, 4 * H)

    @pl.when(t_pid == 0)
    def _():
        # hcx is None at global t==0 -> hidden path absent entirely.  Zero h/c
        # make h@W_h and f*c vanish; only b_h must be removed from step 0's
        # gates (a single (bb, 4H) tile).
        gbuf[0] = gbuf[0] - bh_ref[...].astype(jnp.float32)
        h_s[...] = jnp.zeros_like(h_s)
        c_s[...] = jnp.zeros_like(c_s)

    # ---- Serial recurrence over the chunk.  h/c ride in the fori_loop carry
    #      (vregs); VMEM scratch is touched once per chunk, not per step.
    h0 = h_s[...]
    c0 = c_s[...]

    def step(t, carry):
        h, c = carry
        wh = wh_ref[...]   # per-step read: do not pin the (H,4H) weight in vregs
        gates = gbuf[t] + jnp.dot(h.astype(wh.dtype), wh,
                                  preferred_element_type=jnp.float32)
        # Gate activations in fp32 (EUP); slices are lane-aligned when H%128==0.
        i_g = jax.nn.sigmoid(gates[:, 0 * H:1 * H])
        f_g = jax.nn.sigmoid(gates[:, 1 * H:2 * H])
        g_g = jnp.tanh(gates[:, 2 * H:3 * H])
        o_g = jax.nn.sigmoid(gates[:, 3 * H:4 * H])
        cn = i_g * g_g + f_g * c
        hn = o_g * jnp.tanh(cn)
        y_ref[t] = hn.astype(y_ref.dtype)
        if needs_mask:
            # Padded tail steps (global t >= seq_len) must not advance the state.
            valid = (t_pid * tc + t) < seq_len
            hn = jnp.where(valid, hn, h)
            cn = jnp.where(valid, cn, c)
        return (hn, cn)

    h_fin, c_fin = lax.fori_loop(0, tc, step, (h0, c0), unroll=True)
    h_s[...] = h_fin
    c_s[...] = c_fin

    @pl.when(t_pid == pl.num_programs(1) - 1)
    def _():
        hf_ref[...] = h_fin.astype(hf_ref.dtype)
        cf_ref[...] = c_fin.astype(cf_ref.dtype)


def lstm_section(xs, w_i, w_h, b_i, b_h, *, t_chunk=64, batch_block=None):
    """xs: (T, B, I). Weights packed (in_dim, 4H), gate order [i, f, g, o].

    Returns (outputs (T, B, H), (h_T (B, H), c_T (B, H))).
    `batch_block` (multiple of 8, or B) adds a leading parallel grid axis over
    sub-batches so v7x's second TensorCore can be used."""
    T, B, I = xs.shape
    H = w_h.shape[0]
    assert w_i.shape == (I, 4 * H)
    assert w_h.shape == (H, 4 * H)
    assert b_i.shape == (1, 4 * H) and b_h.shape == (1, 4 * H)

    if batch_block is None:
        batch_block = B
    assert B % batch_block == 0
    assert batch_block == B or batch_block % 8 == 0, (
        "sub-batch blocks must be sublane-aligned (multiple of 8) or the full batch")
    nb = B // batch_block

    # Time chunking: pad T up to a multiple of the chunk and mask the tail in
    # the kernel (never degrade to tiny divisors for awkward/prime T).
    tc = min(t_chunk, T)
    t_pad = pl.cdiv(T, tc) * tc
    needs_mask = (t_pad != T)
    xs_in = jnp.pad(xs, ((0, t_pad - T), (0, 0), (0, 0))) if needs_mask else xs
    nt = t_pad // tc

    out_dtype = xs.dtype

    def nbytes(n, dt):
        return n * jnp.dtype(dt).itemsize

    vmem_est = (
        2 * nbytes(tc * batch_block * I, xs.dtype)                          # xs (dbl buf)
        + 2 * (nbytes(I * 4 * H, w_i.dtype) + nbytes(H * 4 * H, w_h.dtype)
               + 2 * nbytes(4 * H, b_i.dtype))                              # weights/biases
        + 2 * nbytes(tc * batch_block * H + 2 * batch_block * H, out_dtype)  # y, hT, cT
        + nbytes(tc * batch_block * 4 * H + 2 * batch_block * H, jnp.float32)  # scratch
        + nbytes(tc * batch_block * 4 * H, jnp.float32)                     # proj temp
        + (2 << 20))                                                        # headroom
    # Floor at the default scoped limit; cap below v7x's 64 MiB physical VMEM.
    vmem_limit = int(min(max(vmem_est, 16 * 1024 * 1024), 48 * 1024 * 1024))

    kernel = functools.partial(lstm_chunk_kernel, seq_len=T, needs_mask=needs_mask)

    y, hf, cf = pl.pallas_call(
        kernel,
        out_shape=(jax.ShapeDtypeStruct((t_pad, B, H), out_dtype),
                   jax.ShapeDtypeStruct((B, H), out_dtype),
                   jax.ShapeDtypeStruct((B, H), out_dtype)),
        grid_spec=pltpu.PrefetchScalarGridSpec(
            num_scalar_prefetch=0,
            grid=(nb, nt),                                   # (batch-parallel, time-serial)
            in_specs=[
                pl.BlockSpec((tc, batch_block, I), lambda b, t: (t, b, 0)),   # xs chunk
                pl.BlockSpec((I, 4 * H), lambda b, t: (0, 0)),                # W_i (resident)
                pl.BlockSpec((H, 4 * H), lambda b, t: (0, 0)),                # W_h (resident)
                pl.BlockSpec((1, 4 * H), lambda b, t: (0, 0)),                # b_i
                pl.BlockSpec((1, 4 * H), lambda b, t: (0, 0)),                # b_h
            ],
            out_specs=[
                pl.BlockSpec((tc, batch_block, H), lambda b, t: (t, b, 0)),   # y (lane-dense)
                pl.BlockSpec((batch_block, H), lambda b, t: (b, 0)),          # h_T
                pl.BlockSpec((batch_block, H), lambda b, t: (b, 0)),          # c_T
            ],
            scratch_shapes=[
                pltpu.VMEM((tc, batch_block, 4 * H), jnp.float32),  # fused input gates
                pltpu.VMEM((batch_block, H), jnp.float32),          # h carry (fp32)
                pltpu.VMEM((batch_block, H), jnp.float32),          # c carry (fp32)
            ],
        ),
        compiler_params=pltpu.CompilerParams(
            dimension_semantics=("parallel", "arbitrary"),   # time recurrence is serial
            vmem_limit_bytes=vmem_limit,
        ),
    )(xs_in, w_i, w_h, b_i, b_h)

    if needs_mask:
        y = y[:T]
    return y, (hf, cf)


def init_params(key, input_size, hidden_size, dtype=jnp.float32):
    """Synthetic init matching the PyTorch module's 8 Linear layers
    (uniform(-k, k), k = 1/sqrt(H)), packed as (in_dim, 4H), gate order i,f,g,o."""
    k = math.sqrt(1.0 / hidden_size)
    ks = jax.random.split(key, 4)
    w_i = jax.random.uniform(ks[0], (input_size, 4 * hidden_size),
                             dtype=dtype, minval=-k, maxval=k)
    w_h = jax.random.uniform(ks[1], (hidden_size, 4 * hidden_size),
                             dtype=dtype, minval=-k, maxval=k)
    b_i = jax.random.uniform(ks[2], (1, 4 * hidden_size),
                             dtype=dtype, minval=-k, maxval=k)
    b_h = jax.random.uniform(ks[3], (1, 4 * hidden_size),
                             dtype=dtype, minval=-k, maxval=k)
    return w_i, w_h, b_i, b_h


def lstm_section_ref(xs, w_i, w_h, b_i, b_h):
    """Pure-JAX reference mirroring the PyTorch forward (hx/cx start as None)."""
    T = xs.shape[0]
    H = w_h.shape[0]
    hx = cx = None
    outs = []
    for t in range(T):
        x = xs[t]
        gates = x @ w_i + b_i
        if hx is not None:
            gates = gates + hx @ w_h + b_h
        i = jax.nn.sigmoid(gates[:, 0 * H:1 * H])
        f = jax.nn.sigmoid(gates[:, 1 * H:2 * H])
        g = jnp.tanh(gates[:, 2 * H:3 * H])
        o = jax.nn.sigmoid(gates[:, 3 * H:4 * H])
        cn = i * g
        if cx is not None:
            cn = cn + f * cx
        hn = o * jnp.tanh(cn)
        hx, cx = hn, cn
        outs.append(hn)
    return jnp.stack(outs), (hx, cx)


if __name__ == "__main__":
    key = jax.random.PRNGKey(0)
    k_x, k_p, k_x2 = jax.random.split(key, 3)

    # --- Main fp32 check: T=48, B=8, I=32, H=128; 3 time chunks exercise the
    #     cross-chunk fp32 carry and the last-chunk hf/cf finalization. ---
    T, B, I, H = 48, 8, 32, 128
    xs = jax.random.normal(k_x, (T, B, I), dtype=jnp.float32)
    w_i, w_h, b_i, b_h = init_params(k_p, I, H)

    y, (h_T, c_T) = lstm_section(xs, w_i, w_h, b_i, b_h, t_chunk=16)
    jax.block_until_ready((y, h_T, c_T))
    y_ref, (h_ref, c_ref) = lstm_section_ref(xs, w_i, w_h, b_i, b_h)
    assert jnp.allclose(y, y_ref, atol=2e-4, rtol=2e-4)
    assert jnp.allclose(h_T, h_ref, atol=2e-4, rtol=2e-4)
    assert jnp.allclose(c_T, c_ref, atol=2e-4, rtol=2e-4)

    # --- Padding/masking + batch-parallel grid axis: T=19 (not a multiple of
    #     the chunk -> padded & masked tail), B=16 split into two sublane-
    #     aligned batch blocks (v7x 2nd TensorCore path). ---
    T2, B2 = 19, 16
    xs2 = jax.random.normal(k_x2, (T2, B2, I), dtype=jnp.float32)
    y2, (h2, c2) = lstm_section(xs2, w_i, w_h, b_i, b_h, t_chunk=8, batch_block=8)
    jax.block_until_ready((y2, h2, c2))
    y2_ref, (h2_ref, c2_ref) = lstm_section_ref(xs2, w_i, w_h, b_i, b_h)
    assert y2.shape == (T2, B2, H)
    assert jnp.allclose(y2, y2_ref, atol=2e-4, rtol=2e-4)
    assert jnp.allclose(h2, h2_ref, atol=2e-4, rtol=2e-4)
    assert jnp.allclose(c2, c2_ref, atol=2e-4, rtol=2e-4)

    # --- bf16 weight/activation path (fp32 accumulation + fp32 gate math inside
    #     the kernel).  Compare against an fp32 reference run on the bf16-
    #     rounded params so only the in-kernel bf16 casts contribute error. ---
    xs16 = xs.astype(jnp.bfloat16)
    w_i16, w_h16, b_i16, b_h16 = (p.astype(jnp.bfloat16) for p in (w_i, w_h, b_i, b_h))
    y16, (h16, c16) = lstm_section(xs16, w_i16, w_h16, b_i16, b_h16, t_chunk=16)
    jax.block_until_ready((y16, h16, c16))
    y_ref16, (h_ref16, c_ref16) = lstm_section_ref(
        xs16.astype(jnp.float32), w_i16.astype(jnp.float32),
        w_h16.astype(jnp.float32), b_i16.astype(jnp.float32),
        b_h16.astype(jnp.float32))
    assert jnp.allclose(y16.astype(jnp.float32), y_ref16, atol=1e-1, rtol=1e-1)
    assert jnp.allclose(h16.astype(jnp.float32), h_ref16, atol=1e-1, rtol=1e-1)

    print("KERNEL_OK")
</pallas_src>

<mosaic_0001>
module attributes {stable_mosaic.version = 11 : i64} {
  func.func @lstm_chunk_kernel(%arg0: i32, %arg1: i32, %arg2: memref<16x8x32xf32, #tpu.memory_space<vmem>>, %arg3: memref<32x512xf32, #tpu.memory_space<vmem>>, %arg4: memref<128x512xf32, #tpu.memory_space<vmem>>, %arg5: memref<1x512xf32, #tpu.memory_space<vmem>>, %arg6: memref<1x512xf32, #tpu.memory_space<vmem>>, %arg7: memref<16x8x128xf32, #tpu.memory_space<vmem>>, %arg8: memref<8x128xf32, #tpu.memory_space<vmem>>, %arg9: memref<8x128xf32, #tpu.memory_space<vmem>>, %arg10: memref<16x8x512xf32, #tpu.memory_space<vmem>>, %arg11: memref<8x128xf32, #tpu.memory_space<vmem>>, %arg12: memref<8x128xf32, #tpu.memory_space<vmem>>) attributes {dimension_semantics = [#tpu.dimension_semantics<parallel>, #tpu.dimension_semantics<arbitrary>], iteration_bounds = array<i64: 1, 3>, scalar_prefetch = 0 : i64, scratch_operands = 3 : i64, tpu.core_type = #tpu.core_type<tc>, window_params = [{transform_indices = @transform_0, window_bounds = array<i64: 16, 8, 32>}, {pipeline_mode = #tpu.pipeline_mode<synchronous>, transform_indices = @transform_1, window_bounds = array<i64: 32, 512>}, {pipeline_mode = #tpu.pipeline_mode<synchronous>, transform_indices = @transform_2, window_bounds = array<i64: 128, 512>}, {pipeline_mode = #tpu.pipeline_mode<synchronous>, transform_indices = @transform_3, window_bounds = array<i64: 1, 512>}, {pipeline_mode = #tpu.pipeline_mode<synchronous>, transform_indices = @transform_4, window_bounds = array<i64: 1, 512>}, {transform_indices = @transform_5, window_bounds = array<i64: 16, 8, 128>}, {transform_indices = @transform_6, window_bounds = array<i64: 8, 128>}, {transform_indices = @transform_7, window_bounds = array<i64: 8, 128>}]} {
    %c0 = arith.constant 0 : index
    %c0_0 = arith.constant 0 : index
    %0 = vector.load %arg3[%c0, %c0_0] : memref<32x512xf32, #tpu.memory_space<vmem>>, vector<32x512xf32>
    %c0_1 = arith.constant 0 : index
    %c0_2 = arith.constant 0 : index
    %c0_3 = arith.constant 0 : index
    %1 = vector.load %arg2[%c0_1, %c0_2, %c0_3] : memref<16x8x32xf32, #tpu.memory_space<vmem>>, vector<16x8x32xf32>
    %2 = vector.shape_cast %1 : vector<16x8x32xf32> to vector<128x32xf32>
    %c0_4 = arith.constant 0 : index
    %c0_5 = arith.constant 0 : index
    %3 = vector.load %arg5[%c0_4, %c0_5] : memref<1x512xf32, #tpu.memory_space<vmem>>, vector<1x512xf32>
    %c0_6 = arith.constant 0 : index
    %c0_7 = arith.constant 0 : index
    %4 = vector.load %arg6[%c0_6, %c0_7] : memref<1x512xf32, #tpu.memory_space<vmem>>, vector<1x512xf32>
    %5 = arith.addf %3, %4 : vector<1x512xf32>
    %cst = arith.constant dense<0.000000e+00> : vector<128x512xf32>
    %6 = tpu.matmul %2, %0, %cst {dimension_numbers = #tpu.dot_dimension_numbers<[1], [0], [0], [1], [0, 0, 1, 1], [], []>} : vector<128x32xf32>, vector<32x512xf32>, vector<128x512xf32> -> vector<128x512xf32>
    %7 = vector.broadcast %5 : vector<1x512xf32> to vector<128x512xf32>
    %8 = arith.addf %6, %7 : vector<128x512xf32>
    %9 = vector.shape_cast %8 : vector<128x512xf32> to vector<16x8x512xf32>
    %c0_8 = arith.constant 0 : index
    %c0_9 = arith.constant 0 : index
    %c0_10 = arith.constant 0 : index
    %10 = vector.load %arg10[%c0_8, %c0_9, %c0_10] : memref<16x8x512xf32, #tpu.memory_space<vmem>>, vector<16x8x512xf32>
    tpu.vector_store %arg10[%c0_8, %c0_9, %c0_10], %9 {strides = array<i32>} : memref<16x8x512xf32, #tpu.memory_space<vmem>>, vector<16x8x512xf32>,
    %c0_i32 = arith.constant 0 : i32
    %11 = arith.cmpi eq, %arg1, %c0_i32 : i32
    %12 = arith.extui %11 : i1 to i32
    %c0_i32_11 = arith.constant 0 : i32
    %13 = arith.cmpi ne, %12, %c0_i32_11 : i32
    scf.if %13 {
      %c0_183 = arith.constant 0 : index
      %c0_184 = arith.constant 0 : index
      %c0_185 = arith.constant 0 : index
      %581 = vector.load %arg10[%c0_183, %c0_184, %c0_185] : memref<16x8x512xf32, #tpu.memory_space<vmem>>, vector<1x8x512xf32>
      %582 = vector.shape_cast %581 : vector<1x8x512xf32> to vector<8x512xf32>
      %c0_186 = arith.constant 0 : index
      %c0_187 = arith.constant 0 : index
      %583 = vector.load %arg6[%c0_186, %c0_187] : memref<1x512xf32, #tpu.memory_space<vmem>>, vector<1x512xf32>
      %584 = vector.broadcast %583 : vector<1x512xf32> to vector<8x512xf32>
      %585 = arith.subf %582, %584 : vector<8x512xf32>
      %c0_188 = arith.constant 0 : index
      %c0_189 = arith.constant 0 : index
      %c0_190 = arith.constant 0 : index
      %586 = vector.load %arg10[%c0_188, %c0_189, %c0_190] : memref<16x8x512xf32, #tpu.memory_space<vmem>>, vector<1x8x512xf32>
      %587 = vector.shape_cast %586 : vector<1x8x512xf32> to vector<8x512xf32>
      %588 = vector.shape_cast %585 : vector<8x512xf32> to vector<1x8x512xf32>
      tpu.vector_store %arg10[%c0_188, %c0_189, %c0_190], %588 {strides = array<i32>} : memref<16x8x512xf32, #tpu.memory_space<vmem>>, vector<1x8x512xf32>,
      %cst_191 = arith.constant 0.000000e+00 : f32
      %589 = vector.broadcast %cst_191 : f32 to vector<8x128xf32>
      %c0_192 = arith.constant 0 : index
      %c0_193 = arith.constant 0 : index
      %590 = vector.load %arg11[%c0_192, %c0_193] : memref<8x128xf32, #tpu.memory_space<vmem>>, vector<8x128xf32>
      tpu.vector_store %arg11[%c0_192, %c0_193], %589 {strides = array<i32>} : memref<8x128xf32, #tpu.memory_space<vmem>>, vector<8x128xf32>,
      %cst_194 = arith.constant 0.000000e+00 : f32
      %591 = vector.broadcast %cst_194 : f32 to vector<8x128xf32>
      %c0_195 = arith.constant 0 : index
      %c0_196 = arith.constant 0 : index
      %592 = vector.load %arg12[%c0_195, %c0_196] : memref<8x128xf32, #tpu.memory_space<vmem>>, vector<8x128xf32>
      tpu.vector_store %arg12[%c0_195, %c0_196], %591 {strides = array<i32>} : memref<8x128xf32, #tpu.memory_space<vmem>>, vector<8x128xf32>,
    } else {
    }
    %c0_12 = arith.constant 0 : index
    %c0_13 = arith.constant 0 : index
    %14 = vector.load %arg11[%c0_12, %c0_13] : memref<8x128xf32, #tpu.memory_space<vmem>>, vector<8x128xf32>
    %c0_14 = arith.constant 0 : index
    %c0_15 = arith.constant 0 : index
    %15 = vector.load %arg12[%c0_14, %c0_15] : memref<8x128xf32, #tpu.memory_space<vmem>>, vector<8x128xf32>
    %c0_i32_16 = arith.constant 0 : i32
    %c0_17 = arith.constant 0 : index
    %c0_18 = arith.constant 0 : index
    %16 = vector.load %arg4[%c0_17, %c0_18] : memref<128x512xf32, #tpu.memory_space<vmem>>, vector<128x512xf32>
    %17 = arith.index_cast %c0_i32_16 : i32 to index
    %c0_19 = arith.constant 0 : index
    %c0_20 = arith.constant 0 : index
    %18 = vector.load %arg10[%17, %c0_19, %c0_20] : memref<16x8x512xf32, #tpu.memory_space<vmem>>, vector<1x8x512xf32>
    %19 = vector.shape_cast %18 : vector<1x8x512xf32> to vector<8x512xf32>
    %cst_21 = arith.constant dense<0.000000e+00> : vector<8x512xf32>
    %20 = tpu.matmul %14, %16, %cst_21 {dimension_numbers = #tpu.dot_dimension_numbers<[1], [0], [0], [1], [0, 0, 1, 1], [], []>} : vector<8x128xf32>, vector<128x512xf32>, vector<8x512xf32> -> vector<8x512xf32>
    %21 = arith.addf %19, %20 : vector<8x512xf32>
    %22 = vector.extract_strided_slice %21 {offsets = [0, 0], sizes = [8, 128], strides = [1, 1]} : vector<8x512xf32> to vector<8x128xf32>
    %23 = arith.negf %22 : vector<8x128xf32>
    %24 = math.exp %23 : vector<8x128xf32>
    %cst_22 = arith.constant 1.000000e+00 : f32
    %25 = vector.broadcast %cst_22 : f32 to vector<8x128xf32>
    %26 = arith.addf %25, %24 : vector<8x128xf32>
    %27 = arith.divf %25, %26 : vector<8x128xf32>
    %28 = vector.extract_strided_slice %21 {offsets = [0, 128], sizes = [8, 128], strides = [1, 1]} : vector<8x512xf32> to vector<8x128xf32>
    %29 = arith.negf %28 : vector<8x128xf32>
    %30 = math.exp %29 : vector<8x128xf32>
    %cst_23 = arith.constant 1.000000e+00 : f32
    %31 = vector.broadcast %cst_23 : f32 to vector<8x128xf32>
    %32 = arith.addf %31, %30 : vector<8x128xf32>
    %33 = arith.divf %31, %32 : vector<8x128xf32>
    %34 = vector.extract_strided_slice %21 {offsets = [0, 256], sizes = [8, 128], strides = [1, 1]} : vector<8x512xf32> to vector<8x128xf32>
    %35 = math.tanh %34 : vector<8x128xf32>
    %36 = vector.extract_strided_slice %21 {offsets = [0, 384], sizes = [8, 128], strides = [1, 1]} : vector<8x512xf32> to vector<8x128xf32>
    %37 = arith.negf %36 : vector<8x128xf32>
    %38 = math.exp %37 : vector<8x128xf32>
    %cst_24 = arith.constant 1.000000e+00 : f32
    %39 = vector.broadcast %cst_24 : f32 to vector<8x128xf32>
    %40 = arith.addf %39, %38 : vector<8x128xf32>
    %41 = arith.divf %39, %40 : vector<8x128xf32>
    %42 = arith.mulf %27, %35 : vector<8x128xf32>
    %43 = arith.mulf %33, %15 : vector<8x128xf32>
    %44 = arith.addf %42, %43 : vector<8x128xf32>
    %45 = math.tanh %44 : vector<8x128xf32>
    %46 = arith.mulf %41, %45 : vector<8x128xf32>
    %47 = arith.index_cast %c0_i32_16 : i32 to index
    %c0_25 = arith.constant 0 : index
    %c0_26 = arith.constant 0 : index
    %48 = vector.load %arg7[%47, %c0_25, %c0_26] : memref<16x8x128xf32, #tpu.memory_space<vmem>>, vector<1x8x128xf32>
    %49 = vector.shape_cast %48 : vector<1x8x128xf32> to vector<8x128xf32>
    %50 = vector.shape_cast %46 : vector<8x128xf32> to vector<1x8x128xf32>
    tpu.vector_store %arg7[%47, %c0_25, %c0_26], %50 {strides = array<i32>} : memref<16x8x128xf32, #tpu.memory_space<vmem>>, vector<1x8x128xf32>,
    %c1_i32 = arith.constant 1 : i32
    %c0_27 = arith.constant 0 : index
    %c0_28 = arith.constant 0 : index
    %51 = vector.load %arg4[%c0_27, %c0_28] : memref<128x512xf32, #tpu.memory_space<vmem>>, vector<128x512xf32>
    %52 = arith.index_cast %c1_i32 : i32 to index
    %c0_29 = arith.constant 0 : index
    %c0_30 = arith.constant 0 : index
    %53 = vector.load %arg10[%52, %c0_29, %c0_30] : memref<16x8x512xf32, #tpu.memory_space<vmem>>, vector<1x8x512xf32>
    %54 = vector.shape_cast %53 : vector<1x8x512xf32> to vector<8x512xf32>
    %cst_31 = arith.constant dense<0.000000e+00> : vector<8x512xf32>
    %55 = tpu.matmul %46, %51, %cst_31 {dimension_numbers = #tpu.dot_dimension_numbers<[1], [0], [0], [1], [0, 0, 1, 1], [], []>} : vector<8x128xf32>, vector<128x512xf32>, vector<8x512xf32> -> vector<8x512xf32>
    %56 = arith.addf %54, %55 : vector<8x512xf32>
    %57 = vector.extract_strided_slice %56 {offsets = [0, 0], sizes = [8, 128], strides = [1, 1]} : vector<8x512xf32> to vector<8x128xf32>
    %58 = arith.negf %57 : vector<8x128xf32>
    %59 = math.exp %58 : vector<8x128xf32>
    %cst_32 = arith.constant 1.000000e+00 : f32
    %60 = vector.broadcast %cst_32 : f32 to vector<8x128xf32>
    %61 = arith.addf %60, %59 : vector<8x128xf32>
    %62 = arith.divf %60, %61 : vector<8x128xf32>
    %63 = vector.extract_strided_slice %56 {offsets = [0, 128], sizes = [8, 128], strides = [1, 1]} : vector<8x512xf32> to vector<8x128xf32>
    %64 = arith.negf %63 : vector<8x128xf32>
    %65 = math.exp %64 : vector<8x128xf32>
    %cst_33 = arith.constant 1.000000e+00 : f32
    %66 = vector.broadcast %cst_33 : f32 to vector<8x128xf32>
    %67 = arith.addf %66, %65 : vector<8x128xf32>
    %68 = arith.divf %66, %67 : vector<8x128xf32>
    %69 = vector.extract_strided_slice %56 {offsets = [0, 256], sizes = [8, 128], strides = [1, 1]} : vector<8x512xf32> to vector<8x128xf32>
    %70 = math.tanh %69 : vector<8x128xf32>
    %71 = vector.extract_strided_slice %56 {offsets = [0, 384], sizes = [8, 128], strides = [1, 1]} : vector<8x512xf32> to vector<8x128xf32>
    %72 = arith.negf %71 : vector<8x128xf32>
    %73 = math.exp %72 : vector<8x128xf32>
    %cst_34 = arith.constant 1.000000e+00 : f32
    %74 = vector.broadcast %cst_34 : f32 to vector<8x128xf32>
    %75 = arith.addf %74, %73 : vector<8x128xf32>
    %76 = arith.divf %74, %75 : vector<8x128xf32>
    %77 = arith.mulf %62, %70 : vector<8x128xf32>
    %78 = arith.mulf %68, %44 : vector<8x128xf32>
    %79 = arith.addf %77, %78 : vector<8x128xf32>
    %80 = math.tanh %79 : vector<8x128xf32>
    %81 = arith.mulf %76, %80 : vector<8x128xf32>
    %82 = arith.index_cast %c1_i32 : i32 to index
    %c0_35 = arith.constant 0 : index
    %c0_36 = arith.constant 0 : index
    %83 = vector.load %arg7[%82, %c0_35, %c0_36] : memref<16x8x128xf32, #tpu.memory_space<vmem>>, vector<1x8x128xf32>
    %84 = vector.shape_cast %83 : vector<1x8x128xf32> to vector<8x128xf32>
    %85 = vector.shape_cast %81 : vector<8x128xf32> to vector<1x8x128xf32>
    tpu.vector_store %arg7[%82, %c0_35, %c0_36], %85 {strides = array<i32>} : memref<16x8x128xf32, #tpu.memory_space<vmem>>, vector<1x8x128xf32>,
    %c2_i32 = arith.constant 2 : i32
    %c0_37 = arith.constant 0 : index
    %c0_38 = arith.constant 0 : index
    %86 = vector.load %arg4[%c0_37, %c0_38] : memref<128x512xf32, #tpu.memory_space<vmem>>, vector<128x512xf32>
    %87 = arith.index_cast %c2_i32 : i32 to index
    %c0_39 = arith.constant 0 : index
    %c0_40 = arith.constant 0 : index
    %88 = vector.load %arg10[%87, %c0_39, %c0_40] : memref<16x8x512xf32, #tpu.memory_space<vmem>>, vector<1x8x512xf32>
    %89 = vector.shape_cast %88 : vector<1x8x512xf32> to vector<8x512xf32>
    %cst_41 = arith.constant dense<0.000000e+00> : vector<8x512xf32>
    %90 = tpu.matmul %81, %86, %cst_41 {dimension_numbers = #tpu.dot_dimension_numbers<[1], [0], [0], [1], [0, 0, 1, 1], [], []>} : vector<8x128xf32>, vector<128x512xf32>, vector<8x512xf32> -> vector<8x512xf32>
    %91 = arith.addf %89, %90 : vector<8x512xf32>
    %92 = vector.extract_strided_slice %91 {offsets = [0, 0], sizes = [8, 128], strides = [1, 1]} : vector<8x512xf32> to vector<8x128xf32>
    %93 = arith.negf %92 : vector<8x128xf32>
    %94 = math.exp %93 : vector<8x128xf32>
    %cst_42 = arith.constant 1.000000e+00 : f32
    %95 = vector.broadcast %cst_42 : f32 to vector<8x128xf32>
    %96 = arith.addf %95, %94 : vector<8x128xf32>
    %97 = arith.divf %95, %96 : vector<8x128xf32>
    %98 = vector.extract_strided_slice %91 {offsets = [0, 128], sizes = [8, 128], strides = [1, 1]} : vector<8x512xf32> to vector<8x128xf32>
    %99 = arith.negf %98 : vector<8x128xf32>
    %100 = math.exp %99 : vector<8x128xf32>
    %cst_43 = arith.constant 1.000000e+00 : f32
    %101 = vector.broadcast %cst_43 : f32 to vector<8x128xf32>
    %102 = arith.addf %101, %100 : vector<8x128xf32>
    %103 = arith.divf %101, %102 : vector<8x128xf32>
    %104 = vector.extract_strided_slice %91 {offsets = [0, 256], sizes = [8, 128], strides = [1, 1]} : vector<8x512xf32> to vector<8x128xf32>
    %105 = math.tanh %104 : vector<8x128xf32>
    %106 = vector.extract_strided_slice %91 {offsets = [0, 384], sizes = [8, 128], strides = [1, 1]} : vector<8x512xf32> to vector<8x128xf32>
    %107 = arith.negf %106 : vector<8x128xf32>
    %108 = math.exp %107 : vector<8x128xf32>
    %cst_44 = arith.constant 1.000000e+00 : f32
    %109 = vector.broadcast %cst_44 : f32 to vector<8x128xf32>
    %110 = arith.addf %109, %108 : vector<8x128xf32>
    %111 = arith.divf %109, %110 : vector<8x128xf32>
    %112 = arith.mulf %97, %105 : vector<8x128xf32>
    %113 = arith.mulf %103, %79 : vector<8x128xf32>
    %114 = arith.addf %112, %113 : vector<8x128xf32>
    %115 = math.tanh %114 : vector<8x128xf32>
    %116 = arith.mulf %111, %115 : vector<8x128xf32>
    %117 = arith.index_cast %c2_i32 : i32 to index
    %c0_45 = arith.constant 0 : index
    %c0_46 = arith.constant 0 : index
    %118 = vector.load %arg7[%117, %c0_45, %c0_46] : memref<16x8x128xf32, #tpu.memory_space<vmem>>, vector<1x8x128xf32>
    %119 = vector.shape_cast %118 : vector<1x8x128xf32> to vector<8x128xf32>
    %120 = vector.shape_cast %116 : vector<8x128xf32> to vector<1x8x128xf32>
    tpu.vector_store %arg7[%117, %c0_45, %c0_46], %120 {strides = array<i32>} : memref<16x8x128xf32, #tpu.memory_space<vmem>>, vector<1x8x128xf32>,
    %c3_i32 = arith.constant 3 : i32
    %c0_47 = arith.constant 0 : index
    %c0_48 = arith.constant 0 : index
    %121 = vector.load %arg4[%c0_47, %c0_48] : memref<128x512xf32, #tpu.memory_space<vmem>>, vector<128x512xf32>
    %122 = arith.index_cast %c3_i32 : i32 to index
    %c0_49 = arith.constant 0 : index
    %c0_50 = arith.constant 0 : index
    %123 = vector.load %arg10[%122, %c0_49, %c0_50] : memref<16x8x512xf32, #tpu.memory_space<vmem>>, vector<1x8x512xf32>
    %124 = vector.shape_cast %123 : vector<1x8x512xf32> to vector<8x512xf32>
    %cst_51 = arith.constant dense<0.000000e+00> : vector<8x512xf32>
    %125 = tpu.matmul %116, %121, %cst_51 {dimension_numbers = #tpu.dot_dimension_numbers<[1], [0], [0], [1], [0, 0, 1, 1], [], []>} : vector<8x128xf32>, vector<128x512xf32>, vector<8x512xf32> -> vector<8x512xf32>
    %126 = arith.addf %124, %125 : vector<8x512xf32>
    %127 = vector.extract_strided_slice %126 {offsets = [0, 0], sizes = [8, 128], strides = [1, 1]} : vector<8x512xf32> to vector<8x128xf32>
    %128 = arith.negf %127 : vector<8x128xf32>
    %129 = math.exp %128 : vector<8x128xf32>
    %cst_52 = arith.constant 1.000000e+00 : f32
    %130 = vector.broadcast %cst_52 : f32 to vector<8x128xf32>
    %131 = arith.addf %130, %129 : vector<8x128xf32>
    %132 = arith.divf %130, %131 : vector<8x128xf32>
    %133 = vector.extract_strided_slice %126 {offsets = [0, 128], sizes = [8, 128], strides = [1, 1]} : vector<8x512xf32> to vector<8x128xf32>
    %134 = arith.negf %133 : vector<8x128xf32>
    %135 = math.exp %134 : vector<8x128xf32>
    %cst_53 = arith.constant 1.000000e+00 : f32
    %136 = vector.broadcast %cst_53 : f32 to vector<8x128xf32>
    %137 = arith.addf %136, %135 : vector<8x128xf32>
    %138 = arith.divf %136, %137 : vector<8x128xf32>
    %139 = vector.extract_strided_slice %126 {offsets = [0, 256], sizes = [8, 128], strides = [1, 1]} : vector<8x512xf32> to vector<8x128xf32>
    %140 = math.tanh %139 : vector<8x128xf32>
    %141 = vector.extract_strided_slice %126 {offsets = [0, 384], sizes = [8, 128], strides = [1, 1]} : vector<8x512xf32> to vector<8x128xf32>
    %142 = arith.negf %141 : vector<8x128xf32>
    %143 = math.exp %142 : vector<8x128xf32>
    %cst_54 = arith.constant 1.000000e+00 : f32
    %144 = vector.broadcast %cst_54 : f32 to vector<8x128xf32>
    %145 = arith.addf %144, %143 : vector<8x128xf32>
    %146 = arith.divf %144, %145 : vector<8x128xf32>
    %147 = arith.mulf %132, %140 : vector<8x128xf32>
    %148 = arith.mulf %138, %114 : vector<8x128xf32>
    %149 = arith.addf %147, %148 : vector<8x128xf32>
    %150 = math.tanh %149 : vector<8x128xf32>
    %151 = arith.mulf %146, %150 : vector<8x128xf32>
    %152 = arith.index_cast %c3_i32 : i32 to index
    %c0_55 = arith.constant 0 : index
    %c0_56 = arith.constant 0 : index
    %153 = vector.load %arg7[%152, %c0_55, %c0_56] : memref<16x8x128xf32, #tpu.memory_space<vmem>>, vector<1x8x128xf32>
    %154 = vector.shape_cast %153 : vector<1x8x128xf32> to vector<8x128xf32>
    %155 = vector.shape_cast %151 : vector<8x128xf32> to vector<1x8x128xf32>
    tpu.vector_store %arg7[%152, %c0_55, %c0_56], %155 {strides = array<i32>} : memref<16x8x128xf32, #tpu.memory_space<vmem>>, vector<1x8x128xf32>,
    %c4_i32 = arith.constant 4 : i32
    %c0_57 = arith.constant 0 : index
    %c0_58 = arith.constant 0 : index
    %156 = vector.load %arg4[%c0_57, %c0_58] : memref<128x512xf32, #tpu.memory_space<vmem>>, vector<128x512xf32>
    %157 = arith.index_cast %c4_i32 : i32 to index
    %c0_59 = arith.constant 0 : index
    %c0_60 = arith.constant 0 : index
    %158 = vector.load %arg10[%157, %c0_59, %c0_60] : memref<16x8x512xf32, #tpu.memory_space<vmem>>, vector<1x8x512xf32>
    %159 = vector.shape_cast %158 : vector<1x8x512xf32> to vector<8x512xf32>
    %cst_61 = arith.constant dense<0.000000e+00> : vector<8x512xf32>
    %160 = tpu.matmul %151, %156, %cst_61 {dimension_numbers = #tpu.dot_dimension_numbers<[1], [0], [0], [1], [0, 0, 1, 1], [], []>} : vector<8x128xf32>, vector<128x512xf32>, vector<8x512xf32> -> vector<8x512xf32>
    %161 = arith.addf %159, %160 : vector<8x512xf32>
    %162 = vector.extract_strided_slice %161 {offsets = [0, 0], sizes = [8, 128], strides = [1, 1]} : vector<8x512xf32> to vector<8x128xf32>
    %163 = arith.negf %162 : vector<8x128xf32>
    %164 = math.exp %163 : vector<8x128xf32>
    %cst_62 = arith.constant 1.000000e+00 : f32
    %165 = vector.broadcast %cst_62 : f32 to vector<8x128xf32>
    %166 = arith.addf %165, %164 : vector<8x128xf32>
    %167 = arith.divf %165, %166 : vector<8x128xf32>
    %168 = vector.extract_strided_slice %161 {offsets = [0, 128], sizes = [8, 128], strides = [1, 1]} : vector<8x512xf32> to vector<8x128xf32>
    %169 = arith.negf %168 : vector<8x128xf32>
    %170 = math.exp %169 : vector<8x128xf32>
    %cst_63 = arith.constant 1.000000e+00 : f32
    %171 = vector.broadcast %cst_63 : f32 to vector<8x128xf32>
    %172 = arith.addf %171, %170 : vector<8x128xf32>
    %173 = arith.divf %171, %172 : vector<8x128xf32>
    %174 = vector.extract_strided_slice %161 {offsets = [0, 256], sizes = [8, 128], strides = [1, 1]} : vector<8x512xf32> to vector<8x128xf32>
    %175 = math.tanh %174 : vector<8x128xf32>
    %176 = vector.extract_strided_slice %161 {offsets = [0, 384], sizes = [8, 128], strides = [1, 1]} : vector<8x512xf32> to vector<8x128xf32>
    %177 = arith.negf %176 : vector<8x128xf32>
    %178 = math.exp %177 : vector<8x128xf32>
    %cst_64 = arith.constant 1.000000e+00 : f32
    %179 = vector.broadcast %cst_64 : f32 to vector<8x128xf32>
    %180 = arith.addf %179, %178 : vector<8x128xf32>
    %181 = arith.divf %179, %180 : vector<8x128xf32>
    %182 = arith.mulf %167, %175 : vector<8x128xf32>
    %183 = arith.mulf %173, %149 : vector<8x128xf32>
    %184 = arith.addf %182, %183 : vector<8x128xf32>
    %185 = math.tanh %184 : vector<8x128xf32>
    %186 = arith.mulf %181, %185 : vector<8x128xf32>
    %187 = arith.index_cast %c4_i32 : i32 to index
    %c0_65 = arith.constant 0 : index
    %c0_66 = arith.constant 0 : index
    %188 = vector.load %arg7[%187, %c0_65, %c0_66] : memref<16x8x128xf32, #tpu.memory_space<vmem>>, vector<1x8x128xf32>
    %189 = vector.shape_cast %188 : vector<1x8x128xf32> to vector<8x128xf32>
    %190 = vector.shape_cast %186 : vector<8x128xf32> to vector<1x8x128xf32>
    tpu.vector_store %arg7[%187, %c0_65, %c0_66], %190 {strides = array<i32>} : memref<16x8x128xf32, #tpu.memory_space<vmem>>, vector<1x8x128xf32>,
    %c5_i32 = arith.constant 5 : i32
    %c0_67 = arith.constant 0 : index
    %c0_68 = arith.constant 0 : index
    %191 = vector.load %arg4[%c0_67, %c0_68] : memref<128x512xf32, #tpu.memory_space<vmem>>, vector<128x512xf32>
    %192 = arith.index_cast %c5_i32 : i32 to index
    %c0_69 = arith.constant 0 : index
    %c0_70 = arith.constant 0 : index
    %193 = vector.load %arg10[%192, %c0_69, %c0_70] : memref<16x8x512xf32, #tpu.memory_space<vmem>>, vector<1x8x512xf32>
    %194 = vector.shape_cast %193 : vector<1x8x512xf32> to vector<8x512xf32>
    %cst_71 = arith.constant dense<0.000000e+00> : vector<8x512xf32>
    %195 = tpu.matmul %186, %191, %cst_71 {dimension_numbers = #tpu.dot_dimension_numbers<[1], [0], [0], [1], [0, 0, 1, 1], [], []>} : vector<8x128xf32>, vector<128x512xf32>, vector<8x512xf32> -> vector<8x512xf32>
    %196 = arith.addf %194, %195 : vector<8x512xf32>
    %197 = vector.extract_strided_slice %196 {offsets = [0, 0], sizes = [8, 128], strides = [1, 1]} : vector<8x512xf32> to vector<8x128xf32>
    %198 = arith.negf %197 : vector<8x128xf32>
    %199 = math.exp %198 : vector<8x128xf32>
    %cst_72 = arith.constant 1.000000e+00 : f32
    %200 = vector.broadcast %cst_72 : f32 to vector<8x128xf32>
    %201 = arith.addf %200, %199 : vector<8x128xf32>
    %202 = arith.divf %200, %201 : vector<8x128xf32>
    %203 = vector.extract_strided_slice %196 {offsets = [0, 128], sizes = [8, 128], strides = [1, 1]} : vector<8x512xf32> to vector<8x128xf32>
    %204 = arith.negf %203 : vector<8x128xf32>
    %205 = math.exp %204 : vector<8x128xf32>
    %cst_73 = arith.constant 1.000000e+00 : f32
    %206 = vector.broadcast %cst_73 : f32 to vector<8x128xf32>
    %207 = arith.addf %206, %205 : vector<8x128xf32>
    %208 = arith.divf %206, %207 : vector<8x128xf32>
    %209 = vector.extract_strided_slice %196 {offsets = [0, 256], sizes = [8, 128], strides = [1, 1]} : vector<8x512xf32> to vector<8x128xf32>
    %210 = math.tanh %209 : vector<8x128xf32>
    %211 = vector.extract_strided_slice %196 {offsets = [0, 384], sizes = [8, 128], strides = [1, 1]} : vector<8x512xf32> to vector<8x128xf32>
    %212 = arith.negf %211 : vector<8x128xf32>
    %213 = math.exp %212 : vector<8x128xf32>
    %cst_74 = arith.constant 1.000000e+00 : f32
    %214 = vector.broadcast %cst_74 : f32 to vector<8x128xf32>
    %215 = arith.addf %214, %213 : vector<8x128xf32>
    %216 = arith.divf %214, %215 : vector<8x128xf32>
    %217 = arith.mulf %202, %210 : vector<8x128xf32>
    %218 = arith.mulf %208, %184 : vector<8x128xf32>
    %219 = arith.addf %217, %218 : vector<8x128xf32>
    %220 = math.tanh %219 : vector<8x128xf32>
    %221 = arith.mulf %216, %220 : vector<8x128xf32>
    %222 = arith.index_cast %c5_i32 : i32 to index
    %c0_75 = arith.constant 0 : index
    %c0_76 = arith.constant 0 : index
    %223 = vector.load %arg7[%222, %c0_75, %c0_76] : memref<16x8x128xf32, #tpu.memory_space<vmem>>, vector<1x8x128xf32>
    %224 = vector.shape_cast %223 : vector<1x8x128xf32> to vector<8x128xf32>
    %225 = vector.shape_cast %221 : vector<8x128xf32> to vector<1x8x128xf32>
    tpu.vector_store %arg7[%222, %c0_75, %c0_76], %225 {strides = array<i32>} : memref<16x8x128xf32, #tpu.memory_space<vmem>>, vector<1x8x128xf32>,
    %c6_i32 = arith.constant 6 : i32
    %c0_77 = arith.constant 0 : index
    %c0_78 = arith.constant 0 : index
    %226 = vector.load %arg4[%c0_77, %c0_78] : memref<128x512xf32, #tpu.memory_space<vmem>>, vector<128x512xf32>
    %227 = arith.index_cast %c6_i32 : i32 to index
    %c0_79 = arith.constant 0 : index
    %c0_80 = arith.constant 0 : index
    %228 = vector.load %arg10[%227, %c0_79, %c0_80] : memref<16x8x512xf32, #tpu.memory_space<vmem>>, vector<1x8x512xf32>
    %229 = vector.shape_cast %228 : vector<1x8x512xf32> to vector<8x512xf32>
    %cst_81 = arith.constant dense<0.000000e+00> : vector<8x512xf32>
    %230 = tpu.matmul %221, %226, %cst_81 {dimension_numbers = #tpu.dot_dimension_numbers<[1], [0], [0], [1], [0, 0, 1, 1], [], []>} : vector<8x128xf32>, vector<128x512xf32>, vector<8x512xf32> -> vector<8x512xf32>
    %231 = arith.addf %229, %230 : vector<8x512xf32>
    %232 = vector.extract_strided_slice %231 {offsets = [0, 0], sizes = [8, 128], strides = [1, 1]} : vector<8x512xf32> to vector<8x128xf32>
    %233 = arith.negf %232 : vector<8x128xf32>
    %234 = math.exp %233 : vector<8x128xf32>
    %cst_82 = arith.constant 1.000000e+00 : f32
    %235 = vector.broadcast %cst_82 : f32 to vector<8x128xf32>
    %236 = arith.addf %235, %234 : vector<8x128xf32>
    %237 = arith.divf %235, %236 : vector<8x128xf32>
    %238 = vector.extract_strided_slice %231 {offsets = [0, 128], sizes = [8, 128], strides = [1, 1]} : vector<8x512xf32> to vector<8x128xf32>
    %239 = arith.negf %238 : vector<8x128xf32>
    %240 = math.exp %239 : vector<8x128xf32>
    %cst_83 = arith.constant 1.000000e+00 : f32
    %241 = vector.broadcast %cst_83 : f32 to vector<8x128xf32>
    %242 = arith.addf %241, %240 : vector<8x128xf32>
    %243 = arith.divf %241, %242 : vector<8x128xf32>
    %244 = vector.extract_strided_slice %231 {offsets = [0, 256], sizes = [8, 128], strides = [1, 1]} : vector<8x512xf32> to vector<8x128xf32>
    %245 = math.tanh %244 : vector<8x128xf32>
    %246 = vector.extract_strided_slice %231 {offsets = [0, 384], sizes = [8, 128], strides = [1, 1]} : vector<8x512xf32> to vector<8x128xf32>
    %247 = arith.negf %246 : vector<8x128xf32>
    %248 = math.exp %247 : vector<8x128xf32>
    %cst_84 = arith.constant 1.000000e+00 : f32
    %249 = vector.broadcast %cst_84 : f32 to vector<8x128xf32>
    %250 = arith.addf %249, %248 : vector<8x128xf32>
    %251 = arith.divf %249, %250 : vector<8x128xf32>
    %252 = arith.mulf %237, %245 : vector<8x128xf32>
    %253 = arith.mulf %243, %219 : vector<8x128xf32>
    %254 = arith.addf %252, %253 : vector<8x128xf32>
    %255 = math.tanh %254 : vector<8x128xf32>
    %256 = arith.mulf %251, %255 : vector<8x128xf32>
    %257 = arith.index_cast %c6_i32 : i32 to index
    %c0_85 = arith.constant 0 : index
    %c0_86 = arith.constant 0 : index
    %258 = vector.load %arg7[%257, %c0_85, %c0_86] : memref<16x8x128xf32, #tpu.memory_space<vmem>>, vector<1x8x128xf32>
    %259 = vector.shape_cast %258 : vector<1x8x128xf32> to vector<8x128xf32>
    %260 = vector.shape_cast %256 : vector<8x128xf32> to vector<1x8x128xf32>
    tpu.vector_store %arg7[%257, %c0_85, %c0_86], %260 {strides = array<i32>} : memref<16x8x128xf32, #tpu.memory_space<vmem>>, vector<1x8x128xf32>,
    %c7_i32 = arith.constant 7 : i32
    %c0_87 = arith.constant 0 : index
    %c0_88 = arith.constant 0 : index
    %261 = vector.load %arg4[%c0_87, %c0_88] : memref<128x512xf32, #tpu.memory_space<vmem>>, vector<128x512xf32>
    %262 = arith.index_cast %c7_i32 : i32 to index
    %c0_89 = arith.constant 0 : index
    %c0_90 = arith.constant 0 : index
    %263 = vector.load %arg10[%262, %c0_89, %c0_90] : memref<16x8x512xf32, #tpu.memory_space<vmem>>, vector<1x8x512xf32>
    %264 = vector.shape_cast %263 : vector<1x8x512xf32> to vector<8x512xf32>
    %cst_91 = arith.constant dense<0.000000e+00> : vector<8x512xf32>
    %265 = tpu.matmul %256, %261, %cst_91 {dimension_numbers = #tpu.dot_dimension_numbers<[1], [0], [0], [1], [0, 0, 1, 1], [], []>} : vector<8x128xf32>, vector<128x512xf32>, vector<8x512xf32> -> vector<8x512xf32>
    %266 = arith.addf %264, %265 : vector<8x512xf32>
    %267 = vector.extract_strided_slice %266 {offsets = [0, 0], sizes = [8, 128], strides = [1, 1]} : vector<8x512xf32> to vector<8x128xf32>
    %268 = arith.negf %267 : vector<8x128xf32>
    %269 = math.exp %268 : vector<8x128xf32>
    %cst_92 = arith.constant 1.000000e+00 : f32
    %270 = vector.broadcast %cst_92 : f32 to vector<8x128xf32>
    %271 = arith.addf %270, %269 : vector<8x128xf32>
    %272 = arith.divf %270, %271 : vector<8x128xf32>
    %273 = vector.extract_strided_slice %266 {offsets = [0, 128], sizes = [8, 128], strides = [1, 1]} : vector<8x512xf32> to vector<8x128xf32>
    %274 = arith.negf %273 : vector<8x128xf32>
    %275 = math.exp %274 : vector<8x128xf32>
    %cst_93 = arith.constant 1.000000e+00 : f32
    %276 = vector.broadcast %cst_93 : f32 to vector<8x128xf32>
    %277 = arith.addf %276, %275 : vector<8x128xf32>
    %278 = arith.divf %276, %277 : vector<8x128xf32>
    %279 = vector.extract_strided_slice %266 {offsets = [0, 256], sizes = [8, 128], strides = [1, 1]} : vector<8x512xf32> to vector<8x128xf32>
    %280 = math.tanh %279 : vector<8x128xf32>
    %281 = vector.extract_strided_slice %266 {offsets = [0, 384], sizes = [8, 128], strides = [1, 1]} : vector<8x512xf32> to vector<8x128xf32>
    %282 = arith.negf %281 : vector<8x128xf32>
    %283 = math.exp %282 : vector<8x128xf32>
    %cst_94 = arith.constant 1.000000e+00 : f32
    %284 = vector.broadcast %cst_94 : f32 to vector<8x128xf32>
    %285 = arith.addf %284, %283 : vector<8x128xf32>
    %286 = arith.divf %284, %285 : vector<8x128xf32>
    %287 = arith.mulf %272, %280 : vector<8x128xf32>
    %288 = arith.mulf %278, %254 : vector<8x128xf32>
    %289 = arith.addf %287, %288 : vector<8x128xf32>
    %290 = math.tanh %289 : vector<8x128xf32>
    %291 = arith.mulf %286, %290 : vector<8x128xf32>
    %292 = arith.index_cast %c7_i32 : i32 to index
    %c0_95 = arith.constant 0 : index
    %c0_96 = arith.constant 0 : index
    %293 = vector.load %arg7[%292, %c0_95, %c0_96] : memref<16x8x128xf32, #tpu.memory_space<vmem>>, vector<1x8x128xf32>
    %294 = vector.shape_cast %293 : vector<1x8x128xf32> to vector<8x128xf32>
    %295 = vector.shape_cast %291 : vector<8x128xf32> to vector<1x8x128xf32>
    tpu.vector_store %arg7[%292, %c0_95, %c0_96], %295 {strides = array<i32>} : memref<16x8x128xf32, #tpu.memory_space<vmem>>, vector<1x8x128xf32>,
    %c8_i32 = arith.constant 8 : i32
    %c0_97 = arith.constant 0 : index
    %c0_98 = arith.constant 0 : index
    %296 = vector.load %arg4[%c0_97, %c0_98] : memref<128x512xf32, #tpu.memory_space<vmem>>, vector<128x512xf32>
    %297 = arith.index_cast %c8_i32 : i32 to index
    %c0_99 = arith.constant 0 : index
    %c0_100 = arith.constant 0 : index
    %298 = vector.load %arg10[%297, %c0_99, %c0_100] : memref<16x8x512xf32, #tpu.memory_space<vmem>>, vector<1x8x512xf32>
    %299 = vector.shape_cast %298 : vector<1x8x512xf32> to vector<8x512xf32>
    %cst_101 = arith.constant dense<0.000000e+00> : vector<8x512xf32>
    %300 = tpu.matmul %291, %296, %cst_101 {dimension_numbers = #tpu.dot_dimension_numbers<[1], [0], [0], [1], [0, 0, 1, 1], [], []>} : vector<8x128xf32>, vector<128x512xf32>, vector<8x512xf32> -> vector<8x512xf32>
    %301 = arith.addf %299, %300 : vector<8x512xf32>
    %302 = vector.extract_strided_slice %301 {offsets = [0, 0], sizes = [8, 128], strides = [1, 1]} : vector<8x512xf32> to vector<8x128xf32>
    %303 = arith.negf %302 : vector<8x128xf32>
    %304 = math.exp %303 : vector<8x128xf32>
    %cst_102 = arith.constant 1.000000e+00 : f32
    %305 = vector.broadcast %cst_102 : f32 to vector<8x128xf32>
    %306 = arith.addf %305, %304 : vector<8x128xf32>
    %307 = arith.divf %305, %306 : vector<8x128xf32>
    %308 = vector.extract_strided_slice %301 {offsets = [0, 128], sizes = [8, 128], strides = [1, 1]} : vector<8x512xf32> to vector<8x128xf32>
    %309 = arith.negf %308 : vector<8x128xf32>
    %310 = math.exp %309 : vector<8x128xf32>
    %cst_103 = arith.constant 1.000000e+00 : f32
    %311 = vector.broadcast %cst_103 : f32 to vector<8x128xf32>
    %312 = arith.addf %311, %310 : vector<8x128xf32>
    %313 = arith.divf %311, %312 : vector<8x128xf32>
    %314 = vector.extract_strided_slice %301 {offsets = [0, 256], sizes = [8, 128], strides = [1, 1]} : vector<8x512xf32> to vector<8x128xf32>
    %315 = math.tanh %314 : vector<8x128xf32>
    %316 = vector.extract_strided_slice %301 {offsets = [0, 384], sizes = [8, 128], strides = [1, 1]} : vector<8x512xf32> to vector<8x128xf32>
    %317 = arith.negf %316 : vector<8x128xf32>
    %318 = math.exp %317 : vector<8x128xf32>
    %cst_104 = arith.constant 1.000000e+00 : f32
    %319 = vector.broadcast %cst_104 : f32 to vector<8x128xf32>
    %320 = arith.addf %319, %318 : vector<8x128xf32>
    %321 = arith.divf %319, %320 : vector<8x128xf32>
    %322 = arith.mulf %307, %315 : vector<8x128xf32>
    %323 = arith.mulf %313, %289 : vector<8x128xf32>
    %324 = arith.addf %322, %323 : vector<8x128xf32>
    %325 = math.tanh %324 : vector<8x128xf32>
    %326 = arith.mulf %321, %325 : vector<8x128xf32>
    %327 = arith.index_cast %c8_i32 : i32 to index
    %c0_105 = arith.constant 0 : index
    %c0_106 = arith.constant 0 : index
    %328 = vector.load %arg7[%327, %c0_105, %c0_106] : memref<16x8x128xf32, #tpu.memory_space<vmem>>, vector<1x8x128xf32>
    %329 = vector.shape_cast %328 : vector<1x8x128xf32> to vector<8x128xf32>
    %330 = vector.shape_cast %326 : vector<8x128xf32> to vector<1x8x128xf32>
    tpu.vector_store %arg7[%327, %c0_105, %c0_106], %330 {strides = array<i32>} : memref<16x8x128xf32, #tpu.memory_space<vmem>>, vector<1x8x128xf32>,
    %c9_i32 = arith.constant 9 : i32
    %c0_107 = arith.constant 0 : index
    %c0_108 = arith.constant 0 : index
    %331 = vector.load %arg4[%c0_107, %c0_108] : memref<128x512xf32, #tpu.memory_space<vmem>>, vector<128x512xf32>
    %332 = arith.index_cast %c9_i32 : i32 to index
    %c0_109 = arith.constant 0 : index
    %c0_110 = arith.constant 0 : index
    %333 = vector.load %arg10[%332, %c0_109, %c0_110] : memref<16x8x512xf32, #tpu.memory_space<vmem>>, vector<1x8x512xf32>
    %334 = vector.shape_cast %333 : vector<1x8x512xf32> to vector<8x512xf32>
    %cst_111 = arith.constant dense<0.000000e+00> : vector<8x512xf32>
    %335 = tpu.matmul %326, %331, %cst_111 {dimension_numbers = #tpu.dot_dimension_numbers<[1], [0], [0], [1], [0, 0, 1, 1], [], []>} : vector<8x128xf32>, vector<128x512xf32>, vector<8x512xf32> -> vector<8x512xf32>
    %336 = arith.addf %334, %335 : vector<8x512xf32>
    %337 = vector.extract_strided_slice %336 {offsets = [0, 0], sizes = [8, 128], strides = [1, 1]} : vector<8x512xf32> to vector<8x128xf32>
    %338 = arith.negf %337 : vector<8x128xf32>
    %339 = math.exp %338 : vector<8x128xf32>
    %cst_112 = arith.constant 1.000000e+00 : f32
    %340 = vector.broadcast %cst_112 : f32 to vector<8x128xf32>
    %341 = arith.addf %340, %339 : vector<8x128xf32>
    %342 = arith.divf %340, %341 : vector<8x128xf32>
    %343 = vector.extract_strided_slice %336 {offsets = [0, 128], sizes = [8, 128], strides = [1, 1]} : vector<8x512xf32> to vector<8x128xf32>
    %344 = arith.negf %343 : vector<8x128xf32>
    %345 = math.exp %344 : vector<8x128xf32>
    %cst_113 = arith.constant 1.000000e+00 : f32
    %346 = vector.broadcast %cst_113 : f32 to vector<8x128xf32>
    %347 = arith.addf %346, %345 : vector<8x128xf32>
    %348 = arith.divf %346, %347 : vector<8x128xf32>
    %349 = vector.extract_strided_slice %336 {offsets = [0, 256], sizes = [8, 128], strides = [1, 1]} : vector<8x512xf32> to vector<8x128xf32>
    %350 = math.tanh %349 : vector<8x128xf32>
    %351 = vector.extract_strided_slice %336 {offsets = [0, 384], sizes = [8, 128], strides = [1, 1]} : vector<8x512xf32> to vector<8x128xf32>
    %352 = arith.negf %351 : vector<8x128xf32>
    %353 = math.exp %352 : vector<8x128xf32>
    %cst_114 = arith.constant 1.000000e+00 : f32
    %354 = vector.broadcast %cst_114 : f32 to vector<8x128xf32>
    %355 = arith.addf %354, %353 : vector<8x128xf32>
    %356 = arith.divf %354, %355 : vector<8x128xf32>
    %357 = arith.mulf %342, %350 : vector<8x128xf32>
    %358 = arith.mulf %348, %324 : vector<8x128xf32>
    %359 = arith.addf %357, %358 : vector<8x128xf32>
    %360 = math.tanh %359 : vector<8x128xf32>
    %361 = arith.mulf %356, %360 : vector<8x128xf32>
    %362 = arith.index_cast %c9_i32 : i32 to index
    %c0_115 = arith.constant 0 : index
    %c0_116 = arith.constant 0 : index
    %363 = vector.load %arg7[%362, %c0_115, %c0_116] : memref<16x8x128xf32, #tpu.memory_space<vmem>>, vector<1x8x128xf32>
    %364 = vector.shape_cast %363 : vector<1x8x128xf32> to vector<8x128xf32>
    %365 = vector.shape_cast %361 : vector<8x128xf32> to vector<1x8x128xf32>
    tpu.vector_store %arg7[%362, %c0_115, %c0_116], %365 {strides = array<i32>} : memref<16x8x128xf32, #tpu.memory_space<vmem>>, vector<1x8x128xf32>,
    %c10_i32 = arith.constant 10 : i32
    %c0_117 = arith.constant 0 : index
    %c0_118 = arith.constant 0 : index
    %366 = vector.load %arg4[%c0_117, %c0_118] : memref<128x512xf32, #tpu.memory_space<vmem>>, vector<128x512xf32>
    %367 = arith.index_cast %c10_i32 : i32 to index
    %c0_119 = arith.constant 0 : index
    %c0_120 = arith.constant 0 : index
    %368 = vector.load %arg10[%367, %c0_119, %c0_120] : memref<16x8x512xf32, #tpu.memory_space<vmem>>, vector<1x8x512xf32>
    %369 = vector.shape_cast %368 : vector<1x8x512xf32> to vector<8x512xf32>
    %cst_121 = arith.constant dense<0.000000e+00> : vector<8x512xf32>
    %370 = tpu.matmul %361, %366, %cst_121 {dimension_numbers = #tpu.dot_dimension_numbers<[1], [0], [0], [1], [0, 0, 1, 1], [], []>} : vector<8x128xf32>, vector<128x512xf32>, vector<8x512xf32> -> vector<8x512xf32>
    %371 = arith.addf %369, %370 : vector<8x512xf32>
    %372 = vector.extract_strided_slice %371 {offsets = [0, 0], sizes = [8, 128], strides = [1, 1]} : vector<8x512xf32> to vector<8x128xf32>
    %373 = arith.negf %372 : vector<8x128xf32>
    %374 = math.exp %373 : vector<8x128xf32>
    %cst_122 = arith.constant 1.000000e+00 : f32
    %375 = vector.broadcast %cst_122 : f32 to vector<8x128xf32>
    %376 = arith.addf %375, %374 : vector<8x128xf32>
    %377 = arith.divf %375, %376 : vector<8x128xf32>
    %378 = vector.extract_strided_slice %371 {offsets = [0, 128], sizes = [8, 128], strides = [1, 1]} : vector<8x512xf32> to vector<8x128xf32>
    %379 = arith.negf %378 : vector<8x128xf32>
    %380 = math.exp %379 : vector<8x128xf32>
    %cst_123 = arith.constant 1.000000e+00 : f32
    %381 = vector.broadcast %cst_123 : f32 to vector<8x128xf32>
    %382 = arith.addf %381, %380 : vector<8x128xf32>
    %383 = arith.divf %381, %382 : vector<8x128xf32>
    %384 = vector.extract_strided_slice %371 {offsets = [0, 256], sizes = [8, 128], strides = [1, 1]} : vector<8x512xf32> to vector<8x128xf32>
    %385 = math.tanh %384 : vector<8x128xf32>
    %386 = vector.extract_strided_slice %371 {offsets = [0, 384], sizes = [8, 128], strides = [1, 1]} : vector<8x512xf32> to vector<8x128xf32>
    %387 = arith.negf %386 : vector<8x128xf32>
    %388 = math.exp %387 : vector<8x128xf32>
    %cst_124 = arith.constant 1.000000e+00 : f32
    %389 = vector.broadcast %cst_124 : f32 to vector<8x128xf32>
    %390 = arith.addf %389, %388 : vector<8x128xf32>
    %391 = arith.divf %389, %390 : vector<8x128xf32>
    %392 = arith.mulf %377, %385 : vector<8x128xf32>
    %393 = arith.mulf %383, %359 : vector<8x128xf32>
    %394 = arith.addf %392, %393 : vector<8x128xf32>
    %395 = math.tanh %394 : vector<8x128xf32>
    %396 = arith.mulf %391, %395 : vector<8x128xf32>
    %397 = arith.index_cast %c10_i32 : i32 to index
    %c0_125 = arith.constant 0 : index
    %c0_126 = arith.constant 0 : index
    %398 = vector.load %arg7[%397, %c0_125, %c0_126] : memref<16x8x128xf32, #tpu.memory_space<vmem>>, vector<1x8x128xf32>
    %399 = vector.shape_cast %398 : vector<1x8x128xf32> to vector<8x128xf32>
    %400 = vector.shape_cast %396 : vector<8x128xf32> to vector<1x8x128xf32>
    tpu.vector_store %arg7[%397, %c0_125, %c0_126], %400 {strides = array<i32>} : memref<16x8x128xf32, #tpu.memory_space<vmem>>, vector<1x8x128xf32>,
    %c11_i32 = arith.constant 11 : i32
    %c0_127 = arith.constant 0 : index
    %c0_128 = arith.constant 0 : index
    %401 = vector.load %arg4[%c0_127, %c0_128] : memref<128x512xf32, #tpu.memory_space<vmem>>, vector<128x512xf32>
    %402 = arith.index_cast %c11_i32 : i32 to index
    %c0_129 = arith.constant 0 : index
    %c0_130 = arith.constant 0 : index
    %403 = vector.load %arg10[%402, %c0_129, %c0_130] : memref<16x8x512xf32, #tpu.memory_space<vmem>>, vector<1x8x512xf32>
    %404 = vector.shape_cast %403 : vector<1x8x512xf32> to vector<8x512xf32>
    %cst_131 = arith.constant dense<0.000000e+00> : vector<8x512xf32>
    %405 = tpu.matmul %396, %401, %cst_131 {dimension_numbers = #tpu.dot_dimension_numbers<[1], [0], [0], [1], [0, 0, 1, 1], [], []>} : vector<8x128xf32>, vector<128x512xf32>, vector<8x512xf32> -> vector<8x512xf32>
    %406 = arith.addf %404, %405 : vector<8x512xf32>
    %407 = vector.extract_strided_slice %406 {offsets = [0, 0], sizes = [8, 128], strides = [1, 1]} : vector<8x512xf32> to vector<8x128xf32>
    %408 = arith.negf %407 : vector<8x128xf32>
    %409 = math.exp %408 : vector<8x128xf32>
    %cst_132 = arith.constant 1.000000e+00 : f32
    %410 = vector.broadcast %cst_132 : f32 to vector<8x128xf32>
    %411 = arith.addf %410, %409 : vector<8x128xf32>
    %412 = arith.divf %410, %411 : vector<8x128xf32>
    %413 = vector.extract_strided_slice %406 {offsets = [0, 128], sizes = [8, 128], strides = [1, 1]} : vector<8x512xf32> to vector<8x128xf32>
    %414 = arith.negf %413 : vector<8x128xf32>
    %415 = math.exp %414 : vector<8x128xf32>
    %cst_133 = arith.constant 1.000000e+00 : f32
    %416 = vector.broadcast %cst_133 : f32 to vector<8x128xf32>
    %417 = arith.addf %416, %415 : vector<8x128xf32>
    %418 = arith.divf %416, %417 : vector<8x128xf32>
    %419 = vector.extract_strided_slice %406 {offsets = [0, 256], sizes = [8, 128], strides = [1, 1]} : vector<8x512xf32> to vector<8x128xf32>
    %420 = math.tanh %419 : vector<8x128xf32>
    %421 = vector.extract_strided_slice %406 {offsets = [0, 384], sizes = [8, 128], strides = [1, 1]} : vector<8x512xf32> to vector<8x128xf32>
    %422 = arith.negf %421 : vector<8x128xf32>
    %423 = math.exp %422 : vector<8x128xf32>
    %cst_134 = arith.constant 1.000000e+00 : f32
    %424 = vector.broadcast %cst_134 : f32 to vector<8x128xf32>
    %425 = arith.addf %424, %423 : vector<8x128xf32>
    %426 = arith.divf %424, %425 : vector<8x128xf32>
    %427 = arith.mulf %412, %420 : vector<8x128xf32>
    %428 = arith.mulf %418, %394 : vector<8x128xf32>
    %429 = arith.addf %427, %428 : vector<8x128xf32>
    %430 = math.tanh %429 : vector<8x128xf32>
    %431 = arith.mulf %426, %430 : vector<8x128xf32>
    %432 = arith.index_cast %c11_i32 : i32 to index
    %c0_135 = arith.constant 0 : index
    %c0_136 = arith.constant 0 : index
    %433 = vector.load %arg7[%432, %c0_135, %c0_136] : memref<16x8x128xf32, #tpu.memory_space<vmem>>, vector<1x8x128xf32>
    %434 = vector.shape_cast %433 : vector<1x8x128xf32> to vector<8x128xf32>
    %435 = vector.shape_cast %431 : vector<8x128xf32> to vector<1x8x128xf32>
    tpu.vector_store %arg7[%432, %c0_135, %c0_136], %435 {strides = array<i32>} : memref<16x8x128xf32, #tpu.memory_space<vmem>>, vector<1x8x128xf32>,
    %c12_i32 = arith.constant 12 : i32
    %c0_137 = arith.constant 0 : index
    %c0_138 = arith.constant 0 : index
    %436 = vector.load %arg4[%c0_137, %c0_138] : memref<128x512xf32, #tpu.memory_space<vmem>>, vector<128x512xf32>
    %437 = arith.index_cast %c12_i32 : i32 to index
    %c0_139 = arith.constant 0 : index
    %c0_140 = arith.constant 0 : index
    %438 = vector.load %arg10[%437, %c0_139, %c0_140] : memref<16x8x512xf32, #tpu.memory_space<vmem>>, vector<1x8x512xf32>
    %439 = vector.shape_cast %438 : vector<1x8x512xf32> to vector<8x512xf32>
    %cst_141 = arith.constant dense<0.000000e+00> : vector<8x512xf32>
    %440 = tpu.matmul %431, %436, %cst_141 {dimension_numbers = #tpu.dot_dimension_numbers<[1], [0], [0], [1], [0, 0, 1, 1], [], []>} : vector<8x128xf32>, vector<128x512xf32>, vector<8x512xf32> -> vector<8x512xf32>
    %441 = arith.addf %439, %440 : vector<8x512xf32>
    %442 = vector.extract_strided_slice %441 {offsets = [0, 0], sizes = [8, 128], strides = [1, 1]} : vector<8x512xf32> to vector<8x128xf32>
    %443 = arith.negf %442 : vector<8x128xf32>
    %444 = math.exp %443 : vector<8x128xf32>
    %cst_142 = arith.constant 1.000000e+00 : f32
    %445 = vector.broadcast %cst_142 : f32 to vector<8x128xf32>
    %446 = arith.addf %445, %444 : vector<8x128xf32>
    %447 = arith.divf %445, %446 : vector<8x128xf32>
    %448 = vector.extract_strided_slice %441 {offsets = [0, 128], sizes = [8, 128], strides = [1, 1]} : vector<8x512xf32> to vector<8x128xf32>
    %449 = arith.negf %448 : vector<8x128xf32>
    %450 = math.exp %449 : vector<8x128xf32>
    %cst_143 = arith.constant 1.000000e+00 : f32
    %451 = vector.broadcast %cst_143 : f32 to vector<8x128xf32>
    %452 = arith.addf %451, %450 : vector<8x128xf32>
    %453 = arith.divf %451, %452 : vector<8x128xf32>
    %454 = vector.extract_strided_slice %441 {offsets = [0, 256], sizes = [8, 128], strides = [1, 1]} : vector<8x512xf32> to vector<8x128xf32>
    %455 = math.tanh %454 : vector<8x128xf32>
    %456 = vector.extract_strided_slice %441 {offsets = [0, 384], sizes = [8, 128], strides = [1, 1]} : vector<8x512xf32> to vector<8x128xf32>
    %457 = arith.negf %456 : vector<8x128xf32>
    %458 = math.exp %457 : vector<8x128xf32>
    %cst_144 = arith.constant 1.000000e+00 : f32
    %459 = vector.broadcast %cst_144 : f32 to vector<8x128xf32>
    %460 = arith.addf %459, %458 : vector<8x128xf32>
    %461 = arith.divf %459, %460 : vector<8x128xf32>
    %462 = arith.mulf %447, %455 : vector<8x128xf32>
    %463 = arith.mulf %453, %429 : vector<8x128xf32>
    %464 = arith.addf %462, %463 : vector<8x128xf32>
    %465 = math.tanh %464 : vector<8x128xf32>
    %466 = arith.mulf %461, %465 : vector<8x128xf32>
    %467 = arith.index_cast %c12_i32 : i32 to index
    %c0_145 = arith.constant 0 : index
    %c0_146 = arith.constant 0 : index
    %468 = vector.load %arg7[%467, %c0_145, %c0_146] : memref<16x8x128xf32, #tpu.memory_space<vmem>>, vector<1x8x128xf32>
    %469 = vector.shape_cast %468 : vector<1x8x128xf32> to vector<8x128xf32>
    %470 = vector.shape_cast %466 : vector<8x128xf32> to vector<1x8x128xf32>
    tpu.vector_store %arg7[%467, %c0_145, %c0_146], %470 {strides = array<i32>} : memref<16x8x128xf32, #tpu.memory_space<vmem>>, vector<1x8x128xf32>,
    %c13_i32 = arith.constant 13 : i32
    %c0_147 = arith.constant 0 : index
    %c0_148 = arith.constant 0 : index
    %471 = vector.load %arg4[%c0_147, %c0_148] : memref<128x512xf32, #tpu.memory_space<vmem>>, vector<128x512xf32>
    %472 = arith.index_cast %c13_i32 : i32 to index
    %c0_149 = arith.constant 0 : index
    %c0_150 = arith.constant 0 : index
    %473 = vector.load %arg10[%472, %c0_149, %c0_150] : memref<16x8x512xf32, #tpu.memory_space<vmem>>, vector<1x8x512xf32>
    %474 = vector.shape_cast %473 : vector<1x8x512xf32> to vector<8x512xf32>
    %cst_151 = arith.constant dense<0.000000e+00> : vector<8x512xf32>
    %475 = tpu.matmul %466, %471, %cst_151 {dimension_numbers = #tpu.dot_dimension_numbers<[1], [0], [0], [1], [0, 0, 1, 1], [], []>} : vector<8x128xf32>, vector<128x512xf32>, vector<8x512xf32> -> vector<8x512xf32>
    %476 = arith.addf %474, %475 : vector<8x512xf32>
    %477 = vector.extract_strided_slice %476 {offsets = [0, 0], sizes = [8, 128], strides = [1, 1]} : vector<8x512xf32> to vector<8x128xf32>
    %478 = arith.negf %477 : vector<8x128xf32>
    %479 = math.exp %478 : vector<8x128xf32>
    %cst_152 = arith.constant 1.000000e+00 : f32
    %480 = vector.broadcast %cst_152 : f32 to vector<8x128xf32>
    %481 = arith.addf %480, %479 : vector<8x128xf32>
    %482 = arith.divf %480, %481 : vector<8x128xf32>
    %483 = vector.extract_strided_slice %476 {offsets = [0, 128], sizes = [8, 128], strides = [1, 1]} : vector<8x512xf32> to vector<8x128xf32>
    %484 = arith.negf %483 : vector<8x128xf32>
    %485 = math.exp %484 : vector<8x128xf32>
    %cst_153 = arith.constant 1.000000e+00 : f32
    %486 = vector.broadcast %cst_153 : f32 to vector<8x128xf32>
    %487 = arith.addf %486, %485 : vector<8x128xf32>
    %488 = arith.divf %486, %487 : vector<8x128xf32>
    %489 = vector.extract_strided_slice %476 {offsets = [0, 256], sizes = [8, 128], strides = [1, 1]} : vector<8x512xf32> to vector<8x128xf32>
    %490 = math.tanh %489 : vector<8x128xf32>
    %491 = vector.extract_strided_slice %476 {offsets = [0, 384], sizes = [8, 128], strides = [1, 1]} : vector<8x512xf32> to vector<8x128xf32>
    %492 = arith.negf %491 : vector<8x128xf32>
    %493 = math.exp %492 : vector<8x128xf32>
    %cst_154 = arith.constant 1.000000e+00 : f32
    %494 = vector.broadcast %cst_154 : f32 to vector<8x128xf32>
    %495 = arith.addf %494, %493 : vector<8x128xf32>
    %496 = arith.divf %494, %495 : vector<8x128xf32>
    %497 = arith.mulf %482, %490 : vector<8x128xf32>
    %498 = arith.mulf %488, %464 : vector<8x128xf32>
    %499 = arith.addf %497, %498 : vector<8x128xf32>
    %500 = math.tanh %499 : vector<8x128xf32>
    %501 = arith.mulf %496, %500 : vector<8x128xf32>
    %502 = arith.index_cast %c13_i32 : i32 to index
    %c0_155 = arith.constant 0 : index
    %c0_156 = arith.constant 0 : index
    %503 = vector.load %arg7[%502, %c0_155, %c0_156] : memref<16x8x128xf32, #tpu.memory_space<vmem>>, vector<1x8x128xf32>
    %504 = vector.shape_cast %503 : vector<1x8x128xf32> to vector<8x128xf32>
    %505 = vector.shape_cast %501 : vector<8x128xf32> to vector<1x8x128xf32>
    tpu.vector_store %arg7[%502, %c0_155, %c0_156], %505 {strides = array<i32>} : memref<16x8x128xf32, #tpu.memory_space<vmem>>, vector<1x8x128xf32>,
    %c14_i32 = arith.constant 14 : i32
    %c0_157 = arith.constant 0 : index
    %c0_158 = arith.constant 0 : index
    %506 = vector.load %arg4[%c0_157, %c0_158] : memref<128x512xf32, #tpu.memory_space<vmem>>, vector<128x512xf32>
    %507 = arith.index_cast %c14_i32 : i32 to index
    %c0_159 = arith.constant 0 : index
    %c0_160 = arith.constant 0 : index
    %508 = vector.load %arg10[%507, %c0_159, %c0_160] : memref<16x8x512xf32, #tpu.memory_space<vmem>>, vector<1x8x512xf32>
    %509 = vector.shape_cast %508 : vector<1x8x512xf32> to vector<8x512xf32>
    %cst_161 = arith.constant dense<0.000000e+00> : vector<8x512xf32>
    %510 = tpu.matmul %501, %506, %cst_161 {dimension_numbers = #tpu.dot_dimension_numbers<[1], [0], [0], [1], [0, 0, 1, 1], [], []>} : vector<8x128xf32>, vector<128x512xf32>, vector<8x512xf32> -> vector<8x512xf32>
    %511 = arith.addf %509, %510 : vector<8x512xf32>
    %512 = vector.extract_strided_slice %511 {offsets = [0, 0], sizes = [8, 128], strides = [1, 1]} : vector<8x512xf32> to vector<8x128xf32>
    %513 = arith.negf %512 : vector<8x128xf32>
    %514 = math.exp %513 : vector<8x128xf32>
    %cst_162 = arith.constant 1.000000e+00 : f32
    %515 = vector.broadcast %cst_162 : f32 to vector<8x128xf32>
    %516 = arith.addf %515, %514 : vector<8x128xf32>
    %517 = arith.divf %515, %516 : vector<8x128xf32>
    %518 = vector.extract_strided_slice %511 {offsets = [0, 128], sizes = [8, 128], strides = [1, 1]} : vector<8x512xf32> to vector<8x128xf32>
    %519 = arith.negf %518 : vector<8x128xf32>
    %520 = math.exp %519 : vector<8x128xf32>
    %cst_163 = arith.constant 1.000000e+00 : f32
    %521 = vector.broadcast %cst_163 : f32 to vector<8x128xf32>
    %522 = arith.addf %521, %520 : vector<8x128xf32>
    %523 = arith.divf %521, %522 : vector<8x128xf32>
    %524 = vector.extract_strided_slice %511 {offsets = [0, 256], sizes = [8, 128], strides = [1, 1]} : vector<8x512xf32> to vector<8x128xf32>
    %525 = math.tanh %524 : vector<8x128xf32>
    %526 = vector.extract_strided_slice %511 {offsets = [0, 384], sizes = [8, 128], strides = [1, 1]} : vector<8x512xf32> to vector<8x128xf32>
    %527 = arith.negf %526 : vector<8x128xf32>
    %528 = math.exp %527 : vector<8x128xf32>
    %cst_164 = arith.constant 1.000000e+00 : f32
    %529 = vector.broadcast %cst_164 : f32 to vector<8x128xf32>
    %530 = arith.addf %529, %528 : vector<8x128xf32>
    %531 = arith.divf %529, %530 : vector<8x128xf32>
    %532 = arith.mulf %517, %525 : vector<8x128xf32>
    %533 = arith.mulf %523, %499 : vector<8x128xf32>
    %534 = arith.addf %532, %533 : vector<8x128xf32>
    %535 = math.tanh %534 : vector<8x128xf32>
    %536 = arith.mulf %531, %535 : vector<8x128xf32>
    %537 = arith.index_cast %c14_i32 : i32 to index
    %c0_165 = arith.constant 0 : index
    %c0_166 = arith.constant 0 : index
    %538 = vector.load %arg7[%537, %c0_165, %c0_166] : memref<16x8x128xf32, #tpu.memory_space<vmem>>, vector<1x8x128xf32>
    %539 = vector.shape_cast %538 : vector<1x8x128xf32> to vector<8x128xf32>
    %540 = vector.shape_cast %536 : vector<8x128xf32> to vector<1x8x128xf32>
    tpu.vector_store %arg7[%537, %c0_165, %c0_166], %540 {strides = array<i32>} : memref<16x8x128xf32, #tpu.memory_space<vmem>>, vector<1x8x128xf32>,
    %c15_i32 = arith.constant 15 : i32
    %c0_167 = arith.constant 0 : index
    %c0_168 = arith.constant 0 : index
    %541 = vector.load %arg4[%c0_167, %c0_168] : memref<128x512xf32, #tpu.memory_space<vmem>>, vector<128x512xf32>
    %542 = arith.index_cast %c15_i32 : i32 to index
    %c0_169 = arith.constant 0 : index
    %c0_170 = arith.constant 0 : index
    %543 = vector.load %arg10[%542, %c0_169, %c0_170] : memref<16x8x512xf32, #tpu.memory_space<vmem>>, vector<1x8x512xf32>
    %544 = vector.shape_cast %543 : vector<1x8x512xf32> to vector<8x512xf32>
    %cst_171 = arith.constant dense<0.000000e+00> : vector<8x512xf32>
    %545 = tpu.matmul %536, %541, %cst_171 {dimension_numbers = #tpu.dot_dimension_numbers<[1], [0], [0], [1], [0, 0, 1, 1], [], []>} : vector<8x128xf32>, vector<128x512xf32>, vector<8x512xf32> -> vector<8x512xf32>
    %546 = arith.addf %544, %545 : vector<8x512xf32>
    %547 = vector.extract_strided_slice %546 {offsets = [0, 0], sizes = [8, 128], strides = [1, 1]} : vector<8x512xf32> to vector<8x128xf32>
    %548 = arith.negf %547 : vector<8x128xf32>
    %549 = math.exp %548 : vector<8x128xf32>
    %cst_172 = arith.constant 1.000000e+00 : f32
    %550 = vector.broadcast %cst_172 : f32 to vector<8x128xf32>
    %551 = arith.addf %550, %549 : vector<8x128xf32>
    %552 = arith.divf %550, %551 : vector<8x128xf32>
    %553 = vector.extract_strided_slice %546 {offsets = [0, 128], sizes = [8, 128], strides = [1, 1]} : vector<8x512xf32> to vector<8x128xf32>
    %554 = arith.negf %553 : vector<8x128xf32>
    %555 = math.exp %554 : vector<8x128xf32>
    %cst_173 = arith.constant 1.000000e+00 : f32
    %556 = vector.broadcast %cst_173 : f32 to vector<8x128xf32>
    %557 = arith.addf %556, %555 : vector<8x128xf32>
    %558 = arith.divf %556, %557 : vector<8x128xf32>
    %559 = vector.extract_strided_slice %546 {offsets = [0, 256], sizes = [8, 128], strides = [1, 1]} : vector<8x512xf32> to vector<8x128xf32>
    %560 = math.tanh %559 : vector<8x128xf32>
    %561 = vector.extract_strided_slice %546 {offsets = [0, 384], sizes = [8, 128], strides = [1, 1]} : vector<8x512xf32> to vector<8x128xf32>
    %562 = arith.negf %561 : vector<8x128xf32>
    %563 = math.exp %562 : vector<8x128xf32>
    %cst_174 = arith.constant 1.000000e+00 : f32
    %564 = vector.broadcast %cst_174 : f32 to vector<8x128xf32>
    %565 = arith.addf %564, %563 : vector<8x128xf32>
    %566 = arith.divf %564, %565 : vector<8x128xf32>
    %567 = arith.mulf %552, %560 : vector<8x128xf32>
    %568 = arith.mulf %558, %534 : vector<8x128xf32>
    %569 = arith.addf %567, %568 : vector<8x128xf32>
    %570 = math.tanh %569 : vector<8x128xf32>
    %571 = arith.mulf %566, %570 : vector<8x128xf32>
    %572 = arith.index_cast %c15_i32 : i32 to index
    %c0_175 = arith.constant 0 : index
    %c0_176 = arith.constant 0 : index
    %573 = vector.load %arg7[%572, %c0_175, %c0_176] : memref<16x8x128xf32, #tpu.memory_space<vmem>>, vector<1x8x128xf32>
    %574 = vector.shape_cast %573 : vector<1x8x128xf32> to vector<8x128xf32>
    %575 = vector.shape_cast %571 : vector<8x128xf32> to vector<1x8x128xf32>
    tpu.vector_store %arg7[%572, %c0_175, %c0_176], %575 {strides = array<i32>} : memref<16x8x128xf32, #tpu.memory_space<vmem>>, vector<1x8x128xf32>,
    %c16_i32 = arith.constant 16 : i32
    %c0_177 = arith.constant 0 : index
    %c0_178 = arith.constant 0 : index
    %576 = vector.load %arg11[%c0_177, %c0_178] : memref<8x128xf32, #tpu.memory_space<vmem>>, vector<8x128xf32>
    tpu.vector_store %arg11[%c0_177, %c0_178], %571 {strides = array<i32>} : memref<8x128xf32, #tpu.memory_space<vmem>>, vector<8x128xf32>,
    %c0_179 = arith.constant 0 : index
    %c0_180 = arith.constant 0 : index
    %577 = vector.load %arg12[%c0_179, %c0_180] : memref<8x128xf32, #tpu.memory_space<vmem>>, vector<8x128xf32>
    tpu.vector_store %arg12[%c0_179, %c0_180], %569 {strides = array<i32>} : memref<8x128xf32, #tpu.memory_space<vmem>>, vector<8x128xf32>,
    %c2_i32_181 = arith.constant 2 : i32
    %578 = arith.cmpi eq, %arg1, %c2_i32_181 : i32
    %579 = arith.extui %578 : i1 to i32
    %c0_i32_182 = arith.constant 0 : i32
    %580 = arith.cmpi ne, %579, %c0_i32_182 : i32
    scf.if %580 {
      %c0_183 = arith.constant 0 : index
      %c0_184 = arith.constant 0 : index
      %581 = vector.load %arg8[%c0_183, %c0_184] : memref<8x128xf32, #tpu.memory_space<vmem>>, vector<8x128xf32>
      tpu.vector_store %arg8[%c0_183, %c0_184], %571 {strides = array<i32>} : memref<8x128xf32, #tpu.memory_space<vmem>>, vector<8x128xf32>,
      %c0_185 = arith.constant 0 : index
      %c0_186 = arith.constant 0 : index
      %582 = vector.load %arg9[%c0_185, %c0_186] : memref<8x128xf32, #tpu.memory_space<vmem>>, vector<8x128xf32>
      tpu.vector_store %arg9[%c0_185, %c0_186], %569 {strides = array<i32>} : memref<8x128xf32, #tpu.memory_space<vmem>>, vector<8x128xf32>,
    } else {
    }
    return
  }
  func.func @transform_0(%arg0: i32, %arg1: i32) -> (i32, i32, i32) {
    %c0_i32 = arith.constant 0 : i32
    %c0_i32_0 = arith.constant 0 : i32
    return %arg1, %arg0, %c0_i32 : i32, i32, i32
  }
  func.func @transform_1(%arg0: i32, %arg1: i32) -> (i32, i32) {
    %c0_i32 = arith.constant 0 : i32
    %c0_i32_0 = arith.constant 0 : i32
    %c0_i32_1 = arith.constant 0 : i32
    return %c0_i32, %c0_i32_0 : i32, i32
  }
  func.func @transform_2(%arg0: i32, %arg1: i32) -> (i32, i32) {
    %c0_i32 = arith.constant 0 : i32
    %c0_i32_0 = arith.constant 0 : i32
    %c0_i32_1 = arith.constant 0 : i32
    return %c0_i32, %c0_i32_0 : i32, i32
  }
  func.func @transform_3(%arg0: i32, %arg1: i32) -> (i32, i32) {
    %c0_i32 = arith.constant 0 : i32
    %c0_i32_0 = arith.constant 0 : i32
    %c0_i32_1 = arith.constant 0 : i32
    return %c0_i32, %c0_i32_0 : i32, i32
  }
  func.func @transform_4(%arg0: i32, %arg1: i32) -> (i32, i32) {
    %c0_i32 = arith.constant 0 : i32
    %c0_i32_0 = arith.constant 0 : i32
    %c0_i32_1 = arith.constant 0 : i32
    return %c0_i32, %c0_i32_0 : i32, i32
  }
  func.func @transform_5(%arg0: i32, %arg1: i32) -> (i32, i32, i32) {
    %c0_i32 = arith.constant 0 : i32
    %c0_i32_0 = arith.constant 0 : i32
    return %arg1, %arg0, %c0_i32 : i32, i32, i32
  }
  func.func @transform_6(%arg0: i32, %arg1: i32) -> (i32, i32) {
    %c0_i32 = arith.constant 0 : i32
    %c0_i32_0 = arith.constant 0 : i32
    return %arg0, %c0_i32 : i32, i32
  }
  func.func @transform_7(%arg0: i32, %arg1: i32) -> (i32, i32) {
    %c0_i32 = arith.constant 0 : i32
    %c0_i32_0 = arith.constant 0 : i32
    return %arg0, %c0_i32 : i32, i32
  }
}

</mosaic_0001>

<llo_original>
// kernel: tpu_custom_call.1
$region0: #{tpu_custom_call.1}
  #allocation0 [shape = 'u32[]', space=smem, size = 0x4, offset = 0x4, fixed_abs, tag = 'smem constant byte address 0x4 - core index']
  #allocation1 [shape = 'u32[144,128]{1,0:T(1,128)}', space=vmem, size = 0x12000, scoped, tag = 'internal scratch']
  #allocation2 [shape = 'f32[16,8,512]{2,1,0:T(8,128)}', space=vmem, size = 0x40000, scoped, tag = 'scratch operand']
  #allocation3 [shape = 'f32[8,128]{1,0:T(8,128)}', space=vmem, size = 0x1000, scoped, tag = 'scratch operand']
  #allocation4 [shape = 'f32[8,128]{1,0:T(8,128)}', space=vmem, size = 0x1000, scoped, tag = 'scratch operand']
  %s0 = inlined_call_operand.vmem [shape: f32[48,8,32], index: 0, kind: input, shape index: {}]
  %s1 = inlined_call_operand.vmem [shape: f32[32,512], index: 1, kind: input, shape index: {}]
  %s2 = inlined_call_operand.vmem [shape: f32[128,512], index: 2, kind: input, shape index: {}]
  %s3 = inlined_call_operand.vmem [shape: f32[1,512], index: 3, kind: input, shape index: {}]
  %s4 = inlined_call_operand.vmem [shape: f32[1,512], index: 4, kind: input, shape index: {}]
  %s5 = inlined_call_operand.hbm [shape: f32[48,8,128], index: 5, kind: output, shape index: {0}]
  %s6 = inlined_call_operand.hbm [shape: f32[8,128], index: 6, kind: output, shape index: {1}]
  %s7 = inlined_call_operand.hbm [shape: f32[8,128], index: 7, kind: output, shape index: {2}]
  %8 = xla_tuple %s5, %s6, %s7
  %s9 = sld [smem:[#allocation0]]
  $region77: #{tpu_custom_call.1} parent=0
    _
  %s11 = ssub.s32 1, %s9
  %s12 = scalar_select 0, %s11, %s9
  $region1: #{tpu_custom_call.1} parent=0
    #allocation5 [shape = 'u8[131072]{0}', space=vmem, size = 0x20000, scoped, tag = 'output window, operand 0']
    #allocation6 [shape = 's32[2]{0}', space=sflag, size = 0x8, scoped, tag = 'scoped memory for tpu_custom_call.1']
    #allocation7 [shape = 'u8[4096]{0}', space=vmem, size = 0x1000, scoped, tag = 'output window, operand 1, single buffered']
    #allocation8 [shape = 's32[1]{0}', space=sflag, size = 0x4, scoped, tag = 'scoped memory for tpu_custom_call.1']
    #allocation9 [shape = 'u8[4096]{0}', space=vmem, size = 0x1000, scoped, tag = 'output window, operand 2, single buffered']
    %13 = vsyncpa [#allocation6], 0
    %s14 = scalar_lea.sflag [#allocation6], 1
    %15 = vsyncpa %s14, 0
    %16 = vsyncpa [#allocation8], 0
    loop: start=0, step=1, limit=5
    $region2: #{tpu_custom_call.1} parent=1 // loop_pre_header
      _
    $region3: #{tpu_custom_call.1} parent=1 // loop_header
      %s18 = sphi 0, %s22
      %p19 = scmp.ge.s32.totalorder %s18, 5
      %s25 = sphi 0, %s37
      %s26 = sphi 0, %s33
      %s27 = sphi 0, %s25
      %s28 = sphi 0, %s26
      %s29 = sphi 0, %s27
      %s30 = sphi 0, %s28
      %s42 = sphi 0, %s44
      %s45 = sphi 0, %s42
      %s46 = sphi 0, %s45
      %s62 = sphi 0, %s46
      %s66 = sphi 0, %s66
      %s68 = sphi 0, %s66
      %s69 = sphi 0, %s68
      %s83 = sphi 0, %s69
      %s87 = sphi 0, %s87
      %s89 = sphi 0, %s87
      %s90 = sphi 0, %s89
      %s104 = sphi 0, %s90
      %s108 = sphi 0, %s108
      %s110 = sphi 0, %s108
      %s111 = sphi 0, %s110
      %s125 = sphi 0, %s111
      %s129 = sphi 0, %s129
      %s131 = sphi 0, %s129
      %s132 = sphi 0, %s131
      %s146 = sphi 0, %s132
      %s154 = sphi 0, %s156
      %s157 = sphi 0, %s154
      %s158 = sphi 0, %s157
      %s174 = sphi 0, %s158
      %s180 = sphi 0, %s182
      %s183 = sphi 0, %s180
      %s184 = sphi 0, %s183
      %s200 = sphi 0, %s184
      %s206 = sphi 0, %s208
      %s209 = sphi 0, %s206
      %s210 = sphi 0, %s209
      %s226 = sphi 0, %s210
    $region4: #{tpu_custom_call.1} parent=1 // loop_header_branch
      %21 = sbr.rel (%p19) target = $region8
    $region5: #{tpu_custom_call.1} parent=1 // loop_body
      %s23 = ssub.s32 %s18, 1
      %s24 = ssub.s32 %s18, 2
      %s31 = sadd.s32 1, %s26
      %p32 = scmp.ge.s32.totalorder %s31, 3
      %s33 = scalar_select %p32, 0, %s31
      %s34 = sadd.s32 1, %s25
      %s35 = scalar_select %p32, %s34, %s25
      %p36 = scmp.ge.s32.totalorder %s35, 1
      %s37 = scalar_select %p36, 0, %s35
      %s38 = ssub.s32 %s26, %s33
      %s39 = ssub.s32 %s25, %s37
      %s40 = sor.u32 %s38, %s39
      %p41 = scmp.eq.s32.totalorder %s40, 0
      %s43 = sadd.s32 %s42, 1
      %s44 = scalar_select %p41, %s42, %s43
      %p47 = pneg %p41
      %p48 = scmp.eq.s32.totalorder %s18, 2
      %p49 = por %p47, %p48
      %p50 = scmp.ne.s32.totalorder %s42, %s45
      %p51 = scmp.eq.s32.totalorder %s18, 0
      %p52 = por %p50, %p51
      %p53 = scmp.ne.s32.totalorder %s42, %s45
      %p54 = scmp.eq.s32.totalorder %s23, 2
      %p55 = por %p53, %p54
      %p56 = scmp.ne.s32.totalorder %s45, %s46
      %p57 = scmp.eq.s32.totalorder %s23, 0
      %p58 = por %p56, %p57
      %p59 = scmp.ne.s32.totalorder %s45, %s46
      %p60 = scmp.eq.s32.totalorder %s24, 2
      %p61 = por %p59, %p60
      %p63 = scmp.ne.s32.totalorder %s46, %s62
      %p64 = scmp.eq.s32.totalorder %s24, 0
      %p65 = por %p63, %p64
      %s67 = sadd.s32 %s66, 1
      %p70 = scmp.eq.s32.totalorder %s18, 2
      %p71 = scmp.ne.s32.totalorder %s66, %s68
      %p72 = scmp.eq.s32.totalorder %s18, 0
      %p73 = por %p71, %p72
      %p74 = scmp.ne.s32.totalorder %s66, %s68
      %p75 = scmp.eq.s32.totalorder %s23, 2
      %p76 = por %p74, %p75
      %p77 = scmp.ne.s32.totalorder %s68, %s69
      %p78 = scmp.eq.s32.totalorder %s23, 0
      %p79 = por %p77, %p78
      %p80 = scmp.ne.s32.totalorder %s68, %s69
      %p81 = scmp.eq.s32.totalorder %s24, 2
      %p82 = por %p80, %p81
      %p84 = scmp.ne.s32.totalorder %s69, %s83
      %p85 = scmp.eq.s32.totalorder %s24, 0
      %p86 = por %p84, %p85
      %s88 = sadd.s32 %s87, 1
      %p91 = scmp.eq.s32.totalorder %s18, 2
      %p92 = scmp.ne.s32.totalorder %s87, %s89
      %p93 = scmp.eq.s32.totalorder %s18, 0
      %p94 = por %p92, %p93
      %p95 = scmp.ne.s32.totalorder %s87, %s89
      %p96 = scmp.eq.s32.totalorder %s23, 2
      %p97 = por %p95, %p96
      %p98 = scmp.ne.s32.totalorder %s89, %s90
      %p99 = scmp.eq.s32.totalorder %s23, 0
      %p100 = por %p98, %p99
      %p101 = scmp.ne.s32.totalorder %s89, %s90
      %p102 = scmp.eq.s32.totalorder %s24, 2
      %p103 = por %p101, %p102
      %p105 = scmp.ne.s32.totalorder %s90, %s104
      %p106 = scmp.eq.s32.totalorder %s24, 0
      %p107 = por %p105, %p106
      %s109 = sadd.s32 %s108, 1
      %p112 = scmp.eq.s32.totalorder %s18, 2
      %p113 = scmp.ne.s32.totalorder %s108, %s110
      %p114 = scmp.eq.s32.totalorder %s18, 0
      %p115 = por %p113, %p114
      %p116 = scmp.ne.s32.totalorder %s108, %s110
      %p117 = scmp.eq.s32.totalorder %s23, 2
      %p118 = por %p116, %p117
      %p119 = scmp.ne.s32.totalorder %s110, %s111
      %p120 = scmp.eq.s32.totalorder %s23, 0
      %p121 = por %p119, %p120
      %p122 = scmp.ne.s32.totalorder %s110, %s111
      %p123 = scmp.eq.s32.totalorder %s24, 2
      %p124 = por %p122, %p123
      %p126 = scmp.ne.s32.totalorder %s111, %s125
      %p127 = scmp.eq.s32.totalorder %s24, 0
      %p128 = por %p126, %p127
      %s130 = sadd.s32 %s129, 1
      %p133 = scmp.eq.s32.totalorder %s18, 2
      %p134 = scmp.ne.s32.totalorder %s129, %s131
      %p135 = scmp.eq.s32.totalorder %s18, 0
      %p136 = por %p134, %p135
      %p137 = scmp.ne.s32.totalorder %s129, %s131
      %p138 = scmp.eq.s32.totalorder %s23, 2
      %p139 = por %p137, %p138
      %p140 = scmp.ne.s32.totalorder %s131, %s132
      %p141 = scmp.eq.s32.totalorder %s23, 0
      %p142 = por %p140, %p141
      %p143 = scmp.ne.s32.totalorder %s131, %s132
      %p144 = scmp.eq.s32.totalorder %s24, 2
      %p145 = por %p143, %p144
      %p147 = scmp.ne.s32.totalorder %s132, %s146
      %p148 = scmp.eq.s32.totalorder %s24, 0
      %p149 = por %p147, %p148
      %s150 = ssub.s32 %s26, %s33
      %s151 = ssub.s32 %s25, %s37
      %s152 = sor.u32 %s150, %s151
      %p153 = scmp.eq.s32.totalorder %s152, 0
      %s155 = sadd.s32 %s154, 1
      %s156 = scalar_select %p153, %s154, %s155
      %p159 = pneg %p153
      %p160 = scmp.eq.s32.totalorder %s18, 2
      %p161 = por %p159, %p160
      %p162 = scmp.ne.s32.totalorder %s154, %s157
      %p163 = scmp.eq.s32.totalorder %s18, 0
      %p164 = por %p162, %p163
      %p165 = scmp.ne.s32.totalorder %s154, %s157
      %p166 = scmp.eq.s32.totalorder %s23, 2
      %p167 = por %p165, %p166
      %p168 = scmp.ne.s32.totalorder %s157, %s158
      %p169 = scmp.eq.s32.totalorder %s23, 0
      %p170 = por %p168, %p169
      %p171 = scmp.ne.s32.totalorder %s157, %s158
      %p172 = scmp.eq.s32.totalorder %s24, 2
      %p173 = por %p171, %p172
      %p175 = scmp.ne.s32.totalorder %s158, %s174
      %p176 = scmp.eq.s32.totalorder %s24, 0
      %p177 = por %p175, %p176
      %s178 = ssub.s32 %s25, %s37
      %p179 = scmp.eq.s32.totalorder %s178, 0
      %s181 = sadd.s32 %s180, 1
      %s182 = scalar_select %p179, %s180, %s181
      %p185 = pneg %p179
      %p186 = scmp.eq.s32.totalorder %s18, 2
      %p187 = por %p185, %p186
      %p188 = scmp.ne.s32.totalorder %s180, %s183
      %p189 = scmp.eq.s32.totalorder %s18, 0
      %p190 = por %p188, %p189
      %p191 = scmp.ne.s32.totalorder %s180, %s183
      %p192 = scmp.eq.s32.totalorder %s23, 2
      %p193 = por %p191, %p192
      %p194 = scmp.ne.s32.totalorder %s183, %s184
      %p195 = scmp.eq.s32.totalorder %s23, 0
      %p196 = por %p194, %p195
      %p197 = scmp.ne.s32.totalorder %s183, %s184
      %p198 = scmp.eq.s32.totalorder %s24, 2
      %p199 = por %p197, %p198
      %p201 = scmp.ne.s32.totalorder %s184, %s200
      %p202 = scmp.eq.s32.totalorder %s24, 0
      %p203 = por %p201, %p202
      %s204 = ssub.s32 %s25, %s37
      %p205 = scmp.eq.s32.totalorder %s204, 0
      %s207 = sadd.s32 %s206, 1
      %s208 = scalar_select %p205, %s206, %s207
      %p211 = pneg %p205
      %p212 = scmp.eq.s32.totalorder %s18, 2
      %p213 = por %p211, %p212
      %p214 = scmp.ne.s32.totalorder %s206, %s209
      %p215 = scmp.eq.s32.totalorder %s18, 0
      %p216 = por %p214, %p215
      %p217 = scmp.ne.s32.totalorder %s206, %s209
      %p218 = scmp.eq.s32.totalorder %s23, 2
      %p219 = por %p217, %p218
      %p220 = scmp.ne.s32.totalorder %s209, %s210
      %p221 = scmp.eq.s32.totalorder %s23, 0
      %p222 = por %p220, %p221
      %p223 = scmp.ne.s32.totalorder %s209, %s210
      %p224 = scmp.eq.s32.totalorder %s24, 2
      %p225 = por %p223, %p224
      %p227 = scmp.ne.s32.totalorder %s210, %s226
      %p228 = scmp.eq.s32.totalorder %s24, 0
      %p229 = por %p227, %p228
      %p230 = scmp.le.s32.totalorder 1, %s18
      %p231 = scmp.lt.s32.totalorder %s18, 4
      %p232 = pnand %p230, %p231
      %p233 = pneg %p232
      // Predicated region
      $region9: #{tpu_custom_call.1} parent=5 // pred_check
        _
      $region10: #{tpu_custom_call.1} parent=5 // pred_check_branch
        %235 = sbr.rel (%p232) target = $region12
      $region11: #{tpu_custom_call.1} parent=5 // pred_region
        %s236 = ssub.s32 %s18, 1
        // Predicated region
        $region13: #{tpu_custom_call.1} parent=11 // pred_check
          %p237 = pneg %p79
        $region14: #{tpu_custom_call.1} parent=11 // pred_check_branch
          %239 = sbr.rel (%p237) target = $region16
        $region15: #{tpu_custom_call.1} parent=11 // pred_region
          _
        $region16: #{tpu_custom_call.1} parent=11 // pred_fallthru
          _
        // Predicated region
        $region17: #{tpu_custom_call.1} parent=11 // pred_check
          %p240 = pneg %p100
        $region18: #{tpu_custom_call.1} parent=11 // pred_check_branch
          %242 = sbr.rel (%p240) target = $region20
        $region19: #{tpu_custom_call.1} parent=11 // pred_region
          _
        $region20: #{tpu_custom_call.1} parent=11 // pred_fallthru
          _
        // Predicated region
        $region21: #{tpu_custom_call.1} parent=11 // pred_check
          %p243 = pneg %p121
        $region22: #{tpu_custom_call.1} parent=11 // pred_check_branch
          %245 = sbr.rel (%p243) target = $region24
        $region23: #{tpu_custom_call.1} parent=11 // pred_region
          _
        $region24: #{tpu_custom_call.1} parent=11 // pred_fallthru
          _
        // Predicated region
        $region25: #{tpu_custom_call.1} parent=11 // pred_check
          %p246 = pneg %p142
        $region26: #{tpu_custom_call.1} parent=11 // pred_check_branch
          %248 = sbr.rel (%p246) target = $region28
        $region27: #{tpu_custom_call.1} parent=11 // pred_region
          _
        $region28: #{tpu_custom_call.1} parent=11 // pred_fallthru
          _
      $region12: #{tpu_custom_call.1} parent=5 // pred_fallthru
        _
      %p249 = scmp.lt.s32.totalorder %s18, 3
      // Predicated region
      $region29: #{tpu_custom_call.1} parent=5 // pred_check
        %p250 = pneg %p249
      $region30: #{tpu_custom_call.1} parent=5 // pred_check_branch
        %252 = sbr.rel (%p250) target = $region32
      $region31: #{tpu_custom_call.1} parent=5 // pred_region
        // Predicated region
        $region33: #{tpu_custom_call.1} parent=31 // pred_check
          %p253 = pneg %p52
        $region34: #{tpu_custom_call.1} parent=31 // pred_check_branch
          %255 = sbr.rel (%p253) target = $region36
        $region35: #{tpu_custom_call.1} parent=31 // pred_region
          %s256 = smul.u32 16, %s26
          %p257 = scmp.lt.s32.totalorder %s256, 47
          %s258 = scalar_select %p257, %s256, 47
          %p259 = scmp.lt.s32.totalorder %s25, 0
          %s260 = scalar_select %p259, %s25, 0
          %s261 = sadd.s32 %s260, %s258
          %s262 = smul.addr %s261, 8
          %s263 = scalar_lea.vmem %s0, %s262
          %s264 = smul.u32 16, %s26
        $region36: #{tpu_custom_call.1} parent=31 // pred_fallthru
          _
      $region32: #{tpu_custom_call.1} parent=5 // pred_fallthru
        _
      %p265 = scmp.le.s32.totalorder 1, %s18
      %p266 = scmp.lt.s32.totalorder %s18, 4
      %p267 = pnand %p265, %p266
      %p268 = pneg %p267
      // Predicated region
      $region37: #{tpu_custom_call.1} parent=5 // pred_check
        _
      $region38: #{tpu_custom_call.1} parent=5 // pred_check_branch
        %270 = sbr.rel (%p267) target = $region40
      $region39: #{tpu_custom_call.1} parent=5 // pred_region
        %s271 = ssub.s32 %s18, 1
        %s272 = smul.u32 16, %s28
        %p273 = scmp.lt.s32.totalorder %s272, 47
        %s274 = scalar_select %p273, %s272, 47
        %p275 = scmp.lt.s32.totalorder %s27, 0
        %s276 = scalar_select %p275, %s27, 0
        %s277 = sadd.s32 %s276, %s274
        %s278 = smul.addr %s277, 8
        %s279 = scalar_lea.vmem %s0, %s278
        %p280 = pneg %p58
        %p281 = pneg %p55
        %p282 = pneg %p79
        %p283 = pneg %p76
        %p284 = pneg %p100
        %p285 = pneg %p97
        %p286 = pneg %p121
        %p287 = pneg %p118
        %p288 = pneg %p142
        %p289 = pneg %p139
        %p290 = pneg %p170
        %p291 = pneg %p167
        %s292 = sand.u32 %s157, 1
        %s293 = scalar_lea.sflag [#allocation6], %s292
        %s294 = sand.u32 %s157, 1
        %s295 = smul.addr %s294, 128
        %s296 = scalar_lea.vmem [#allocation5], %s295
        %p297 = pneg %p196
        %p298 = pneg %p193
        %p299 = pneg %p222
        %p300 = pneg %p219
        %s301 = smul.u32 16, %s28
        %p302 = scmp.lt.s32.totalorder %s301, 47
        %s303 = scalar_select %p302, %s301, 47
        %p304 = scmp.lt.s32.totalorder %s27, 0
        %s305 = scalar_select %p304, %s27, 0
        %s306 = sadd.s32 %s305, %s303
        %s307 = smul.addr %s306, 8
        %s308 = scalar_lea.vmem %s0, %s307
        %s309 = smul.u32 16, %s28
        %s310 = smul.u32 16, %s28
        %v311 = vld [vmem:[%s1] sm:$0xff]
        %v312 = vld [vmem:[%s1 + $0x8] sm:$0xff]
        %v313 = vld [vmem:[%s1 + $0x10] sm:$0xff]
        %v314 = vld [vmem:[%s1 + $0x18] sm:$0xff]
        %v315 = vld [vmem:[%s1 + $0x20] sm:$0xff]
        %v316 = vld [vmem:[%s1 + $0x28] sm:$0xff]
        %v317 = vld [vmem:[%s1 + $0x30] sm:$0xff]
        %v318 = vld [vmem:[%s1 + $0x38] sm:$0xff]
        %v319 = vld [vmem:[%s1 + $0x40] sm:$0xff]
        %v320 = vld [vmem:[%s1 + $0x48] sm:$0xff]
        %v321 = vld [vmem:[%s1 + $0x50] sm:$0xff]
        %v322 = vld [vmem:[%s1 + $0x58] sm:$0xff]
        %v323 = vld [vmem:[%s1 + $0x60] sm:$0xff]
        %v324 = vld [vmem:[%s1 + $0x68] sm:$0xff]
        %v325 = vld [vmem:[%s1 + $0x70] sm:$0xff]
        %v326 = vld [vmem:[%s1 + $0x78] sm:$0xff]
        %v327 = vld [vmem:[%s308] sm:$0xff]
        %v328 = vld [vmem:[%s308 + $0x8] sm:$0xff]
        %v329 = vld [vmem:[%s308 + $0x10] sm:$0xff]
        %v330 = vld [vmem:[%s308 + $0x18] sm:$0xff]
        %v331 = vld [vmem:[%s308 + $0x20] sm:$0xff]
        %v332 = vld [vmem:[%s308 + $0x28] sm:$0xff]
        %v333 = vld [vmem:[%s308 + $0x30] sm:$0xff]
        %v334 = vld [vmem:[%s308 + $0x38] sm:$0xff]
        %v335 = vld [vmem:[%s308 + $0x40] sm:$0xff]
        %v336 = vld [vmem:[%s308 + $0x48] sm:$0xff]
        %v337 = vld [vmem:[%s308 + $0x50] sm:$0xff]
        %v338 = vld [vmem:[%s308 + $0x58] sm:$0xff]
        %v339 = vld [vmem:[%s308 + $0x60] sm:$0xff]
        %v340 = vld [vmem:[%s308 + $0x68] sm:$0xff]
        %v341 = vld [vmem:[%s308 + $0x70] sm:$0xff]
        %v342 = vld [vmem:[%s308 + $0x78] sm:$0xff]
        %v343 = vld [vmem:[%s3] sm:$0xf]
        %v344 = vld [vmem:[%s4] sm:$0xf]
        %v345 = vadd.f32 %v343, %v344
        %v347 = vlaneseq
        %v348 = vshrl.u32 %v347, 7
        %v349 = vsub.s32 0, %v348
        %v350 = vrot.slane %v345, %v349
        %v351 = vlaneseq
        %v352 = vshrl.u32 %v351, 7
        %v353 = vsub.s32 1, %v352
        %v354 = vrot.slane %v345, %v353
        %v355 = vlaneseq
        %v356 = vshrl.u32 %v355, 7
        %v357 = vsub.s32 2, %v356
        %v358 = vrot.slane %v345, %v357
        %v359 = vlaneseq
        %v360 = vshrl.u32 %v359, 7
        %v361 = vsub.s32 3, %v360
        %v362 = vrot.slane %v345, %v361
        %vm367 = vcmask 261120
        %v369 = vsel %vm367, %v327, 0
        %v372 = vsel %vm367, %v328, 0
        %v375 = vsel %vm367, %v329, 0
        %v378 = vsel %vm367, %v330, 0
        %v381 = vsel %vm367, %v331, 0
        %v384 = vsel %vm367, %v332, 0
        %v387 = vsel %vm367, %v333, 0
        %v390 = vsel %vm367, %v334, 0
        %v393 = vsel %vm367, %v335, 0
        %v396 = vsel %vm367, %v336, 0
        %v399 = vsel %vm367, %v337, 0
        %v402 = vsel %vm367, %v338, 0
        %v405 = vsel %vm367, %v339, 0
        %v408 = vsel %vm367, %v340, 0
        %v411 = vsel %vm367, %v341, 0
        %v414 = vsel %vm367, %v342, 0
        %416 = vmatprep.subr.mxu0 %v312
        %417 = vmatpush1.msra.mxu0 %v311
        %418 = vmatprep.subr.mxu0 %v316
        %419 = vmatpush1.msra.mxu0 %v315
        %420 = vmatprep.subr.mxu0 %v320
        %421 = vmatpush1.msra.mxu0 %v319
        %422 = vmatprep.subr.mxu0 %v324
        %423 = vmatpush1.msra.mxu0 %v323
        %424 = vmatprep.subr.mxu0 0.0
        %425 = vmatpush1.msra.mxu0 0.0
        %426 = vmatprep.subr.mxu0 0.0
        %427 = vmatpush1.msra.mxu0 0.0
        %428 = vmatprep.subr.mxu0 0.0
        %429 = vmatpush1.msra.mxu0 0.0
        %430 = vmatprep.subr.mxu0 0.0
        %431 = vmatpush1.msra.mxu0 0.0
        %432 = vmatprep.subr.mxu0 0.0
        %433 = vmatpush1.msra.mxu0 0.0
        %434 = vmatprep.subr.mxu0 0.0
        %435 = vmatpush1.msra.mxu0 0.0
        %436 = vmatprep.subr.mxu0 0.0
        %437 = vmatpush1.msra.mxu0 0.0
        %438 = vmatprep.subr.mxu0 0.0
        %439 = vmatpush1.msra.mxu0 0.0
        %440 = vmatprep.subr.mxu0 0.0
        %441 = vmatpush1.msra.mxu0 0.0
        %442 = vmatprep.subr.mxu0 0.0
        %443 = vmatpush1.msra.mxu0 0.0
        %444 = vmatprep.subr.mxu0 0.0
        %445 = vmatpush1.msra.mxu0 0.0
        %446 = vmatprep.subr.mxu0 0.0
        %447 = vmatpush1.msra.mxu0 0.0
        %448 = vmatprep.subr.mxu0 0.0
        %449 = vmatpush1.msra.mxu0 0.0
        %450 = vmatprep.subr.mxu0 0.0
        %451 = vmatpush1.msra.mxu0 0.0
        %452 = vmatprep.subr.mxu0 0.0
        %453 = vmatpush1.msra.mxu0 0.0
        %454 = vmatprep.subr.mxu0 0.0
        %455 = vmatpush1.msra.mxu0 0.0
        %456 = vmatprep.subr.mxu0 0.0
        %457 = vmatpush1.msra.mxu0 0.0
        %458 = vmatprep.subr.mxu0 0.0
        %459 = vmatpush1.msra.mxu0 0.0
        %460 = vmatprep.subr.mxu0 0.0
        %461 = vmatpush1.msra.mxu0 0.0
        %462 = vmatprep.subr.mxu0 0.0
        %463 = vmatpush1.msra.mxu0 0.0
        %464 = vmatprep.subr.mxu0 0.0
        %465 = vmatpush1.msra.mxu0 0.0
        %466 = vmatprep.subr.mxu0 0.0
        %467 = vmatpush1.msra.mxu0 0.0
        %468 = vmatprep.subr.mxu0 0.0
        %469 = vmatpush1.msra.mxu0 0.0
        %470 = vmatprep.subr.mxu0 0.0
        %471 = vmatpush1.msra.mxu0 0.0
        %472 = vmatprep.subr.mxu0 0.0
        %473 = vmatpush1.msra.mxu0 0.0
        %474 = vmatprep.subr.mxu0 0.0
        %475 = vmatpush1.msra.mxu0 0.0
        %476 = vmatprep.subr.mxu0 0.0
        %477 = vmatpush1.msra.mxu0 0.0
        %478 = vmatprep.subr.mxu0 0.0
        %479 = vmatpush1.msra.mxu0 0.0
        %480 = vmatprep.mubr.f32.mxu0 0.0
        %481 = vmatmul.mubr.f32.gmra.mrb[0].mxu0 %v369
        %v482 = vpop.f32.mrb[0].mxu0
        %v483 = vadd.f32 %v350, %v482
        %v484 = vpop.f32.mrb[0].mxu0
        %v485 = vadd.f32 %v354, %v484
        %486 = vmatprep.mubr.f32.mxu0 0.0
        %487 = vmatmul.mubr.f32.gmra.mrb[0].mxu0 %v372
        %v488 = vpop.f32.mrb[0].mxu0
        %v489 = vadd.f32 %v350, %v488
        %v490 = vpop.f32.mrb[0].mxu0
        %v491 = vadd.f32 %v354, %v490
        %492 = vmatprep.mubr.f32.mxu0 0.0
        %493 = vmatmul.mubr.f32.gmra.mrb[0].mxu0 %v375
        %v494 = vpop.f32.mrb[0].mxu0
        %v495 = vadd.f32 %v350, %v494
        %v496 = vpop.f32.mrb[0].mxu0
        %v497 = vadd.f32 %v354, %v496
        %498 = vmatprep.mubr.f32.mxu0 0.0
        %499 = vmatmul.mubr.f32.gmra.mrb[0].mxu0 %v378
        %v500 = vpop.f32.mrb[0].mxu0
        %v501 = vadd.f32 %v350, %v500
        %v502 = vpop.f32.mrb[0].mxu0
        %v503 = vadd.f32 %v354, %v502
        %504 = vmatprep.mubr.f32.mxu0 0.0
        %505 = vmatmul.mubr.f32.gmra.mrb[0].mxu0 %v381
        %v506 = vpop.f32.mrb[0].mxu0
        %v507 = vadd.f32 %v350, %v506
        %v508 = vpop.f32.mrb[0].mxu0
        %v509 = vadd.f32 %v354, %v508
        %510 = vmatprep.mubr.f32.mxu0 0.0
        %511 = vmatmul.mubr.f32.gmra.mrb[0].mxu0 %v384
        %v512 = vpop.f32.mrb[0].mxu0
        %v513 = vadd.f32 %v350, %v512
        %v514 = vpop.f32.mrb[0].mxu0
        %v515 = vadd.f32 %v354, %v514
        %516 = vmatprep.mubr.f32.mxu0 0.0
        %517 = vmatmul.mubr.f32.gmra.mrb[0].mxu0 %v387
        %v518 = vpop.f32.mrb[0].mxu0
        %v519 = vadd.f32 %v350, %v518
        %v520 = vpop.f32.mrb[0].mxu0
        %v521 = vadd.f32 %v354, %v520
        %522 = vmatprep.mubr.f32.mxu0 0.0
        %523 = vmatmul.mubr.f32.gmra.mrb[0].mxu0 %v390
        %v524 = vpop.f32.mrb[0].mxu0
        %v525 = vadd.f32 %v350, %v524
        %v526 = vpop.f32.mrb[0].mxu0
        %v527 = vadd.f32 %v354, %v526
        %528 = vmatprep.mubr.f32.mxu0 0.0
        %529 = vmatmul.mubr.f32.gmra.mrb[0].mxu0 %v393
        %v530 = vpop.f32.mrb[0].mxu0
        %v531 = vadd.f32 %v350, %v530
        %v532 = vpop.f32.mrb[0].mxu0
        %v533 = vadd.f32 %v354, %v532
        %534 = vmatprep.mubr.f32.mxu0 0.0
        %535 = vmatmul.mubr.f32.gmra.mrb[0].mxu0 %v396
        %v536 = vpop.f32.mrb[0].mxu0
        %v537 = vadd.f32 %v350, %v536
        %v538 = vpop.f32.mrb[0].mxu0
        %v539 = vadd.f32 %v354, %v538
        %540 = vmatprep.mubr.f32.mxu0 0.0
        %541 = vmatmul.mubr.f32.gmra.mrb[0].mxu0 %v399
        %v542 = vpop.f32.mrb[0].mxu0
        %v543 = vadd.f32 %v350, %v542
        %v544 = vpop.f32.mrb[0].mxu0
        %v545 = vadd.f32 %v354, %v544
        %546 = vmatprep.mubr.f32.mxu0 0.0
        %547 = vmatmul.mubr.f32.gmra.mrb[0].mxu0 %v402
        %v548 = vpop.f32.mrb[0].mxu0
        %v549 = vadd.f32 %v350, %v548
        %v550 = vpop.f32.mrb[0].mxu0
        %v551 = vadd.f32 %v354, %v550
        %552 = vmatprep.mubr.f32.mxu0 0.0
        %553 = vmatmul.mubr.f32.gmra.mrb[0].mxu0 %v405
        %v554 = vpop.f32.mrb[0].mxu0
        %v555 = vadd.f32 %v350, %v554
        %v556 = vpop.f32.mrb[0].mxu0
        %v557 = vadd.f32 %v354, %v556
        %558 = vmatprep.mubr.f32.mxu0 0.0
        %559 = vmatmul.mubr.f32.gmra.mrb[0].mxu0 %v408
        %v560 = vpop.f32.mrb[0].mxu0
        %v561 = vadd.f32 %v350, %v560
        %v562 = vpop.f32.mrb[0].mxu0
        %v563 = vadd.f32 %v354, %v562
        %564 = vmatprep.mubr.f32.mxu0 0.0
        %565 = vmatmul.mubr.f32.gmra.mrb[0].mxu0 %v411
        %v566 = vpop.f32.mrb[0].mxu0
        %v567 = vadd.f32 %v350, %v566
        %v568 = vpop.f32.mrb[0].mxu0
        %v569 = vadd.f32 %v354, %v568
        %570 = vmatprep.mubr.f32.mxu0 0.0
        %571 = vmatmul.mubr.f32.gmra.mrb[0].mxu0 %v414
        %v572 = vpop.f32.mrb[0].mxu0
        %v573 = vadd.f32 %v350, %v572
        %v574 = vpop.f32.mrb[0].mxu0
        %v575 = vadd.f32 %v354, %v574
        %576 = vdwg.mxu0
        %577 = vmatprep.subr.mxu0 %v314
        %578 = vmatpush1.msra.mxu0 %v313
        %579 = vmatprep.subr.mxu0 %v318
        %580 = vmatpush1.msra.mxu0 %v317
        %581 = vmatprep.subr.mxu0 %v322
        %582 = vmatpush1.msra.mxu0 %v321
        %583 = vmatprep.subr.mxu0 %v326
        %584 = vmatpush1.msra.mxu0 %v325
        %585 = vmatprep.subr.mxu0 0.0
        %586 = vmatpush1.msra.mxu0 0.0
        %587 = vmatprep.subr.mxu0 0.0
        %588 = vmatpush1.msra.mxu0 0.0
        %589 = vmatprep.subr.mxu0 0.0
        %590 = vmatpush1.msra.mxu0 0.0
        %591 = vmatprep.subr.mxu0 0.0
        %592 = vmatpush1.msra.mxu0 0.0
        %593 = vmatprep.subr.mxu0 0.0
        %594 = vmatpush1.msra.mxu0 0.0
        %595 = vmatprep.subr.mxu0 0.0
        %596 = vmatpush1.msra.mxu0 0.0
        %597 = vmatprep.subr.mxu0 0.0
        %598 = vmatpush1.msra.mxu0 0.0
        %599 = vmatprep.subr.mxu0 0.0
        %600 = vmatpush1.msra.mxu0 0.0
        %601 = vmatprep.subr.mxu0 0.0
        %602 = vmatpush1.msra.mxu0 0.0
        %603 = vmatprep.subr.mxu0 0.0
        %604 = vmatpush1.msra.mxu0 0.0
        %605 = vmatprep.subr.mxu0 0.0
        %606 = vmatpush1.msra.mxu0 0.0
        %607 = vmatprep.subr.mxu0 0.0
        %608 = vmatpush1.msra.mxu0 0.0
        %609 = vmatprep.subr.mxu0 0.0
        %610 = vmatpush1.msra.mxu0 0.0
        %611 = vmatprep.subr.mxu0 0.0
        %612 = vmatpush1.msra.mxu0 0.0
        %613 = vmatprep.subr.mxu0 0.0
        %614 = vmatpush1.msra.mxu0 0.0
        %615 = vmatprep.subr.mxu0 0.0
        %616 = vmatpush1.msra.mxu0 0.0
        %617 = vmatprep.subr.mxu0 0.0
        %618 = vmatpush1.msra.mxu0 0.0
        %619 = vmatprep.subr.mxu0 0.0
        %620 = vmatpush1.msra.mxu0 0.0
        %621 = vmatprep.subr.mxu0 0.0
        %622 = vmatpush1.msra.mxu0 0.0
        %623 = vmatprep.subr.mxu0 0.0
        %624 = vmatpush1.msra.mxu0 0.0
        %625 = vmatprep.subr.mxu0 0.0
        %626 = vmatpush1.msra.mxu0 0.0
        %627 = vmatprep.subr.mxu0 0.0
        %628 = vmatpush1.msra.mxu0 0.0
        %629 = vmatprep.subr.mxu0 0.0
        %630 = vmatpush1.msra.mxu0 0.0
        %631 = vmatprep.subr.mxu0 0.0
        %632 = vmatpush1.msra.mxu0 0.0
        %633 = vmatprep.subr.mxu0 0.0
        %634 = vmatpush1.msra.mxu0 0.0
        %635 = vmatprep.subr.mxu0 0.0
        %636 = vmatpush1.msra.mxu0 0.0
        %637 = vmatprep.subr.mxu0 0.0
        %638 = vmatpush1.msra.mxu0 0.0
        %639 = vmatprep.subr.mxu0 0.0
        %640 = vmatpush1.msra.mxu0 0.0
        %641 = vmatprep.mubr.f32.mxu0 0.0
        %642 = vmatmul.mubr.f32.gmra.mrb[0].mxu0 %v369
        %v643 = vpop.f32.mrb[0].mxu0
        %v644 = vadd.f32 %v358, %v643
        %v645 = vpop.f32.mrb[0].mxu0
        %v646 = vadd.f32 %v362, %v645
        %647 = vmatprep.mubr.f32.mxu0 0.0
        %648 = vmatmul.mubr.f32.gmra.mrb[0].mxu0 %v372
        %v649 = vpop.f32.mrb[0].mxu0
        %v650 = vadd.f32 %v358, %v649
        %v651 = vpop.f32.mrb[0].mxu0
        %v652 = vadd.f32 %v362, %v651
        %653 = vmatprep.mubr.f32.mxu0 0.0
        %654 = vmatmul.mubr.f32.gmra.mrb[0].mxu0 %v375
        %v655 = vpop.f32.mrb[0].mxu0
        %v656 = vadd.f32 %v358, %v655
        %v657 = vpop.f32.mrb[0].mxu0
        %v658 = vadd.f32 %v362, %v657
        %659 = vmatprep.mubr.f32.mxu0 0.0
        %660 = vmatmul.mubr.f32.gmra.mrb[0].mxu0 %v378
        %v661 = vpop.f32.mrb[0].mxu0
        %v662 = vadd.f32 %v358, %v661
        %v663 = vpop.f32.mrb[0].mxu0
        %v664 = vadd.f32 %v362, %v663
        %665 = vmatprep.mubr.f32.mxu0 0.0
        %666 = vmatmul.mubr.f32.gmra.mrb[0].mxu0 %v381
        %v667 = vpop.f32.mrb[0].mxu0
        %v668 = vadd.f32 %v358, %v667
        %v669 = vpop.f32.mrb[0].mxu0
        %v670 = vadd.f32 %v362, %v669
        %671 = vmatprep.mubr.f32.mxu0 0.0
        %672 = vmatmul.mubr.f32.gmra.mrb[0].mxu0 %v384
        %v673 = vpop.f32.mrb[0].mxu0
        %v674 = vadd.f32 %v358, %v673
        %v675 = vpop.f32.mrb[0].mxu0
        %v676 = vadd.f32 %v362, %v675
        %677 = vmatprep.mubr.f32.mxu0 0.0
        %678 = vmatmul.mubr.f32.gmra.mrb[0].mxu0 %v387
        %v679 = vpop.f32.mrb[0].mxu0
        %v680 = vadd.f32 %v358, %v679
        %v681 = vpop.f32.mrb[0].mxu0
        %v682 = vadd.f32 %v362, %v681
        %683 = vmatprep.mubr.f32.mxu0 0.0
        %684 = vmatmul.mubr.f32.gmra.mrb[0].mxu0 %v390
        %v685 = vpop.f32.mrb[0].mxu0
        %v686 = vadd.f32 %v358, %v685
        %v687 = vpop.f32.mrb[0].mxu0
        %v688 = vadd.f32 %v362, %v687
        %689 = vmatprep.mubr.f32.mxu0 0.0
        %690 = vmatmul.mubr.f32.gmra.mrb[0].mxu0 %v393
        %v691 = vpop.f32.mrb[0].mxu0
        %v692 = vadd.f32 %v358, %v691
        %v693 = vpop.f32.mrb[0].mxu0
        %v694 = vadd.f32 %v362, %v693
        %695 = vmatprep.mubr.f32.mxu0 0.0
        %696 = vmatmul.mubr.f32.gmra.mrb[0].mxu0 %v396
        %v697 = vpop.f32.mrb[0].mxu0
        %v698 = vadd.f32 %v358, %v697
        %v699 = vpop.f32.mrb[0].mxu0
        %v700 = vadd.f32 %v362, %v699
        %701 = vmatprep.mubr.f32.mxu0 0.0
        %702 = vmatmul.mubr.f32.gmra.mrb[0].mxu0 %v399
        %v703 = vpop.f32.mrb[0].mxu0
        %v704 = vadd.f32 %v358, %v703
        %v705 = vpop.f32.mrb[0].mxu0
        %v706 = vadd.f32 %v362, %v705
        %707 = vmatprep.mubr.f32.mxu0 0.0
        %708 = vmatmul.mubr.f32.gmra.mrb[0].mxu0 %v402
        %v709 = vpop.f32.mrb[0].mxu0
        %v710 = vadd.f32 %v358, %v709
        %v711 = vpop.f32.mrb[0].mxu0
        %v712 = vadd.f32 %v362, %v711
        %713 = vmatprep.mubr.f32.mxu0 0.0
        %714 = vmatmul.mubr.f32.gmra.mrb[0].mxu0 %v405
        %v715 = vpop.f32.mrb[0].mxu0
        %v716 = vadd.f32 %v358, %v715
        %v717 = vpop.f32.mrb[0].mxu0
        %v718 = vadd.f32 %v362, %v717
        %719 = vmatprep.mubr.f32.mxu0 0.0
        %720 = vmatmul.mubr.f32.gmra.mrb[0].mxu0 %v408
        %v721 = vpop.f32.mrb[0].mxu0
        %v722 = vadd.f32 %v358, %v721
        %v723 = vpop.f32.mrb[0].mxu0
        %v724 = vadd.f32 %v362, %v723
        %725 = vmatprep.mubr.f32.mxu0 0.0
        %726 = vmatmul.mubr.f32.gmra.mrb[0].mxu0 %v411
        %v727 = vpop.f32.mrb[0].mxu0
        %v728 = vadd.f32 %v358, %v727
        %v729 = vpop.f32.mrb[0].mxu0
        %v730 = vadd.f32 %v362, %v729
        %731 = vmatprep.mubr.f32.mxu0 0.0
        %732 = vmatmul.mubr.f32.gmra.mrb[0].mxu0 %v414
        %v733 = vpop.f32.mrb[0].mxu0
        %v734 = vadd.f32 %v358, %v733
        %v735 = vpop.f32.mrb[0].mxu0
        %v736 = vadd.f32 %v362, %v735
        %737 = vdwg.mxu0
        %738 = vst [vmem:[#allocation2] sm:$0xff] %v483
        %739 = vst [vmem:[#allocation2 + $0x8] sm:$0xff] %v485
        %740 = vst [vmem:[#allocation2 + $0x10] sm:$0xff] %v644
        %741 = vst [vmem:[#allocation2 + $0x18] sm:$0xff] %v646
        %742 = vst [vmem:[#allocation2 + $0x20] sm:$0xff] %v489
        %743 = vst [vmem:[#allocation2 + $0x28] sm:$0xff] %v491
        %744 = vst [vmem:[#allocation2 + $0x30] sm:$0xff] %v650
        %745 = vst [vmem:[#allocation2 + $0x38] sm:$0xff] %v652
        %746 = vst [vmem:[#allocation2 + $0x40] sm:$0xff] %v495
        %747 = vst [vmem:[#allocation2 + $0x48] sm:$0xff] %v497
        %748 = vst [vmem:[#allocation2 + $0x50] sm:$0xff] %v656
        %749 = vst [vmem:[#allocation2 + $0x58] sm:$0xff] %v658
        %750 = vst [vmem:[#allocation2 + $0x60] sm:$0xff] %v501
        %751 = vst [vmem:[#allocation2 + $0x68] sm:$0xff] %v503
        %752 = vst [vmem:[#allocation2 + $0x70] sm:$0xff] %v662
        %753 = vst [vmem:[#allocation2 + $0x78] sm:$0xff] %v664
        %754 = vst [vmem:[#allocation2 + $0x80] sm:$0xff] %v507
        %755 = vst [vmem:[#allocation2 + $0x88] sm:$0xff] %v509
        %756 = vst [vmem:[#allocation2 + $0x90] sm:$0xff] %v668
        %757 = vst [vmem:[#allocation2 + $0x98] sm:$0xff] %v670
        %758 = vst [vmem:[#allocation2 + $0xa0] sm:$0xff] %v513
        %759 = vst [vmem:[#allocation2 + $0xa8] sm:$0xff] %v515
        %760 = vst [vmem:[#allocation2 + $0xb0] sm:$0xff] %v674
        %761 = vst [vmem:[#allocation2 + $0xb8] sm:$0xff] %v676
        %762 = vst [vmem:[#allocation2 + $0xc0] sm:$0xff] %v519
        %763 = vst [vmem:[#allocation2 + $0xc8] sm:$0xff] %v521
        %764 = vst [vmem:[#allocation2 + $0xd0] sm:$0xff] %v680
        %765 = vst [vmem:[#allocation2 + $0xd8] sm:$0xff] %v682
        %766 = vst [vmem:[#allocation2 + $0xe0] sm:$0xff] %v525
        %767 = vst [vmem:[#allocation2 + $0xe8] sm:$0xff] %v527
        %768 = vst [vmem:[#allocation2 + $0xf0] sm:$0xff] %v686
        %769 = vst [vmem:[#allocation2 + $0xf8] sm:$0xff] %v688
        %770 = vst [vmem:[#allocation2 + $0x100] sm:$0xff] %v531
        %771 = vst [vmem:[#allocation2 + $0x108] sm:$0xff] %v533
        %772 = vst [vmem:[#allocation2 + $0x110] sm:$0xff] %v692
        %773 = vst [vmem:[#allocation2 + $0x118] sm:$0xff] %v694
        %774 = vst [vmem:[#allocation2 + $0x120] sm:$0xff] %v537
        %775 = vst [vmem:[#allocation2 + $0x128] sm:$0xff] %v539
        %776 = vst [vmem:[#allocation2 + $0x130] sm:$0xff] %v698
        %777 = vst [vmem:[#allocation2 + $0x138] sm:$0xff] %v700
        %778 = vst [vmem:[#allocation2 + $0x140] sm:$0xff] %v543
        %779 = vst [vmem:[#allocation2 + $0x148] sm:$0xff] %v545
        %780 = vst [vmem:[#allocation2 + $0x150] sm:$0xff] %v704
        %781 = vst [vmem:[#allocation2 + $0x158] sm:$0xff] %v706
        %782 = vst [vmem:[#allocation2 + $0x160] sm:$0xff] %v549
        %783 = vst [vmem:[#allocation2 + $0x168] sm:$0xff] %v551
        %784 = vst [vmem:[#allocation2 + $0x170] sm:$0xff] %v710
        %785 = vst [vmem:[#allocation2 + $0x178] sm:$0xff] %v712
        %786 = vst [vmem:[#allocation2 + $0x180] sm:$0xff] %v555
        %787 = vst [vmem:[#allocation2 + $0x188] sm:$0xff] %v557
        %788 = vst [vmem:[#allocation2 + $0x190] sm:$0xff] %v716
        %789 = vst [vmem:[#allocation2 + $0x198] sm:$0xff] %v718
        %790 = vst [vmem:[#allocation2 + $0x1a0] sm:$0xff] %v561
        %791 = vst [vmem:[#allocation2 + $0x1a8] sm:$0xff] %v563
        %792 = vst [vmem:[#allocation2 + $0x1b0] sm:$0xff] %v722
        %793 = vst [vmem:[#allocation2 + $0x1b8] sm:$0xff] %v724
        %794 = vst [vmem:[#allocation2 + $0x1c0] sm:$0xff] %v567
        %795 = vst [vmem:[#allocation2 + $0x1c8] sm:$0xff] %v569
        %796 = vst [vmem:[#allocation2 + $0x1d0] sm:$0xff] %v728
        %797 = vst [vmem:[#allocation2 + $0x1d8] sm:$0xff] %v730
        %798 = vst [vmem:[#allocation2 + $0x1e0] sm:$0xff] %v573
        %799 = vst [vmem:[#allocation2 + $0x1e8] sm:$0xff] %v575
        %800 = vst [vmem:[#allocation2 + $0x1f0] sm:$0xff] %v734
        %801 = vst [vmem:[#allocation2 + $0x1f8] sm:$0xff] %v736
        %p802 = scmp.eq.s32.totalorder %s28, 0
        // Predicated region
        $region41: #{tpu_custom_call.1} parent=39 // pred_check
          %p803 = pneg %p802
        $region42: #{tpu_custom_call.1} parent=39 // pred_check_branch
          %805 = sbr.rel (%p803) target = $region44
        $region43: #{tpu_custom_call.1} parent=39 // pred_region
          %v806 = vld [vmem:[#allocation2] sm:$0xff]
          %v807 = vld [vmem:[#allocation2 + $0x8] sm:$0xff]
          %v808 = vld [vmem:[#allocation2 + $0x10] sm:$0xff]
          %v809 = vld [vmem:[#allocation2 + $0x18] sm:$0xff]
          %v810 = vld [vmem:[%s4] sm:$0xf]
          %v812 = vlaneseq
          %v813 = vshrl.u32 %v812, 7
          %v814 = vsub.s32 0, %v813
          %v815 = vrot.slane %v810, %v814
          %v816 = vlaneseq
          %v817 = vshrl.u32 %v816, 7
          %v818 = vsub.s32 1, %v817
          %v819 = vrot.slane %v810, %v818
          %v820 = vlaneseq
          %v821 = vshrl.u32 %v820, 7
          %v822 = vsub.s32 2, %v821
          %v823 = vrot.slane %v810, %v822
          %v824 = vlaneseq
          %v825 = vshrl.u32 %v824, 7
          %v826 = vsub.s32 3, %v825
          %v827 = vrot.slane %v810, %v826
          %v832 = vsub.f32 %v806, %v815
          %v833 = vsub.f32 %v807, %v819
          %v834 = vsub.f32 %v808, %v823
          %v835 = vsub.f32 %v809, %v827
          %836 = vst [vmem:[#allocation2] sm:$0xff] %v832
          %837 = vst [vmem:[#allocation2 + $0x8] sm:$0xff] %v833
          %838 = vst [vmem:[#allocation2 + $0x10] sm:$0xff] %v834
          %839 = vst [vmem:[#allocation2 + $0x18] sm:$0xff] %v835
          %840 = vst [vmem:[#allocation3] sm:$0xff] 0.0
          %841 = vst [vmem:[#allocation4] sm:$0xff] 0.0
        $region44: #{tpu_custom_call.1} parent=39 // pred_fallthru
          _
        %v842 = vld [vmem:[#allocation3] sm:$0xff]
        %v843 = vld [vmem:[#allocation4] sm:$0xff]
        %v844 = vld [vmem:[%s2] sm:$0xff]
        %v845 = vld [vmem:[%s2 + $0x8] sm:$0xff]
        %v846 = vld [vmem:[%s2 + $0x10] sm:$0xff]
        %v847 = vld [vmem:[%s2 + $0x18] sm:$0xff]
        %v848 = vld [vmem:[%s2 + $0x20] sm:$0xff]
        %v849 = vld [vmem:[%s2 + $0x28] sm:$0xff]
        %v850 = vld [vmem:[%s2 + $0x30] sm:$0xff]
        %v851 = vld [vmem:[%s2 + $0x38] sm:$0xff]
        %v852 = vld [vmem:[%s2 + $0x40] sm:$0xff]
        %v853 = vld [vmem:[%s2 + $0x48] sm:$0xff]
        %v854 = vld [vmem:[%s2 + $0x50] sm:$0xff]
        %v855 = vld [vmem:[%s2 + $0x58] sm:$0xff]
        %v856 = vld [vmem:[%s2 + $0x60] sm:$0xff]
        %v857 = vld [vmem:[%s2 + $0x68] sm:$0xff]
        %v858 = vld [vmem:[%s2 + $0x70] sm:$0xff]
        %v859 = vld [vmem:[%s2 + $0x78] sm:$0xff]
        %v860 = vld [vmem:[%s2 + $0x80] sm:$0xff]
        %v861 = vld [vmem:[%s2 + $0x88] sm:$0xff]
        %v862 = vld [vmem:[%s2 + $0x90] sm:$0xff]
        %v863 = vld [vmem:[%s2 + $0x98] sm:$0xff]
        %v864 = vld [vmem:[%s2 + $0xa0] sm:$0xff]
        %v865 = vld [vmem:[%s2 + $0xa8] sm:$0xff]
        %v866 = vld [vmem:[%s2 + $0xb0] sm:$0xff]
        %v867 = vld [vmem:[%s2 + $0xb8] sm:$0xff]
        %v868 = vld [vmem:[%s2 + $0xc0] sm:$0xff]
        %v869 = vld [vmem:[%s2 + $0xc8] sm:$0xff]
        %v870 = vld [vmem:[%s2 + $0xd0] sm:$0xff]
        %v871 = vld [vmem:[%s2 + $0xd8] sm:$0xff]
        %v872 = vld [vmem:[%s2 + $0xe0] sm:$0xff]
        %v873 = vld [vmem:[%s2 + $0xe8] sm:$0xff]
        %v874 = vld [vmem:[%s2 + $0xf0] sm:$0xff]
        %v875 = vld [vmem:[%s2 + $0xf8] sm:$0xff]
        %v876 = vld [vmem:[%s2 + $0x100] sm:$0xff]
        %v877 = vld [vmem:[%s2 + $0x108] sm:$0xff]
        %v878 = vld [vmem:[%s2 + $0x110] sm:$0xff]
        %v879 = vld [vmem:[%s2 + $0x118] sm:$0xff]
        %v880 = vld [vmem:[%s2 + $0x120] sm:$0xff]
        %v881 = vld [vmem:[%s2 + $0x128] sm:$0xff]
        %v882 = vld [vmem:[%s2 + $0x130] sm:$0xff]
        %v883 = vld [vmem:[%s2 + $0x138] sm:$0xff]
        %v884 = vld [vmem:[%s2 + $0x140] sm:$0xff]
        %v885 = vld [vmem:[%s2 + $0x148] sm:$0xff]
        %v886 = vld [vmem:[%s2 + $0x150] sm:$0xff]
        %v887 = vld [vmem:[%s2 + $0x158] sm:$0xff]
        %v888 = vld [vmem:[%s2 + $0x160] sm:$0xff]
        %v889 = vld [vmem:[%s2 + $0x168] sm:$0xff]
        %v890 = vld [vmem:[%s2 + $0x170] sm:$0xff]
        %v891 = vld [vmem:[%s2 + $0x178] sm:$0xff]
        %v892 = vld [vmem:[%s2 + $0x180] sm:$0xff]
        %v893 = vld [vmem:[%s2 + $0x188] sm:$0xff]
        %v894 = vld [vmem:[%s2 + $0x190] sm:$0xff]
        %v895 = vld [vmem:[%s2 + $0x198] sm:$0xff]
        %v896 = vld [vmem:[%s2 + $0x1a0] sm:$0xff]
        %v897 = vld [vmem:[%s2 + $0x1a8] sm:$0xff]
        %v898 = vld [vmem:[%s2 + $0x1b0] sm:$0xff]
        %v899 = vld [vmem:[%s2 + $0x1b8] sm:$0xff]
        %v900 = vld [vmem:[%s2 + $0x1c0] sm:$0xff]
        %v901 = vld [vmem:[%s2 + $0x1c8] sm:$0xff]
        %v902 = vld [vmem:[%s2 + $0x1d0] sm:$0xff]
        %v903 = vld [vmem:[%s2 + $0x1d8] sm:$0xff]
        %v904 = vld [vmem:[%s2 + $0x1e0] sm:$0xff]
        %v905 = vld [vmem:[%s2 + $0x1e8] sm:$0xff]
        %v906 = vld [vmem:[%s2 + $0x1f0] sm:$0xff]
        %v907 = vld [vmem:[%s2 + $0x1f8] sm:$0xff]
        %v908 = vld [vmem:[#allocation2] sm:$0xff]
        %v909 = vld [vmem:[#allocation2 + $0x8] sm:$0xff]
        %v910 = vld [vmem:[#allocation2 + $0x10] sm:$0xff]
        %v911 = vld [vmem:[#allocation2 + $0x18] sm:$0xff]
        %912 = vmatprep.subr.mxu0 %v845
        %913 = vmatpush1.msra.mxu0 %v844
        %914 = vmatprep.subr.mxu0 %v849
        %915 = vmatpush1.msra.mxu0 %v848
        %916 = vmatprep.subr.mxu0 %v853
        %917 = vmatpush1.msra.mxu0 %v852
        %918 = vmatprep.subr.mxu0 %v857
        %919 = vmatpush1.msra.mxu0 %v856
        %920 = vmatprep.subr.mxu0 %v861
        %921 = vmatpush1.msra.mxu0 %v860
        %922 = vmatprep.subr.mxu0 %v865
        %923 = vmatpush1.msra.mxu0 %v864
        %924 = vmatprep.subr.mxu0 %v869
        %925 = vmatpush1.msra.mxu0 %v868
        %926 = vmatprep.subr.mxu0 %v873
        %927 = vmatpush1.msra.mxu0 %v872
        %928 = vmatprep.subr.mxu0 %v877
        %929 = vmatpush1.msra.mxu0 %v876
        %930 = vmatprep.subr.mxu0 %v881
        %931 = vmatpush1.msra.mxu0 %v880
        %932 = vmatprep.subr.mxu0 %v885
        %933 = vmatpush1.msra.mxu0 %v884
        %934 = vmatprep.subr.mxu0 %v889
        %935 = vmatpush1.msra.mxu0 %v888
        %936 = vmatprep.subr.mxu0 %v893
        %937 = vmatpush1.msra.mxu0 %v892
        %938 = vmatprep.subr.mxu0 %v897
        %939 = vmatpush1.msra.mxu0 %v896
        %940 = vmatprep.subr.mxu0 %v901
        %941 = vmatpush1.msra.mxu0 %v900
        %942 = vmatprep.subr.mxu0 %v905
        %943 = vmatpush1.msra.mxu0 %v904
        %944 = vmatprep.subr.mxu0 0.0
        %945 = vmatpush1.msra.mxu0 0.0
        %946 = vmatprep.subr.mxu0 0.0
        %947 = vmatpush1.msra.mxu0 0.0
        %948 = vmatprep.subr.mxu0 0.0
        %949 = vmatpush1.msra.mxu0 0.0
        %950 = vmatprep.subr.mxu0 0.0
        %951 = vmatpush1.msra.mxu0 0.0
        %952 = vmatprep.subr.mxu0 0.0
        %953 = vmatpush1.msra.mxu0 0.0
        %954 = vmatprep.subr.mxu0 0.0
        %955 = vmatpush1.msra.mxu0 0.0
        %956 = vmatprep.subr.mxu0 0.0
        %957 = vmatpush1.msra.mxu0 0.0
        %958 = vmatprep.subr.mxu0 0.0
        %959 = vmatpush1.msra.mxu0 0.0
        %960 = vmatprep.subr.mxu0 0.0
        %961 = vmatpush1.msra.mxu0 0.0
        %962 = vmatprep.subr.mxu0 0.0
        %963 = vmatpush1.msra.mxu0 0.0
        %964 = vmatprep.subr.mxu0 0.0
        %965 = vmatpush1.msra.mxu0 0.0
        %966 = vmatprep.subr.mxu0 0.0
        %967 = vmatpush1.msra.mxu0 0.0
        %968 = vmatprep.subr.mxu0 0.0
        %969 = vmatpush1.msra.mxu0 0.0
        %970 = vmatprep.subr.mxu0 0.0
        %971 = vmatpush1.msra.mxu0 0.0
        %972 = vmatprep.subr.mxu0 0.0
        %973 = vmatpush1.msra.mxu0 0.0
        %974 = vmatprep.subr.mxu0 0.0
        %975 = vmatpush1.msra.mxu0 0.0
        %976 = vmatprep.mubr.f32.mxu0 0.0
        %977 = vmatmul.mubr.f32.gmra.mrb[0].mxu0 %v842
        %v978 = vpop.f32.mrb[0].mxu0
        %v979 = vadd.f32 0.0, %v978
        %v980 = vpop.f32.mrb[0].mxu0
        %v981 = vadd.f32 0.0, %v980
        %982 = vdwg.mxu0
        %983 = vmatprep.subr.mxu0 %v847
        %984 = vmatpush1.msra.mxu0 %v846
        %985 = vmatprep.subr.mxu0 %v851
        %986 = vmatpush1.msra.mxu0 %v850
        %987 = vmatprep.subr.mxu0 %v855
        %988 = vmatpush1.msra.mxu0 %v854
        %989 = vmatprep.subr.mxu0 %v859
        %990 = vmatpush1.msra.mxu0 %v858
        %991 = vmatprep.subr.mxu0 %v863
        %992 = vmatpush1.msra.mxu0 %v862
        %993 = vmatprep.subr.mxu0 %v867
        %994 = vmatpush1.msra.mxu0 %v866
        %995 = vmatprep.subr.mxu0 %v871
        %996 = vmatpush1.msra.mxu0 %v870
        %997 = vmatprep.subr.mxu0 %v875
        %998 = vmatpush1.msra.mxu0 %v874
        %999 = vmatprep.subr.mxu0 %v879
        %1000 = vmatpush1.msra.mxu0 %v878
        %1001 = vmatprep.subr.mxu0 %v883
        %1002 = vmatpush1.msra.mxu0 %v882
        %1003 = vmatprep.subr.mxu0 %v887
        %1004 = vmatpush1.msra.mxu0 %v886
        %1005 = vmatprep.subr.mxu0 %v891
        %1006 = vmatpush1.msra.mxu0 %v890
        %1007 = vmatprep.subr.mxu0 %v895
        %1008 = vmatpush1.msra.mxu0 %v894
        %1009 = vmatprep.subr.mxu0 %v899
        %1010 = vmatpush1.msra.mxu0 %v898
        %1011 = vmatprep.subr.mxu0 %v903
        %1012 = vmatpush1.msra.mxu0 %v902
        %1013 = vmatprep.subr.mxu0 %v907
        %1014 = vmatpush1.msra.mxu0 %v906
        %1015 = vmatprep.subr.mxu0 0.0
        %1016 = vmatpush1.msra.mxu0 0.0
        %1017 = vmatprep.subr.mxu0 0.0
        %1018 = vmatpush1.msra.mxu0 0.0
        %1019 = vmatprep.subr.mxu0 0.0
        %1020 = vmatpush1.msra.mxu0 0.0
        %1021 = vmatprep.subr.mxu0 0.0
        %1022 = vmatpush1.msra.mxu0 0.0
        %1023 = vmatprep.subr.mxu0 0.0
        %1024 = vmatpush1.msra.mxu0 0.0
        %1025 = vmatprep.subr.mxu0 0.0
        %1026 = vmatpush1.msra.mxu0 0.0
        %1027 = vmatprep.subr.mxu0 0.0
        %1028 = vmatpush1.msra.mxu0 0.0
        %1029 = vmatprep.subr.mxu0 0.0
        %1030 = vmatpush1.msra.mxu0 0.0
        %1031 = vmatprep.subr.mxu0 0.0
        %1032 = vmatpush1.msra.mxu0 0.0
        %1033 = vmatprep.subr.mxu0 0.0
        %1034 = vmatpush1.msra.mxu0 0.0
        %1035 = vmatprep.subr.mxu0 0.0
        %1036 = vmatpush1.msra.mxu0 0.0
        %1037 = vmatprep.subr.mxu0 0.0
        %1038 = vmatpush1.msra.mxu0 0.0
        %1039 = vmatprep.subr.mxu0 0.0
        %1040 = vmatpush1.msra.mxu0 0.0
        %1041 = vmatprep.subr.mxu0 0.0
        %1042 = vmatpush1.msra.mxu0 0.0
        %1043 = vmatprep.subr.mxu0 0.0
        %1044 = vmatpush1.msra.mxu0 0.0
        %1045 = vmatprep.subr.mxu0 0.0
        %1046 = vmatpush1.msra.mxu0 0.0
        %1047 = vmatprep.mubr.f32.mxu0 0.0
        %1048 = vmatmul.mubr.f32.gmra.mrb[0].mxu0 %v842
        %v1049 = vpop.f32.mrb[0].mxu0
        %v1050 = vadd.f32 0.0, %v1049
        %v1051 = vpop.f32.mrb[0].mxu0
        %v1052 = vadd.f32 0.0, %v1051
        %1053 = vdwg.mxu0
        %v1054 = vadd.f32 %v908, %v979
        %v1055 = vadd.f32 %v909, %v981
        %v1056 = vadd.f32 %v910, %v1050
        %v1057 = vadd.f32 %v911, %v1052
        %v1058 = vxor.u32 %v1054, 2147483648
        %v1059 = vmul.f32 %v1058, 1.442695
        %v1060 = vpow.pop %v1059
        %v1061 = vadd.f32 %v1060, 1.0
        %v1062 = vrcp.pop %v1061
        %v1063 = vmul.f32 1.0, %v1062
        %v1064 = vxor.u32 %v1055, 2147483648
        %v1065 = vmul.f32 %v1064, 1.442695
        %v1066 = vpow.pop %v1065
        %v1067 = vadd.f32 %v1066, 1.0
        %v1068 = vrcp.pop %v1067
        %v1069 = vmul.f32 1.0, %v1068
        %v1070 = vtanh.pop %v1056
        %v1071 = vxor.u32 %v1057, 2147483648
        %v1072 = vmul.f32 %v1071, 1.442695
        %v1073 = vpow.pop %v1072
        %v1074 = vadd.f32 %v1073, 1.0
        %v1075 = vrcp.pop %v1074
        %v1076 = vmul.f32 1.0, %v1075
        %v1077 = vmul.f32 %v1063, %v1070
        %v1078 = vmul.f32 %v1069, %v843
        %v1079 = vadd.f32 %v1077, %v1078
        %v1080 = vtanh.pop %v1079
        %v1081 = vmul.f32 %v1076, %v1080
        %1082 = vst [vmem:[%s296] sm:$0xff] %v1081
        %v1083 = vld [vmem:[%s2] sm:$0xff]
        %v1084 = vld [vmem:[%s2 + $0x8] sm:$0xff]
        %v1085 = vld [vmem:[%s2 + $0x10] sm:$0xff]
        %v1086 = vld [vmem:[%s2 + $0x18] sm:$0xff]
        %v1087 = vld [vmem:[%s2 + $0x20] sm:$0xff]
        %v1088 = vld [vmem:[%s2 + $0x28] sm:$0xff]
        %v1089 = vld [vmem:[%s2 + $0x30] sm:$0xff]
        %v1090 = vld [vmem:[%s2 + $0x38] sm:$0xff]
        %v1091 = vld [vmem:[%s2 + $0x40] sm:$0xff]
        %v1092 = vld [vmem:[%s2 + $0x48] sm:$0xff]
        %v1093 = vld [vmem:[%s2 + $0x50] sm:$0xff]
        %v1094 = vld [vmem:[%s2 + $0x58] sm:$0xff]
        %v1095 = vld [vmem:[%s2 + $0x60] sm:$0xff]
        %v1096 = vld [vmem:[%s2 + $0x68] sm:$0xff]
        %v1097 = vld [vmem:[%s2 + $0x70] sm:$0xff]
        %v1098 = vld [vmem:[%s2 + $0x78] sm:$0xff]
        %v1099 = vld [vmem:[%s2 + $0x80] sm:$0xff]
        %v1100 = vld [vmem:[%s2 + $0x88] sm:$0xff]
        %v1101 = vld [vmem:[%s2 + $0x90] sm:$0xff]
        %v1102 = vld [vmem:[%s2 + $0x98] sm:$0xff]
        %v1103 = vld [vmem:[%s2 + $0xa0] sm:$0xff]
        %v1104 = vld [vmem:[%s2 + $0xa8] sm:$0xff]
        %v1105 = vld [vmem:[%s2 + $0xb0] sm:$0xff]
        %v1106 = vld [vmem:[%s2 + $0xb8] sm:$0xff]
        %v1107 = vld [vmem:[%s2 + $0xc0] sm:$0xff]
        %v1108 = vld [vmem:[%s2 + $0xc8] sm:$0xff]
        %v1109 = vld [vmem:[%s2 + $0xd0] sm:$0xff]
        %v1110 = vld [vmem:[%s2 + $0xd8] sm:$0xff]
        %v1111 = vld [vmem:[%s2 + $0xe0] sm:$0xff]
        %v1112 = vld [vmem:[%s2 + $0xe8] sm:$0xff]
        %v1113 = vld [vmem:[%s2 + $0xf0] sm:$0xff]
        %v1114 = vld [vmem:[%s2 + $0xf8] sm:$0xff]
        %v1115 = vld [vmem:[%s2 + $0x100] sm:$0xff]
        %v1116 = vld [vmem:[%s2 + $0x108] sm:$0xff]
        %v1117 = vld [vmem:[%s2 + $0x110] sm:$0xff]
        %v1118 = vld [vmem:[%s2 + $0x118] sm:$0xff]
        %v1119 = vld [vmem:[%s2 + $0x120] sm:$0xff]
        %v1120 = vld [vmem:[%s2 + $0x128] sm:$0xff]
        %v1121 = vld [vmem:[%s2 + $0x130] sm:$0xff]
        %v1122 = vld [vmem:[%s2 + $0x138] sm:$0xff]
        %v1123 = vld [vmem:[%s2 + $0x140] sm:$0xff]
        %v1124 = vld [vmem:[%s2 + $0x148] sm:$0xff]
        %v1125 = vld [vmem:[%s2 + $0x150] sm:$0xff]
        %v1126 = vld [vmem:[%s2 + $0x158] sm:$0xff]
        %v1127 = vld [vmem:[%s2 + $0x160] sm:$0xff]
        %v1128 = vld [vmem:[%s2 + $0x168] sm:$0xff]
        %v1129 = vld [vmem:[%s2 + $0x170] sm:$0xff]
        %v1130 = vld [vmem:[%s2 + $0x178] sm:$0xff]
        %v1131 = vld [vmem:[%s2 + $0x180] sm:$0xff]
        %v1132 = vld [vmem:[%s2 + $0x188] sm:$0xff]
        %v1133 = vld [vmem:[%s2 + $0x190] sm:$0xff]
        %v1134 = vld [vmem:[%s2 + $0x198] sm:$0xff]
        %v1135 = vld [vmem:[%s2 + $0x1a0] sm:$0xff]
        %v1136 = vld [vmem:[%s2 + $0x1a8] sm:$0xff]
        %v1137 = vld [vmem:[%s2 + $0x1b0] sm:$0xff]
        %v1138 = vld [vmem:[%s2 + $0x1b8] sm:$0xff]
        %v1139 = vld [vmem:[%s2 + $0x1c0] sm:$0xff]
        %v1140 = vld [vmem:[%s2 + $0x1c8] sm:$0xff]
        %v1141 = vld [vmem:[%s2 + $0x1d0] sm:$0xff]
        %v1142 = vld [vmem:[%s2 + $0x1d8] sm:$0xff]
        %v1143 = vld [vmem:[%s2 + $0x1e0] sm:$0xff]
        %v1144 = vld [vmem:[%s2 + $0x1e8] sm:$0xff]
        %v1145 = vld [vmem:[%s2 + $0x1f0] sm:$0xff]
        %v1146 = vld [vmem:[%s2 + $0x1f8] sm:$0xff]
        %s1147 = scalar_lea.vmem [#allocation2], 32
        %v1148 = vld [vmem:[%s1147] sm:$0xff]
        %v1149 = vld [vmem:[%s1147 + $0x8] sm:$0xff]
        %v1150 = vld [vmem:[%s1147 + $0x10] sm:$0xff]
        %v1151 = vld [vmem:[%s1147 + $0x18] sm:$0xff]
        %1152 = vmatprep.subr.mxu0 %v1084
        %1153 = vmatpush1.msra.mxu0 %v1083
        %1154 = vmatprep.subr.mxu0 %v1088
        %1155 = vmatpush1.msra.mxu0 %v1087
        %1156 = vmatprep.subr.mxu0 %v1092
        %1157 = vmatpush1.msra.mxu0 %v1091
        %1158 = vmatprep.subr.mxu0 %v1096
        %1159 = vmatpush1.msra.mxu0 %v1095
        %1160 = vmatprep.subr.mxu0 %v1100
        %1161 = vmatpush1.msra.mxu0 %v1099
        %1162 = vmatprep.subr.mxu0 %v1104
        %1163 = vmatpush1.msra.mxu0 %v1103
        %1164 = vmatprep.subr.mxu0 %v1108
        %1165 = vmatpush1.msra.mxu0 %v1107
        %1166 = vmatprep.subr.mxu0 %v1112
        %1167 = vmatpush1.msra.mxu0 %v1111
        %1168 = vmatprep.subr.mxu0 %v1116
        %1169 = vmatpush1.msra.mxu0 %v1115
        %1170 = vmatprep.subr.mxu0 %v1120
        %1171 = vmatpush1.msra.mxu0 %v1119
        %1172 = vmatprep.subr.mxu0 %v1124
        %1173 = vmatpush1.msra.mxu0 %v1123
        %1174 = vmatprep.subr.mxu0 %v1128
        %1175 = vmatpush1.msra.mxu0 %v1127
        %1176 = vmatprep.subr.mxu0 %v1132
        %1177 = vmatpush1.msra.mxu0 %v1131
        %1178 = vmatprep.subr.mxu0 %v1136
        %1179 = vmatpush1.msra.mxu0 %v1135
        %1180 = vmatprep.subr.mxu0 %v1140
        %1181 = vmatpush1.msra.mxu0 %v1139
        %1182 = vmatprep.subr.mxu0 %v1144
        %1183 = vmatpush1.msra.mxu0 %v1143
        %1184 = vmatprep.subr.mxu0 0.0
        %1185 = vmatpush1.msra.mxu0 0.0
        %1186 = vmatprep.subr.mxu0 0.0
        %1187 = vmatpush1.msra.mxu0 0.0
        %1188 = vmatprep.subr.mxu0 0.0
        %1189 = vmatpush1.msra.mxu0 0.0
        %1190 = vmatprep.subr.mxu0 0.0
        %1191 = vmatpush1.msra.mxu0 0.0
        %1192 = vmatprep.subr.mxu0 0.0
        %1193 = vmatpush1.msra.mxu0 0.0
        %1194 = vmatprep.subr.mxu0 0.0
        %1195 = vmatpush1.msra.mxu0 0.0
        %1196 = vmatprep.subr.mxu0 0.0
        %1197 = vmatpush1.msra.mxu0 0.0
        %1198 = vmatprep.subr.mxu0 0.0
        %1199 = vmatpush1.msra.mxu0 0.0
        %1200 = vmatprep.subr.mxu0 0.0
        %1201 = vmatpush1.msra.mxu0 0.0
        %1202 = vmatprep.subr.mxu0 0.0
        %1203 = vmatpush1.msra.mxu0 0.0
        %1204 = vmatprep.subr.mxu0 0.0
        %1205 = vmatpush1.msra.mxu0 0.0
        %1206 = vmatprep.subr.mxu0 0.0
        %1207 = vmatpush1.msra.mxu0 0.0
        %1208 = vmatprep.subr.mxu0 0.0
        %1209 = vmatpush1.msra.mxu0 0.0
        %1210 = vmatprep.subr.mxu0 0.0
        %1211 = vmatpush1.msra.mxu0 0.0
        %1212 = vmatprep.subr.mxu0 0.0
        %1213 = vmatpush1.msra.mxu0 0.0
        %1214 = vmatprep.subr.mxu0 0.0
        %1215 = vmatpush1.msra.mxu0 0.0
        %1216 = vmatprep.mubr.f32.mxu0 0.0
        %1217 = vmatmul.mubr.f32.gmra.mrb[0].mxu0 %v1081
        %v1218 = vpop.f32.mrb[0].mxu0
        %v1219 = vadd.f32 0.0, %v1218
        %v1220 = vpop.f32.mrb[0].mxu0
        %v1221 = vadd.f32 0.0, %v1220
        %1222 = vdwg.mxu0
        %1223 = vmatprep.subr.mxu0 %v1086
        %1224 = vmatpush1.msra.mxu0 %v1085
        %1225 = vmatprep.subr.mxu0 %v1090
        %1226 = vmatpush1.msra.mxu0 %v1089
        %1227 = vmatprep.subr.mxu0 %v1094
        %1228 = vmatpush1.msra.mxu0 %v1093
        %1229 = vmatprep.subr.mxu0 %v1098
        %1230 = vmatpush1.msra.mxu0 %v1097
        %1231 = vmatprep.subr.mxu0 %v1102
        %1232 = vmatpush1.msra.mxu0 %v1101
        %1233 = vmatprep.subr.mxu0 %v1106
        %1234 = vmatpush1.msra.mxu0 %v1105
        %1235 = vmatprep.subr.mxu0 %v1110
        %1236 = vmatpush1.msra.mxu0 %v1109
        %1237 = vmatprep.subr.mxu0 %v1114
        %1238 = vmatpush1.msra.mxu0 %v1113
        %1239 = vmatprep.subr.mxu0 %v1118
        %1240 = vmatpush1.msra.mxu0 %v1117
        %1241 = vmatprep.subr.mxu0 %v1122
        %1242 = vmatpush1.msra.mxu0 %v1121
        %1243 = vmatprep.subr.mxu0 %v1126
        %1244 = vmatpush1.msra.mxu0 %v1125
        %1245 = vmatprep.subr.mxu0 %v1130
        %1246 = vmatpush1.msra.mxu0 %v1129
        %1247 = vmatprep.subr.mxu0 %v1134
        %1248 = vmatpush1.msra.mxu0 %v1133
        %1249 = vmatprep.subr.mxu0 %v1138
        %1250 = vmatpush1.msra.mxu0 %v1137
        %1251 = vmatprep.subr.mxu0 %v1142
        %1252 = vmatpush1.msra.mxu0 %v1141
        %1253 = vmatprep.subr.mxu0 %v1146
        %1254 = vmatpush1.msra.mxu0 %v1145
        %1255 = vmatprep.subr.mxu0 0.0
        %1256 = vmatpush1.msra.mxu0 0.0
        %1257 = vmatprep.subr.mxu0 0.0
        %1258 = vmatpush1.msra.mxu0 0.0
        %1259 = vmatprep.subr.mxu0 0.0
        %1260 = vmatpush1.msra.mxu0 0.0
        %1261 = vmatprep.subr.mxu0 0.0
        %1262 = vmatpush1.msra.mxu0 0.0
        %1263 = vmatprep.subr.mxu0 0.0
        %1264 = vmatpush1.msra.mxu0 0.0
        %1265 = vmatprep.subr.mxu0 0.0
        %1266 = vmatpush1.msra.mxu0 0.0
        %1267 = vmatprep.subr.mxu0 0.0
        %1268 = vmatpush1.msra.mxu0 0.0
        %1269 = vmatprep.subr.mxu0 0.0
        %1270 = vmatpush1.msra.mxu0 0.0
        %1271 = vmatprep.subr.mxu0 0.0
        %1272 = vmatpush1.msra.mxu0 0.0
        %1273 = vmatprep.subr.mxu0 0.0
        %1274 = vmatpush1.msra.mxu0 0.0
        %1275 = vmatprep.subr.mxu0 0.0
        %1276 = vmatpush1.msra.mxu0 0.0
        %1277 = vmatprep.subr.mxu0 0.0
        %1278 = vmatpush1.msra.mxu0 0.0
        %1279 = vmatprep.subr.mxu0 0.0
        %1280 = vmatpush1.msra.mxu0 0.0
        %1281 = vmatprep.subr.mxu0 0.0
        %1282 = vmatpush1.msra.mxu0 0.0
        %1283 = vmatprep.subr.mxu0 0.0
        %1284 = vmatpush1.msra.mxu0 0.0
        %1285 = vmatprep.subr.mxu0 0.0
        %1286 = vmatpush1.msra.mxu0 0.0
        %1287 = vmatprep.mubr.f32.mxu0 0.0
        %1288 = vmatmul.mubr.f32.gmra.mrb[0].mxu0 %v1081
        %v1289 = vpop.f32.mrb[0].mxu0
        %v1290 = vadd.f32 0.0, %v1289
        %v1291 = vpop.f32.mrb[0].mxu0
        %v1292 = vadd.f32 0.0, %v1291
        %1293 = vdwg.mxu0
        %v1294 = vadd.f32 %v1148, %v1219
        %v1295 = vadd.f32 %v1149, %v1221
        %v1296 = vadd.f32 %v1150, %v1290
        %v1297 = vadd.f32 %v1151, %v1292
        %v1298 = vxor.u32 %v1294, 2147483648
        %v1299 = vmul.f32 %v1298, 1.442695
        %v1300 = vpow.pop %v1299
        %v1301 = vadd.f32 %v1300, 1.0
        %v1302 = vrcp.pop %v1301
        %v1303 = vmul.f32 1.0, %v1302
        %v1304 = vxor.u32 %v1295, 2147483648
        %v1305 = vmul.f32 %v1304, 1.442695
        %v1306 = vpow.pop %v1305
        %v1307 = vadd.f32 %v1306, 1.0
        %v1308 = vrcp.pop %v1307
        %v1309 = vmul.f32 1.0, %v1308
        %v1310 = vtanh.pop %v1296
        %v1311 = vxor.u32 %v1297, 2147483648
        %v1312 = vmul.f32 %v1311, 1.442695
        %v1313 = vpow.pop %v1312
        %v1314 = vadd.f32 %v1313, 1.0
        %v1315 = vrcp.pop %v1314
        %v1316 = vmul.f32 1.0, %v1315
        %v1317 = vmul.f32 %v1303, %v1310
        %v1318 = vmul.f32 %v1309, %v1079
        %v1319 = vadd.f32 %v1317, %v1318
        %v1320 = vtanh.pop %v1319
        %v1321 = vmul.f32 %v1316, %v1320
        %s1322 = scalar_lea.vmem %s296, 8 [#allocation5]
        %1323 = vst [vmem:[%s1322] sm:$0xff] %v1321
        %v1324 = vld [vmem:[%s2] sm:$0xff]
        %v1325 = vld [vmem:[%s2 + $0x8] sm:$0xff]
        %v1326 = vld [vmem:[%s2 + $0x10] sm:$0xff]
        %v1327 = vld [vmem:[%s2 + $0x18] sm:$0xff]
        %v1328 = vld [vmem:[%s2 + $0x20] sm:$0xff]
        %v1329 = vld [vmem:[%s2 + $0x28] sm:$0xff]
        %v1330 = vld [vmem:[%s2 + $0x30] sm:$0xff]
        %v1331 = vld [vmem:[%s2 + $0x38] sm:$0xff]
        %v1332 = vld [vmem:[%s2 + $0x40] sm:$0xff]
        %v1333 = vld [vmem:[%s2 + $0x48] sm:$0xff]
        %v1334 = vld [vmem:[%s2 + $0x50] sm:$0xff]
        %v1335 = vld [vmem:[%s2 + $0x58] sm:$0xff]
        %v1336 = vld [vmem:[%s2 + $0x60] sm:$0xff]
        %v1337 = vld [vmem:[%s2 + $0x68] sm:$0xff]
        %v1338 = vld [vmem:[%s2 + $0x70] sm:$0xff]
        %v1339 = vld [vmem:[%s2 + $0x78] sm:$0xff]
        %v1340 = vld [vmem:[%s2 + $0x80] sm:$0xff]
        %v1341 = vld [vmem:[%s2 + $0x88] sm:$0xff]
        %v1342 = vld [vmem:[%s2 + $0x90] sm:$0xff]
        %v1343 = vld [vmem:[%s2 + $0x98] sm:$0xff]
        %v1344 = vld [vmem:[%s2 + $0xa0] sm:$0xff]
        %v1345 = vld [vmem:[%s2 + $0xa8] sm:$0xff]
        %v1346 = vld [vmem:[%s2 + $0xb0] sm:$0xff]
        %v1347 = vld [vmem:[%s2 + $0xb8] sm:$0xff]
        %v1348 = vld [vmem:[%s2 + $0xc0] sm:$0xff]
        %v1349 = vld [vmem:[%s2 + $0xc8] sm:$0xff]
        %v1350 = vld [vmem:[%s2 + $0xd0] sm:$0xff]
        %v1351 = vld [vmem:[%s2 + $0xd8] sm:$0xff]
        %v1352 = vld [vmem:[%s2 + $0xe0] sm:$0xff]
        %v1353 = vld [vmem:[%s2 + $0xe8] sm:$0xff]
        %v1354 = vld [vmem:[%s2 + $0xf0] sm:$0xff]
        %v1355 = vld [vmem:[%s2 + $0xf8] sm:$0xff]
        %v1356 = vld [vmem:[%s2 + $0x100] sm:$0xff]
        %v1357 = vld [vmem:[%s2 + $0x108] sm:$0xff]
        %v1358 = vld [vmem:[%s2 + $0x110] sm:$0xff]
        %v1359 = vld [vmem:[%s2 + $0x118] sm:$0xff]
        %v1360 = vld [vmem:[%s2 + $0x120] sm:$0xff]
        %v1361 = vld [vmem:[%s2 + $0x128] sm:$0xff]
        %v1362 = vld [vmem:[%s2 + $0x130] sm:$0xff]
        %v1363 = vld [vmem:[%s2 + $0x138] sm:$0xff]
        %v1364 = vld [vmem:[%s2 + $0x140] sm:$0xff]
        %v1365 = vld [vmem:[%s2 + $0x148] sm:$0xff]
        %v1366 = vld [vmem:[%s2 + $0x150] sm:$0xff]
        %v1367 = vld [vmem:[%s2 + $0x158] sm:$0xff]
        %v1368 = vld [vmem:[%s2 + $0x160] sm:$0xff]
        %v1369 = vld [vmem:[%s2 + $0x168] sm:$0xff]
        %v1370 = vld [vmem:[%s2 + $0x170] sm:$0xff]
        %v1371 = vld [vmem:[%s2 + $0x178] sm:$0xff]
        %v1372 = vld [vmem:[%s2 + $0x180] sm:$0xff]
        %v1373 = vld [vmem:[%s2 + $0x188] sm:$0xff]
        %v1374 = vld [vmem:[%s2 + $0x190] sm:$0xff]
        %v1375 = vld [vmem:[%s2 + $0x198] sm:$0xff]
        %v1376 = vld [vmem:[%s2 + $0x1a0] sm:$0xff]
        %v1377 = vld [vmem:[%s2 + $0x1a8] sm:$0xff]
        %v1378 = vld [vmem:[%s2 + $0x1b0] sm:$0xff]
        %v1379 = vld [vmem:[%s2 + $0x1b8] sm:$0xff]
        %v1380 = vld [vmem:[%s2 + $0x1c0] sm:$0xff]
        %v1381 = vld [vmem:[%s2 + $0x1c8] sm:$0xff]
        %v1382 = vld [vmem:[%s2 + $0x1d0] sm:$0xff]
        %v1383 = vld [vmem:[%s2 + $0x1d8] sm:$0xff]
        %v1384 = vld [vmem:[%s2 + $0x1e0] sm:$0xff]
        %v1385 = vld [vmem:[%s2 + $0x1e8] sm:$0xff]
        %v1386 = vld [vmem:[%s2 + $0x1f0] sm:$0xff]
        %v1387 = vld [vmem:[%s2 + $0x1f8] sm:$0xff]
        %s1388 = scalar_lea.vmem [#allocation2], 64
        %v1389 = vld [vmem:[%s1388] sm:$0xff]
        %v1390 = vld [vmem:[%s1388 + $0x8] sm:$0xff]
        %v1391 = vld [vmem:[%s1388 + $0x10] sm:$0xff]
        %v1392 = vld [vmem:[%s1388 + $0x18] sm:$0xff]
        %1393 = vmatprep.subr.mxu0 %v1325
        %1394 = vmatpush1.msra.mxu0 %v1324
        %1395 = vmatprep.subr.mxu0 %v1329
        %1396 = vmatpush1.msra.mxu0 %v1328
        %1397 = vmatprep.subr.mxu0 %v1333
        %1398 = vmatpush1.msra.mxu0 %v1332
        %1399 = vmatprep.subr.mxu0 %v1337
        %1400 = vmatpush1.msra.mxu0 %v1336
        %1401 = vmatprep.subr.mxu0 %v1341
        %1402 = vmatpush1.msra.mxu0 %v1340
        %1403 = vmatprep.subr.mxu0 %v1345
        %1404 = vmatpush1.msra.mxu0 %v1344
        %1405 = vmatprep.subr.mxu0 %v1349
        %1406 = vmatpush1.msra.mxu0 %v1348
        %1407 = vmatprep.subr.mxu0 %v1353
        %1408 = vmatpush1.msra.mxu0 %v1352
        %1409 = vmatprep.subr.mxu0 %v1357
        %1410 = vmatpush1.msra.mxu0 %v1356
        %1411 = vmatprep.subr.mxu0 %v1361
        %1412 = vmatpush1.msra.mxu0 %v1360
        %1413 = vmatprep.subr.mxu0 %v1365
        %1414 = vmatpush1.msra.mxu0 %v1364
        %1415 = vmatprep.subr.mxu0 %v1369
        %1416 = vmatpush1.msra.mxu0 %v1368
        %1417 = vmatprep.subr.mxu0 %v1373
        %1418 = vmatpush1.msra.mxu0 %v1372
        %1419 = vmatprep.subr.mxu0 %v1377
        %1420 = vmatpush1.msra.mxu0 %v1376
        %1421 = vmatprep.subr.mxu0 %v1381
        %1422 = vmatpush1.msra.mxu0 %v1380
        %1423 = vmatprep.subr.mxu0 %v1385
        %1424 = vmatpush1.msra.mxu0 %v1384
        %1425 = vmatprep.subr.mxu0 0.0
        %1426 = vmatpush1.msra.mxu0 0.0
        %1427 = vmatprep.subr.mxu0 0.0
        %1428 = vmatpush1.msra.mxu0 0.0
        %1429 = vmatprep.subr.mxu0 0.0
        %1430 = vmatpush1.msra.mxu0 0.0
        %1431 = vmatprep.subr.mxu0 0.0
        %1432 = vmatpush1.msra.mxu0 0.0
        %1433 = vmatprep.subr.mxu0 0.0
        %1434 = vmatpush1.msra.mxu0 0.0
        %1435 = vmatprep.subr.mxu0 0.0
        %1436 = vmatpush1.msra.mxu0 0.0
        %1437 = vmatprep.subr.mxu0 0.0
        %1438 = vmatpush1.msra.mxu0 0.0
        %1439 = vmatprep.subr.mxu0 0.0
        %1440 = vmatpush1.msra.mxu0 0.0
        %1441 = vmatprep.subr.mxu0 0.0
        %1442 = vmatpush1.msra.mxu0 0.0
        %1443 = vmatprep.subr.mxu0 0.0
        %1444 = vmatpush1.msra.mxu0 0.0
        %1445 = vmatprep.subr.mxu0 0.0
        %1446 = vmatpush1.msra.mxu0 0.0
        %1447 = vmatprep.subr.mxu0 0.0
        %1448 = vmatpush1.msra.mxu0 0.0
        %1449 = vmatprep.subr.mxu0 0.0
        %1450 = vmatpush1.msra.mxu0 0.0
        %1451 = vmatprep.subr.mxu0 0.0
        %1452 = vmatpush1.msra.mxu0 0.0
        %1453 = vmatprep.subr.mxu0 0.0
        %1454 = vmatpush1.msra.mxu0 0.0
        %1455 = vmatprep.subr.mxu0 0.0
        %1456 = vmatpush1.msra.mxu0 0.0
        %1457 = vmatprep.mubr.f32.mxu0 0.0
        %1458 = vmatmul.mubr.f32.gmra.mrb[0].mxu0 %v1321
        %v1459 = vpop.f32.mrb[0].mxu0
        %v1460 = vadd.f32 0.0, %v1459
        %v1461 = vpop.f32.mrb[0].mxu0
        %v1462 = vadd.f32 0.0, %v1461
        %1463 = vdwg.mxu0
        %1464 = vmatprep.subr.mxu0 %v1327
        %1465 = vmatpush1.msra.mxu0 %v1326
        %1466 = vmatprep.subr.mxu0 %v1331
        %1467 = vmatpush1.msra.mxu0 %v1330
        %1468 = vmatprep.subr.mxu0 %v1335
        %1469 = vmatpush1.msra.mxu0 %v1334
        %1470 = vmatprep.subr.mxu0 %v1339
        %1471 = vmatpush1.msra.mxu0 %v1338
        %1472 = vmatprep.subr.mxu0 %v1343
        %1473 = vmatpush1.msra.mxu0 %v1342
        %1474 = vmatprep.subr.mxu0 %v1347
        %1475 = vmatpush1.msra.mxu0 %v1346
        %1476 = vmatprep.subr.mxu0 %v1351
        %1477 = vmatpush1.msra.mxu0 %v1350
        %1478 = vmatprep.subr.mxu0 %v1355
        %1479 = vmatpush1.msra.mxu0 %v1354
        %1480 = vmatprep.subr.mxu0 %v1359
        %1481 = vmatpush1.msra.mxu0 %v1358
        %1482 = vmatprep.subr.mxu0 %v1363
        %1483 = vmatpush1.msra.mxu0 %v1362
        %1484 = vmatprep.subr.mxu0 %v1367
        %1485 = vmatpush1.msra.mxu0 %v1366
        %1486 = vmatprep.subr.mxu0 %v1371
        %1487 = vmatpush1.msra.mxu0 %v1370
        %1488 = vmatprep.subr.mxu0 %v1375
        %1489 = vmatpush1.msra.mxu0 %v1374
        %1490 = vmatprep.subr.mxu0 %v1379
        %1491 = vmatpush1.msra.mxu0 %v1378
        %1492 = vmatprep.subr.mxu0 %v1383
        %1493 = vmatpush1.msra.mxu0 %v1382
        %1494 = vmatprep.subr.mxu0 %v1387
        %1495 = vmatpush1.msra.mxu0 %v1386
        %1496 = vmatprep.subr.mxu0 0.0
        %1497 = vmatpush1.msra.mxu0 0.0
        %1498 = vmatprep.subr.mxu0 0.0
        %1499 = vmatpush1.msra.mxu0 0.0
        %1500 = vmatprep.subr.mxu0 0.0
        %1501 = vmatpush1.msra.mxu0 0.0
        %1502 = vmatprep.subr.mxu0 0.0
        %1503 = vmatpush1.msra.mxu0 0.0
        %1504 = vmatprep.subr.mxu0 0.0
        %1505 = vmatpush1.msra.mxu0 0.0
        %1506 = vmatprep.subr.mxu0 0.0
        %1507 = vmatpush1.msra.mxu0 0.0
        %1508 = vmatprep.subr.mxu0 0.0
        %1509 = vmatpush1.msra.mxu0 0.0
        %1510 = vmatprep.subr.mxu0 0.0
        %1511 = vmatpush1.msra.mxu0 0.0
        %1512 = vmatprep.subr.mxu0 0.0
        %1513 = vmatpush1.msra.mxu0 0.0
        %1514 = vmatprep.subr.mxu0 0.0
        %1515 = vmatpush1.msra.mxu0 0.0
        %1516 = vmatprep.subr.mxu0 0.0
        %1517 = vmatpush1.msra.mxu0 0.0
        %1518 = vmatprep.subr.mxu0 0.0
        %1519 = vmatpush1.msra.mxu0 0.0
        %1520 = vmatprep.subr.mxu0 0.0
        %1521 = vmatpush1.msra.mxu0 0.0
        %1522 = vmatprep.subr.mxu0 0.0
        %1523 = vmatpush1.msra.mxu0 0.0
        %1524 = vmatprep.subr.mxu0 0.0
        %1525 = vmatpush1.msra.mxu0 0.0
        %1526 = vmatprep.subr.mxu0 0.0
        %1527 = vmatpush1.msra.mxu0 0.0
        %1528 = vmatprep.mubr.f32.mxu0 0.0
        %1529 = vmatmul.mubr.f32.gmra.mrb[0].mxu0 %v1321
        %v1530 = vpop.f32.mrb[0].mxu0
        %v1531 = vadd.f32 0.0, %v1530
        %v1532 = vpop.f32.mrb[0].mxu0
        %v1533 = vadd.f32 0.0, %v1532
        %1534 = vdwg.mxu0
        %v1535 = vadd.f32 %v1389, %v1460
        %v1536 = vadd.f32 %v1390, %v1462
        %v1537 = vadd.f32 %v1391, %v1531
        %v1538 = vadd.f32 %v1392, %v1533
        %v1539 = vxor.u32 %v1535, 2147483648
        %v1540 = vmul.f32 %v1539, 1.442695
        %v1541 = vpow.pop %v1540
        %v1542 = vadd.f32 %v1541, 1.0
        %v1543 = vrcp.pop %v1542
        %v1544 = vmul.f32 1.0, %v1543
        %v1545 = vxor.u32 %v1536, 2147483648
        %v1546 = vmul.f32 %v1545, 1.442695
        %v1547 = vpow.pop %v1546
        %v1548 = vadd.f32 %v1547, 1.0
        %v1549 = vrcp.pop %v1548
        %v1550 = vmul.f32 1.0, %v1549
        %v1551 = vtanh.pop %v1537
        %v1552 = vxor.u32 %v1538, 2147483648
        %v1553 = vmul.f32 %v1552, 1.442695
        %v1554 = vpow.pop %v1553
        %v1555 = vadd.f32 %v1554, 1.0
        %v1556 = vrcp.pop %v1555
        %v1557 = vmul.f32 1.0, %v1556
        %v1558 = vmul.f32 %v1544, %v1551
        %v1559 = vmul.f32 %v1550, %v1319
        %v1560 = vadd.f32 %v1558, %v1559
        %v1561 = vtanh.pop %v1560
        %v1562 = vmul.f32 %v1557, %v1561
        %s1563 = scalar_lea.vmem %s296, 16 [#allocation5]
        %1564 = vst [vmem:[%s1563] sm:$0xff] %v1562
        %v1565 = vld [vmem:[%s2] sm:$0xff]
        %v1566 = vld [vmem:[%s2 + $0x8] sm:$0xff]
        %v1567 = vld [vmem:[%s2 + $0x10] sm:$0xff]
        %v1568 = vld [vmem:[%s2 + $0x18] sm:$0xff]
        %v1569 = vld [vmem:[%s2 + $0x20] sm:$0xff]
        %v1570 = vld [vmem:[%s2 + $0x28] sm:$0xff]
        %v1571 = vld [vmem:[%s2 + $0x30] sm:$0xff]
        %v1572 = vld [vmem:[%s2 + $0x38] sm:$0xff]
        %v1573 = vld [vmem:[%s2 + $0x40] sm:$0xff]
        %v1574 = vld [vmem:[%s2 + $0x48] sm:$0xff]
        %v1575 = vld [vmem:[%s2 + $0x50] sm:$0xff]
        %v1576 = vld [vmem:[%s2 + $0x58] sm:$0xff]
        %v1577 = vld [vmem:[%s2 + $0x60] sm:$0xff]
        %v1578 = vld [vmem:[%s2 + $0x68] sm:$0xff]
        %v1579 = vld [vmem:[%s2 + $0x70] sm:$0xff]
        %v1580 = vld [vmem:[%s2 + $0x78] sm:$0xff]
        %v1581 = vld [vmem:[%s2 + $0x80] sm:$0xff]
        %v1582 = vld [vmem:[%s2 + $0x88] sm:$0xff]
        %v1583 = vld [vmem:[%s2 + $0x90] sm:$0xff]
        %v1584 = vld [vmem:[%s2 + $0x98] sm:$0xff]
        %v1585 = vld [vmem:[%s2 + $0xa0] sm:$0xff]
        %v1586 = vld [vmem:[%s2 + $0xa8] sm:$0xff]
        %v1587 = vld [vmem:[%s2 + $0xb0] sm:$0xff]
        %v1588 = vld [vmem:[%s2 + $0xb8] sm:$0xff]
        %v1589 = vld [vmem:[%s2 + $0xc0] sm:$0xff]
        %v1590 = vld [vmem:[%s2 + $0xc8] sm:$0xff]
        %v1591 = vld [vmem:[%s2 + $0xd0] sm:$0xff]
        %v1592 = vld [vmem:[%s2 + $0xd8] sm:$0xff]
        %v1593 = vld [vmem:[%s2 + $0xe0] sm:$0xff]
        %v1594 = vld [vmem:[%s2 + $0xe8] sm:$0xff]
        %v1595 = vld [vmem:[%s2 + $0xf0] sm:$0xff]
        %v1596 = vld [vmem:[%s2 + $0xf8] sm:$0xff]
        %v1597 = vld [vmem:[%s2 + $0x100] sm:$0xff]
        %v1598 = vld [vmem:[%s2 + $0x108] sm:$0xff]
        %v1599 = vld [vmem:[%s2 + $0x110] sm:$0xff]
        %v1600 = vld [vmem:[%s2 + $0x118] sm:$0xff]
        %v1601 = vld [vmem:[%s2 + $0x120] sm:$0xff]
        %v1602 = vld [vmem:[%s2 + $0x128] sm:$0xff]
        %v1603 = vld [vmem:[%s2 + $0x130] sm:$0xff]
        %v1604 = vld [vmem:[%s2 + $0x138] sm:$0xff]
        %v1605 = vld [vmem:[%s2 + $0x140] sm:$0xff]
        %v1606 = vld [vmem:[%s2 + $0x148] sm:$0xff]
        %v1607 = vld [vmem:[%s2 + $0x150] sm:$0xff]
        %v1608 = vld [vmem:[%s2 + $0x158] sm:$0xff]
        %v1609 = vld [vmem:[%s2 + $0x160] sm:$0xff]
        %v1610 = vld [vmem:[%s2 + $0x168] sm:$0xff]
        %v1611 = vld [vmem:[%s2 + $0x170] sm:$0xff]
        %v1612 = vld [vmem:[%s2 + $0x178] sm:$0xff]
        %v1613 = vld [vmem:[%s2 + $0x180] sm:$0xff]
        %v1614 = vld [vmem:[%s2 + $0x188] sm:$0xff]
        %v1615 = vld [vmem:[%s2 + $0x190] sm:$0xff]
        %v1616 = vld [vmem:[%s2 + $0x198] sm:$0xff]
        %v1617 = vld [vmem:[%s2 + $0x1a0] sm:$0xff]
        %v1618 = vld [vmem:[%s2 + $0x1a8] sm:$0xff]
        %v1619 = vld [vmem:[%s2 + $0x1b0] sm:$0xff]
        %v1620 = vld [vmem:[%s2 + $0x1b8] sm:$0xff]
        %v1621 = vld [vmem:[%s2 + $0x1c0] sm:$0xff]
        %v1622 = vld [vmem:[%s2 + $0x1c8] sm:$0xff]
        %v1623 = vld [vmem:[%s2 + $0x1d0] sm:$0xff]
        %v1624 = vld [vmem:[%s2 + $0x1d8] sm:$0xff]
        %v1625 = vld [vmem:[%s2 + $0x1e0] sm:$0xff]
        %v1626 = vld [vmem:[%s2 + $0x1e8] sm:$0xff]
        %v1627 = vld [vmem:[%s2 + $0x1f0] sm:$0xff]
        %v1628 = vld [vmem:[%s2 + $0x1f8] sm:$0xff]
        %s1629 = scalar_lea.vmem [#allocation2], 96
        %v1630 = vld [vmem:[%s1629] sm:$0xff]
        %v1631 = vld [vmem:[%s1629 + $0x8] sm:$0xff]
        %v1632 = vld [vmem:[%s1629 + $0x10] sm:$0xff]
        %v1633 = vld [vmem:[%s1629 + $0x18] sm:$0xff]
        %1634 = vmatprep.subr.mxu0 %v1566
        %1635 = vmatpush1.msra.mxu0 %v1565
        %1636 = vmatprep.subr.mxu0 %v1570
        %1637 = vmatpush1.msra.mxu0 %v1569
        %1638 = vmatprep.subr.mxu0 %v1574
        %1639 = vmatpush1.msra.mxu0 %v1573
        %1640 = vmatprep.subr.mxu0 %v1578
        %1641 = vmatpush1.msra.mxu0 %v1577
        %1642 = vmatprep.subr.mxu0 %v1582
        %1643 = vmatpush1.msra.mxu0 %v1581
        %1644 = vmatprep.subr.mxu0 %v1586
        %1645 = vmatpush1.msra.mxu0 %v1585
        %1646 = vmatprep.subr.mxu0 %v1590
        %1647 = vmatpush1.msra.mxu0 %v1589
        %1648 = vmatprep.subr.mxu0 %v1594
        %1649 = vmatpush1.msra.mxu0 %v1593
        %1650 = vmatprep.subr.mxu0 %v1598
        %1651 = vmatpush1.msra.mxu0 %v1597
        %1652 = vmatprep.subr.mxu0 %v1602
        %1653 = vmatpush1.msra.mxu0 %v1601
        %1654 = vmatprep.subr.mxu0 %v1606
        %1655 = vmatpush1.msra.mxu0 %v1605
        %1656 = vmatprep.subr.mxu0 %v1610
        %1657 = vmatpush1.msra.mxu0 %v1609
        %1658 = vmatprep.subr.mxu0 %v1614
        %1659 = vmatpush1.msra.mxu0 %v1613
        %1660 = vmatprep.subr.mxu0 %v1618
        %1661 = vmatpush1.msra.mxu0 %v1617
        %1662 = vmatprep.subr.mxu0 %v1622
        %1663 = vmatpush1.msra.mxu0 %v1621
        %1664 = vmatprep.subr.mxu0 %v1626
        %1665 = vmatpush1.msra.mxu0 %v1625
        %1666 = vmatprep.subr.mxu0 0.0
        %1667 = vmatpush1.msra.mxu0 0.0
        %1668 = vmatprep.subr.mxu0 0.0
        %1669 = vmatpush1.msra.mxu0 0.0
        %1670 = vmatprep.subr.mxu0 0.0
        %1671 = vmatpush1.msra.mxu0 0.0
        %1672 = vmatprep.subr.mxu0 0.0
        %1673 = vmatpush1.msra.mxu0 0.0
        %1674 = vmatprep.subr.mxu0 0.0
        %1675 = vmatpush1.msra.mxu0 0.0
        %1676 = vmatprep.subr.mxu0 0.0
        %1677 = vmatpush1.msra.mxu0 0.0
        %1678 = vmatprep.subr.mxu0 0.0
        %1679 = vmatpush1.msra.mxu0 0.0
        %1680 = vmatprep.subr.mxu0 0.0
        %1681 = vmatpush1.msra.mxu0 0.0
        %1682 = vmatprep.subr.mxu0 0.0
        %1683 = vmatpush1.msra.mxu0 0.0
        %1684 = vmatprep.subr.mxu0 0.0
        %1685 = vmatpush1.msra.mxu0 0.0
        %1686 = vmatprep.subr.mxu0 0.0
        %1687 = vmatpush1.msra.mxu0 0.0
        %1688 = vmatprep.subr.mxu0 0.0
        %1689 = vmatpush1.msra.mxu0 0.0
        %1690 = vmatprep.subr.mxu0 0.0
        %1691 = vmatpush1.msra.mxu0 0.0
        %1692 = vmatprep.subr.mxu0 0.0
        %1693 = vmatpush1.msra.mxu0 0.0
        %1694 = vmatprep.subr.mxu0 0.0
        %1695 = vmatpush1.msra.mxu0 0.0
        %1696 = vmatprep.subr.mxu0 0.0
        %1697 = vmatpush1.msra.mxu0 0.0
        %1698 = vmatprep.mubr.f32.mxu0 0.0
        %1699 = vmatmul.mubr.f32.gmra.mrb[0].mxu0 %v1562
        %v1700 = vpop.f32.mrb[0].mxu0
        %v1701 = vadd.f32 0.0, %v1700
        %v1702 = vpop.f32.mrb[0].mxu0
        %v1703 = vadd.f32 0.0, %v1702
        %1704 = vdwg.mxu0
        %1705 = vmatprep.subr.mxu0 %v1568
        %1706 = vmatpush1.msra.mxu0 %v1567
        %1707 = vmatprep.subr.mxu0 %v1572
        %1708 = vmatpush1.msra.mxu0 %v1571
        %1709 = vmatprep.subr.mxu0 %v1576
        %1710 = vmatpush1.msra.mxu0 %v1575
        %1711 = vmatprep.subr.mxu0 %v1580
        %1712 = vmatpush1.msra.mxu0 %v1579
        %1713 = vmatprep.subr.mxu0 %v1584
        %1714 = vmatpush1.msra.mxu0 %v1583
        %1715 = vmatprep.subr.mxu0 %v1588
        %1716 = vmatpush1.msra.mxu0 %v1587
        %1717 = vmatprep.subr.mxu0 %v1592
        %1718 = vmatpush1.msra.mxu0 %v1591
        %1719 = vmatprep.subr.mxu0 %v1596
        %1720 = vmatpush1.msra.mxu0 %v1595
        %1721 = vmatprep.subr.mxu0 %v1600
        %1722 = vmatpush1.msra.mxu0 %v1599
        %1723 = vmatprep.subr.mxu0 %v1604
        %1724 = vmatpush1.msra.mxu0 %v1603
        %1725 = vmatprep.subr.mxu0 %v1608
        %1726 = vmatpush1.msra.mxu0 %v1607
        %1727 = vmatprep.subr.mxu0 %v1612
        %1728 = vmatpush1.msra.mxu0 %v1611
        %1729 = vmatprep.subr.mxu0 %v1616
        %1730 = vmatpush1.msra.mxu0 %v1615
        %1731 = vmatprep.subr.mxu0 %v1620
        %1732 = vmatpush1.msra.mxu0 %v1619
        %1733 = vmatprep.subr.mxu0 %v1624
        %1734 = vmatpush1.msra.mxu0 %v1623
        %1735 = vmatprep.subr.mxu0 %v1628
        %1736 = vmatpush1.msra.mxu0 %v1627
        %1737 = vmatprep.subr.mxu0 0.0
        %1738 = vmatpush1.msra.mxu0 0.0
        %1739 = vmatprep.subr.mxu0 0.0
        %1740 = vmatpush1.msra.mxu0 0.0
        %1741 = vmatprep.subr.mxu0 0.0
        %1742 = vmatpush1.msra.mxu0 0.0
        %1743 = vmatprep.subr.mxu0 0.0
        %1744 = vmatpush1.msra.mxu0 0.0
        %1745 = vmatprep.subr.mxu0 0.0
        %1746 = vmatpush1.msra.mxu0 0.0
        %1747 = vmatprep.subr.mxu0 0.0
        %1748 = vmatpush1.msra.mxu0 0.0
        %1749 = vmatprep.subr.mxu0 0.0
        %1750 = vmatpush1.msra.mxu0 0.0
        %1751 = vmatprep.subr.mxu0 0.0
        %1752 = vmatpush1.msra.mxu0 0.0
        %1753 = vmatprep.subr.mxu0 0.0
        %1754 = vmatpush1.msra.mxu0 0.0
        %1755 = vmatprep.subr.mxu0 0.0
        %1756 = vmatpush1.msra.mxu0 0.0
        %1757 = vmatprep.subr.mxu0 0.0
        %1758 = vmatpush1.msra.mxu0 0.0
        %1759 = vmatprep.subr.mxu0 0.0
        %1760 = vmatpush1.msra.mxu0 0.0
        %1761 = vmatprep.subr.mxu0 0.0
        %1762 = vmatpush1.msra.mxu0 0.0
        %1763 = vmatprep.subr.mxu0 0.0
        %1764 = vmatpush1.msra.mxu0 0.0
        %1765 = vmatprep.subr.mxu0 0.0
        %1766 = vmatpush1.msra.mxu0 0.0
        %1767 = vmatprep.subr.mxu0 0.0
        %1768 = vmatpush1.msra.mxu0 0.0
        %1769 = vmatprep.mubr.f32.mxu0 0.0
        %1770 = vmatmul.mubr.f32.gmra.mrb[0].mxu0 %v1562
        %v1771 = vpop.f32.mrb[0].mxu0
        %v1772 = vadd.f32 0.0, %v1771
        %v1773 = vpop.f32.mrb[0].mxu0
        %v1774 = vadd.f32 0.0, %v1773
        %1775 = vdwg.mxu0
        %v1776 = vadd.f32 %v1630, %v1701
        %v1777 = vadd.f32 %v1631, %v1703
        %v1778 = vadd.f32 %v1632, %v1772
        %v1779 = vadd.f32 %v1633, %v1774
        %v1780 = vxor.u32 %v1776, 2147483648
        %v1781 = vmul.f32 %v1780, 1.442695
        %v1782 = vpow.pop %v1781
        %v1783 = vadd.f32 %v1782, 1.0
        %v1784 = vrcp.pop %v1783
        %v1785 = vmul.f32 1.0, %v1784
        %v1786 = vxor.u32 %v1777, 2147483648
        %v1787 = vmul.f32 %v1786, 1.442695
        %v1788 = vpow.pop %v1787
        %v1789 = vadd.f32 %v1788, 1.0
        %v1790 = vrcp.pop %v1789
        %v1791 = vmul.f32 1.0, %v1790
        %v1792 = vtanh.pop %v1778
        %v1793 = vxor.u32 %v1779, 2147483648
        %v1794 = vmul.f32 %v1793, 1.442695
        %v1795 = vpow.pop %v1794
        %v1796 = vadd.f32 %v1795, 1.0
        %v1797 = vrcp.pop %v1796
        %v1798 = vmul.f32 1.0, %v1797
        %v1799 = vmul.f32 %v1785, %v1792
        %v1800 = vmul.f32 %v1791, %v1560
        %v1801 = vadd.f32 %v1799, %v1800
        %v1802 = vtanh.pop %v1801
        %v1803 = vmul.f32 %v1798, %v1802
        %s1804 = scalar_lea.vmem %s296, 24 [#allocation5]
        %1805 = vst [vmem:[%s1804] sm:$0xff] %v1803
        %v1806 = vld [vmem:[%s2] sm:$0xff]
        %v1807 = vld [vmem:[%s2 + $0x8] sm:$0xff]
        %v1808 = vld [vmem:[%s2 + $0x10] sm:$0xff]
        %v1809 = vld [vmem:[%s2 + $0x18] sm:$0xff]
        %v1810 = vld [vmem:[%s2 + $0x20] sm:$0xff]
        %v1811 = vld [vmem:[%s2 + $0x28] sm:$0xff]
        %v1812 = vld [vmem:[%s2 + $0x30] sm:$0xff]
        %v1813 = vld [vmem:[%s2 + $0x38] sm:$0xff]
        %v1814 = vld [vmem:[%s2 + $0x40] sm:$0xff]
        %v1815 = vld [vmem:[%s2 + $0x48] sm:$0xff]
        %v1816 = vld [vmem:[%s2 + $0x50] sm:$0xff]
        %v1817 = vld [vmem:[%s2 + $0x58] sm:$0xff]
        %v1818 = vld [vmem:[%s2 + $0x60] sm:$0xff]
        %v1819 = vld [vmem:[%s2 + $0x68] sm:$0xff]
        %v1820 = vld [vmem:[%s2 + $0x70] sm:$0xff]
        %v1821 = vld [vmem:[%s2 + $0x78] sm:$0xff]
        %v1822 = vld [vmem:[%s2 + $0x80] sm:$0xff]
        %v1823 = vld [vmem:[%s2 + $0x88] sm:$0xff]
        %v1824 = vld [vmem:[%s2 + $0x90] sm:$0xff]
        %v1825 = vld [vmem:[%s2 + $0x98] sm:$0xff]
        %v1826 = vld [vmem:[%s2 + $0xa0] sm:$0xff]
        %v1827 = vld [vmem:[%s2 + $0xa8] sm:$0xff]
        %v1828 = vld [vmem:[%s2 + $0xb0] sm:$0xff]
        %v1829 = vld [vmem:[%s2 + $0xb8] sm:$0xff]
        %v1830 = vld [vmem:[%s2 + $0xc0] sm:$0xff]
        %v1831 = vld [vmem:[%s2 + $0xc8] sm:$0xff]
        %v1832 = vld [vmem:[%s2 + $0xd0] sm:$0xff]
        %v1833 = vld [vmem:[%s2 + $0xd8] sm:$0xff]
        %v1834 = vld [vmem:[%s2 + $0xe0] sm:$0xff]
        %v1835 = vld [vmem:[%s2 + $0xe8] sm:$0xff]
        %v1836 = vld [vmem:[%s2 + $0xf0] sm:$0xff]
        %v1837 = vld [vmem:[%s2 + $0xf8] sm:$0xff]
        %v1838 = vld [vmem:[%s2 + $0x100] sm:$0xff]
        %v1839 = vld [vmem:[%s2 + $0x108] sm:$0xff]
        %v1840 = vld [vmem:[%s2 + $0x110] sm:$0xff]
        %v1841 = vld [vmem:[%s2 + $0x118] sm:$0xff]
        %v1842 = vld [vmem:[%s2 + $0x120] sm:$0xff]
        %v1843 = vld [vmem:[%s2 + $0x128] sm:$0xff]
        %v1844 = vld [vmem:[%s2 + $0x130] sm:$0xff]
        %v1845 = vld [vmem:[%s2 + $0x138] sm:$0xff]
        %v1846 = vld [vmem:[%s2 + $0x140] sm:$0xff]
        %v1847 = vld [vmem:[%s2 + $0x148] sm:$0xff]
        %v1848 = vld [vmem:[%s2 + $0x150] sm:$0xff]
        %v1849 = vld [vmem:[%s2 + $0x158] sm:$0xff]
        %v1850 = vld [vmem:[%s2 + $0x160] sm:$0xff]
        %v1851 = vld [vmem:[%s2 + $0x168] sm:$0xff]
        %v1852 = vld [vmem:[%s2 + $0x170] sm:$0xff]
        %v1853 = vld [vmem:[%s2 + $0x178] sm:$0xff]
        %v1854 = vld [vmem:[%s2 + $0x180] sm:$0xff]
        %v1855 = vld [vmem:[%s2 + $0x188] sm:$0xff]
        %v1856 = vld [vmem:[%s2 + $0x190] sm:$0xff]
        %v1857 = vld [vmem:[%s2 + $0x198] sm:$0xff]
        %v1858 = vld [vmem:[%s2 + $0x1a0] sm:$0xff]
        %v1859 = vld [vmem:[%s2 + $0x1a8] sm:$0xff]
        %v1860 = vld [vmem:[%s2 + $0x1b0] sm:$0xff]
        %v1861 = vld [vmem:[%s2 + $0x1b8] sm:$0xff]
        %v1862 = vld [vmem:[%s2 + $0x1c0] sm:$0xff]
        %v1863 = vld [vmem:[%s2 + $0x1c8] sm:$0xff]
        %v1864 = vld [vmem:[%s2 + $0x1d0] sm:$0xff]
        %v1865 = vld [vmem:[%s2 + $0x1d8] sm:$0xff]
        %v1866 = vld [vmem:[%s2 + $0x1e0] sm:$0xff]
        %v1867 = vld [vmem:[%s2 + $0x1e8] sm:$0xff]
        %v1868 = vld [vmem:[%s2 + $0x1f0] sm:$0xff]
        %v1869 = vld [vmem:[%s2 + $0x1f8] sm:$0xff]
        %s1870 = scalar_lea.vmem [#allocation2], 128
        %v1871 = vld [vmem:[%s1870] sm:$0xff]
        %v1872 = vld [vmem:[%s1870 + $0x8] sm:$0xff]
        %v1873 = vld [vmem:[%s1870 + $0x10] sm:$0xff]
        %v1874 = vld [vmem:[%s1870 + $0x18] sm:$0xff]
        %1875 = vmatprep.subr.mxu0 %v1807
        %1876 = vmatpush1.msra.mxu0 %v1806
        %1877 = vmatprep.subr.mxu0 %v1811
        %1878 = vmatpush1.msra.mxu0 %v1810
        %1879 = vmatprep.subr.mxu0 %v1815
        %1880 = vmatpush1.msra.mxu0 %v1814
        %1881 = vmatprep.subr.mxu0 %v1819
        %1882 = vmatpush1.msra.mxu0 %v1818
        %1883 = vmatprep.subr.mxu0 %v1823
        %1884 = vmatpush1.msra.mxu0 %v1822
        %1885 = vmatprep.subr.mxu0 %v1827
        %1886 = vmatpush1.msra.mxu0 %v1826
        %1887 = vmatprep.subr.mxu0 %v1831
        %1888 = vmatpush1.msra.mxu0 %v1830
        %1889 = vmatprep.subr.mxu0 %v1835
        %1890 = vmatpush1.msra.mxu0 %v1834
        %1891 = vmatprep.subr.mxu0 %v1839
        %1892 = vmatpush1.msra.mxu0 %v1838
        %1893 = vmatprep.subr.mxu0 %v1843
        %1894 = vmatpush1.msra.mxu0 %v1842
        %1895 = vmatprep.subr.mxu0 %v1847
        %1896 = vmatpush1.msra.mxu0 %v1846
        %1897 = vmatprep.subr.mxu0 %v1851
        %1898 = vmatpush1.msra.mxu0 %v1850
        %1899 = vmatprep.subr.mxu0 %v1855
        %1900 = vmatpush1.msra.mxu0 %v1854
        %1901 = vmatprep.subr.mxu0 %v1859
        %1902 = vmatpush1.msra.mxu0 %v1858
        %1903 = vmatprep.subr.mxu0 %v1863
        %1904 = vmatpush1.msra.mxu0 %v1862
        %1905 = vmatprep.subr.mxu0 %v1867
        %1906 = vmatpush1.msra.mxu0 %v1866
        %1907 = vmatprep.subr.mxu0 0.0
        %1908 = vmatpush1.msra.mxu0 0.0
        %1909 = vmatprep.subr.mxu0 0.0
        %1910 = vmatpush1.msra.mxu0 0.0
        %1911 = vmatprep.subr.mxu0 0.0
        %1912 = vmatpush1.msra.mxu0 0.0
        %1913 = vmatprep.subr.mxu0 0.0
        %1914 = vmatpush1.msra.mxu0 0.0
        %1915 = vmatprep.subr.mxu0 0.0
        %1916 = vmatpush1.msra.mxu0 0.0
        %1917 = vmatprep.subr.mxu0 0.0
        %1918 = vmatpush1.msra.mxu0 0.0
        %1919 = vmatprep.subr.mxu0 0.0
        %1920 = vmatpush1.msra.mxu0 0.0
        %1921 = vmatprep.subr.mxu0 0.0
        %1922 = vmatpush1.msra.mxu0 0.0
        %1923 = vmatprep.subr.mxu0 0.0
        %1924 = vmatpush1.msra.mxu0 0.0
        %1925 = vmatprep.subr.mxu0 0.0
        %1926 = vmatpush1.msra.mxu0 0.0
        %1927 = vmatprep.subr.mxu0 0.0
        %1928 = vmatpush1.msra.mxu0 0.0
        %1929 = vmatprep.subr.mxu0 0.0
        %1930 = vmatpush1.msra.mxu0 0.0
        %1931 = vmatprep.subr.mxu0 0.0
        %1932 = vmatpush1.msra.mxu0 0.0
        %1933 = vmatprep.subr.mxu0 0.0
        %1934 = vmatpush1.msra.mxu0 0.0
        %1935 = vmatprep.subr.mxu0 0.0
        %1936 = vmatpush1.msra.mxu0 0.0
        %1937 = vmatprep.subr.mxu0 0.0
        %1938 = vmatpush1.msra.mxu0 0.0
        %1939 = vmatprep.mubr.f32.mxu0 0.0
        %1940 = vmatmul.mubr.f32.gmra.mrb[0].mxu0 %v1803
        %v1941 = vpop.f32.mrb[0].mxu0
        %v1942 = vadd.f32 0.0, %v1941
        %v1943 = vpop.f32.mrb[0].mxu0
        %v1944 = vadd.f32 0.0, %v1943
        %1945 = vdwg.mxu0
        %1946 = vmatprep.subr.mxu0 %v1809
        %1947 = vmatpush1.msra.mxu0 %v1808
        %1948 = vmatprep.subr.mxu0 %v1813
        %1949 = vmatpush1.msra.mxu0 %v1812
        %1950 = vmatprep.subr.mxu0 %v1817
        %1951 = vmatpush1.msra.mxu0 %v1816
        %1952 = vmatprep.subr.mxu0 %v1821
        %1953 = vmatpush1.msra.mxu0 %v1820
        %1954 = vmatprep.subr.mxu0 %v1825
        %1955 = vmatpush1.msra.mxu0 %v1824
        %1956 = vmatprep.subr.mxu0 %v1829
        %1957 = vmatpush1.msra.mxu0 %v1828
        %1958 = vmatprep.subr.mxu0 %v1833
        %1959 = vmatpush1.msra.mxu0 %v1832
        %1960 = vmatprep.subr.mxu0 %v1837
        %1961 = vmatpush1.msra.mxu0 %v1836
        %1962 = vmatprep.subr.mxu0 %v1841
        %1963 = vmatpush1.msra.mxu0 %v1840
        %1964 = vmatprep.subr.mxu0 %v1845
        %1965 = vmatpush1.msra.mxu0 %v1844
        %1966 = vmatprep.subr.mxu0 %v1849
        %1967 = vmatpush1.msra.mxu0 %v1848
        %1968 = vmatprep.subr.mxu0 %v1853
        %1969 = vmatpush1.msra.mxu0 %v1852
        %1970 = vmatprep.subr.mxu0 %v1857
        %1971 = vmatpush1.msra.mxu0 %v1856
        %1972 = vmatprep.subr.mxu0 %v1861
        %1973 = vmatpush1.msra.mxu0 %v1860
        %1974 = vmatprep.subr.mxu0 %v1865
        %1975 = vmatpush1.msra.mxu0 %v1864
        %1976 = vmatprep.subr.mxu0 %v1869
        %1977 = vmatpush1.msra.mxu0 %v1868
        %1978 = vmatprep.subr.mxu0 0.0
        %1979 = vmatpush1.msra.mxu0 0.0
        %1980 = vmatprep.subr.mxu0 0.0
        %1981 = vmatpush1.msra.mxu0 0.0
        %1982 = vmatprep.subr.mxu0 0.0
        %1983 = vmatpush1.msra.mxu0 0.0
        %1984 = vmatprep.subr.mxu0 0.0
        %1985 = vmatpush1.msra.mxu0 0.0
        %1986 = vmatprep.subr.mxu0 0.0
        %1987 = vmatpush1.msra.mxu0 0.0
        %1988 = vmatprep.subr.mxu0 0.0
        %1989 = vmatpush1.msra.mxu0 0.0
        %1990 = vmatprep.subr.mxu0 0.0
        %1991 = vmatpush1.msra.mxu0 0.0
        %1992 = vmatprep.subr.mxu0 0.0
        %1993 = vmatpush1.msra.mxu0 0.0
        %1994 = vmatprep.subr.mxu0 0.0
        %1995 = vmatpush1.msra.mxu0 0.0
        %1996 = vmatprep.subr.mxu0 0.0
        %1997 = vmatpush1.msra.mxu0 0.0
        %1998 = vmatprep.subr.mxu0 0.0
        %1999 = vmatpush1.msra.mxu0 0.0
        %2000 = vmatprep.subr.mxu0 0.0
        %2001 = vmatpush1.msra.mxu0 0.0
        %2002 = vmatprep.subr.mxu0 0.0
        %2003 = vmatpush1.msra.mxu0 0.0
        %2004 = vmatprep.subr.mxu0 0.0
        %2005 = vmatpush1.msra.mxu0 0.0
        %2006 = vmatprep.subr.mxu0 0.0
        %2007 = vmatpush1.msra.mxu0 0.0
        %2008 = vmatprep.subr.mxu0 0.0
        %2009 = vmatpush1.msra.mxu0 0.0
        %2010 = vmatprep.mubr.f32.mxu0 0.0
        %2011 = vmatmul.mubr.f32.gmra.mrb[0].mxu0 %v1803
        %v2012 = vpop.f32.mrb[0].mxu0
        %v2013 = vadd.f32 0.0, %v2012
        %v2014 = vpop.f32.mrb[0].mxu0
        %v2015 = vadd.f32 0.0, %v2014
        %2016 = vdwg.mxu0
        %v2017 = vadd.f32 %v1871, %v1942
        %v2018 = vadd.f32 %v1872, %v1944
        %v2019 = vadd.f32 %v1873, %v2013
        %v2020 = vadd.f32 %v1874, %v2015
        %v2021 = vxor.u32 %v2017, 2147483648
        %v2022 = vmul.f32 %v2021, 1.442695
        %v2023 = vpow.pop %v2022
        %v2024 = vadd.f32 %v2023, 1.0
        %v2025 = vrcp.pop %v2024
        %v2026 = vmul.f32 1.0, %v2025
        %v2027 = vxor.u32 %v2018, 2147483648
        %v2028 = vmul.f32 %v2027, 1.442695
        %v2029 = vpow.pop %v2028
        %v2030 = vadd.f32 %v2029, 1.0
        %v2031 = vrcp.pop %v2030
        %v2032 = vmul.f32 1.0, %v2031
        %v2033 = vtanh.pop %v2019
        %v2034 = vxor.u32 %v2020, 2147483648
        %v2035 = vmul.f32 %v2034, 1.442695
        %v2036 = vpow.pop %v2035
        %v2037 = vadd.f32 %v2036, 1.0
        %v2038 = vrcp.pop %v2037
        %v2039 = vmul.f32 1.0, %v2038
        %v2040 = vmul.f32 %v2026, %v2033
        %v2041 = vmul.f32 %v2032, %v1801
        %v2042 = vadd.f32 %v2040, %v2041
        %v2043 = vtanh.pop %v2042
        %v2044 = vmul.f32 %v2039, %v2043
        %s2045 = scalar_lea.vmem %s296, 32 [#allocation5]
        %2046 = vst [vmem:[%s2045] sm:$0xff] %v2044
        %v2047 = vld [vmem:[%s2] sm:$0xff]
        %v2048 = vld [vmem:[%s2 + $0x8] sm:$0xff]
        %v2049 = vld [vmem:[%s2 + $0x10] sm:$0xff]
        %v2050 = vld [vmem:[%s2 + $0x18] sm:$0xff]
        %v2051 = vld [vmem:[%s2 + $0x20] sm:$0xff]
        %v2052 = vld [vmem:[%s2 + $0x28] sm:$0xff]
        %v2053 = vld [vmem:[%s2 + $0x30] sm:$0xff]
        %v2054 = vld [vmem:[%s2 + $0x38] sm:$0xff]
        %v2055 = vld [vmem:[%s2 + $0x40] sm:$0xff]
        %v2056 = vld [vmem:[%s2 + $0x48] sm:$0xff]
        %v2057 = vld [vmem:[%s2 + $0x50] sm:$0xff]
        %v2058 = vld [vmem:[%s2 + $0x58] sm:$0xff]
        %v2059 = vld [vmem:[%s2 + $0x60] sm:$0xff]
        %v2060 = vld [vmem:[%s2 + $0x68] sm:$0xff]
        %v2061 = vld [vmem:[%s2 + $0x70] sm:$0xff]
        %v2062 = vld [vmem:[%s2 + $0x78] sm:$0xff]
        %v2063 = vld [vmem:[%s2 + $0x80] sm:$0xff]
        %v2064 = vld [vmem:[%s2 + $0x88] sm:$0xff]
        %v2065 = vld [vmem:[%s2 + $0x90] sm:$0xff]
        %v2066 = vld [vmem:[%s2 + $0x98] sm:$0xff]
        %v2067 = vld [vmem:[%s2 + $0xa0] sm:$0xff]
        %v2068 = vld [vmem:[%s2 + $0xa8] sm:$0xff]
        %v2069 = vld [vmem:[%s2 + $0xb0] sm:$0xff]
        %v2070 = vld [vmem:[%s2 + $0xb8] sm:$0xff]
        %v2071 = vld [vmem:[%s2 + $0xc0] sm:$0xff]
        %v2072 = vld [vmem:[%s2 + $0xc8] sm:$0xff]
        %v2073 = vld [vmem:[%s2 + $0xd0] sm:$0xff]
        %v2074 = vld [vmem:[%s2 + $0xd8] sm:$0xff]
        %v2075 = vld [vmem:[%s2 + $0xe0] sm:$0xff]
        %v2076 = vld [vmem:[%s2 + $0xe8] sm:$0xff]
        %v2077 = vld [vmem:[%s2 + $0xf0] sm:$0xff]
        %v2078 = vld [vmem:[%s2 + $0xf8] sm:$0xff]
        %v2079 = vld [vmem:[%s2 + $0x100] sm:$0xff]
        %v2080 = vld [vmem:[%s2 + $0x108] sm:$0xff]
        %v2081 = vld [vmem:[%s2 + $0x110] sm:$0xff]
        %v2082 = vld [vmem:[%s2 + $0x118] sm:$0xff]
        %v2083 = vld [vmem:[%s2 + $0x120] sm:$0xff]
        %v2084 = vld [vmem:[%s2 + $0x128] sm:$0xff]
        %v2085 = vld [vmem:[%s2 + $0x130] sm:$0xff]
        %v2086 = vld [vmem:[%s2 + $0x138] sm:$0xff]
        %v2087 = vld [vmem:[%s2 + $0x140] sm:$0xff]
        %v2088 = vld [vmem:[%s2 + $0x148] sm:$0xff]
        %v2089 = vld [vmem:[%s2 + $0x150] sm:$0xff]
        %v2090 = vld [vmem:[%s2 + $0x158] sm:$0xff]
        %v2091 = vld [vmem:[%s2 + $0x160] sm:$0xff]
        %v2092 = vld [vmem:[%s2 + $0x168] sm:$0xff]
        %v2093 = vld [vmem:[%s2 + $0x170] sm:$0xff]
        %v2094 = vld [vmem:[%s2 + $0x178] sm:$0xff]
        %v2095 = vld [vmem:[%s2 + $0x180] sm:$0xff]
        %v2096 = vld [vmem:[%s2 + $0x188] sm:$0xff]
        %v2097 = vld [vmem:[%s2 + $0x190] sm:$0xff]
        %v2098 = vld [vmem:[%s2 + $0x198] sm:$0xff]
        %v2099 = vld [vmem:[%s2 + $0x1a0] sm:$0xff]
        %v2100 = vld [vmem:[%s2 + $0x1a8] sm:$0xff]
        %v2101 = vld [vmem:[%s2 + $0x1b0] sm:$0xff]
        %v2102 = vld [vmem:[%s2 + $0x1b8] sm:$0xff]
        %v2103 = vld [vmem:[%s2 + $0x1c0] sm:$0xff]
        %v2104 = vld [vmem:[%s2 + $0x1c8] sm:$0xff]
        %v2105 = vld [vmem:[%s2 + $0x1d0] sm:$0xff]
        %v2106 = vld [vmem:[%s2 + $0x1d8] sm:$0xff]
        %v2107 = vld [vmem:[%s2 + $0x1e0] sm:$0xff]
        %v2108 = vld [vmem:[%s2 + $0x1e8] sm:$0xff]
        %v2109 = vld [vmem:[%s2 + $0x1f0] sm:$0xff]
        %v2110 = vld [vmem:[%s2 + $0x1f8] sm:$0xff]
        %s2111 = scalar_lea.vmem [#allocation2], 160
        %v2112 = vld [vmem:[%s2111] sm:$0xff]
        %v2113 = vld [vmem:[%s2111 + $0x8] sm:$0xff]
        %v2114 = vld [vmem:[%s2111 + $0x10] sm:$0xff]
        %v2115 = vld [vmem:[%s2111 + $0x18] sm:$0xff]
        %2116 = vmatprep.subr.mxu0 %v2048
        %2117 = vmatpush1.msra.mxu0 %v2047
        %2118 = vmatprep.subr.mxu0 %v2052
        %2119 = vmatpush1.msra.mxu0 %v2051
        %2120 = vmatprep.subr.mxu0 %v2056
        %2121 = vmatpush1.msra.mxu0 %v2055
        %2122 = vmatprep.subr.mxu0 %v2060
        %2123 = vmatpush1.msra.mxu0 %v2059
        %2124 = vmatprep.subr.mxu0 %v2064
        %2125 = vmatpush1.msra.mxu0 %v2063
        %2126 = vmatprep.subr.mxu0 %v2068
        %2127 = vmatpush1.msra.mxu0 %v2067
        %2128 = vmatprep.subr.mxu0 %v2072
        %2129 = vmatpush1.msra.mxu0 %v2071
        %2130 = vmatprep.subr.mxu0 %v2076
        %2131 = vmatpush1.msra.mxu0 %v2075
        %2132 = vmatprep.subr.mxu0 %v2080
        %2133 = vmatpush1.msra.mxu0 %v2079
        %2134 = vmatprep.subr.mxu0 %v2084
        %2135 = vmatpush1.msra.mxu0 %v2083
        %2136 = vmatprep.subr.mxu0 %v2088
        %2137 = vmatpush1.msra.mxu0 %v2087
        %2138 = vmatprep.subr.mxu0 %v2092
        %2139 = vmatpush1.msra.mxu0 %v2091
        %2140 = vmatprep.subr.mxu0 %v2096
        %2141 = vmatpush1.msra.mxu0 %v2095
        %2142 = vmatprep.subr.mxu0 %v2100
        %2143 = vmatpush1.msra.mxu0 %v2099
        %2144 = vmatprep.subr.mxu0 %v2104
        %2145 = vmatpush1.msra.mxu0 %v2103
        %2146 = vmatprep.subr.mxu0 %v2108
        %2147 = vmatpush1.msra.mxu0 %v2107
        %2148 = vmatprep.subr.mxu0 0.0
        %2149 = vmatpush1.msra.mxu0 0.0
        %2150 = vmatprep.subr.mxu0 0.0
        %2151 = vmatpush1.msra.mxu0 0.0
        %2152 = vmatprep.subr.mxu0 0.0
        %2153 = vmatpush1.msra.mxu0 0.0
        %2154 = vmatprep.subr.mxu0 0.0
        %2155 = vmatpush1.msra.mxu0 0.0
        %2156 = vmatprep.subr.mxu0 0.0
        %2157 = vmatpush1.msra.mxu0 0.0
        %2158 = vmatprep.subr.mxu0 0.0
        %2159 = vmatpush1.msra.mxu0 0.0
        %2160 = vmatprep.subr.mxu0 0.0
        %2161 = vmatpush1.msra.mxu0 0.0
        %2162 = vmatprep.subr.mxu0 0.0
        %2163 = vmatpush1.msra.mxu0 0.0
        %2164 = vmatprep.subr.mxu0 0.0
        %2165 = vmatpush1.msra.mxu0 0.0
        %2166 = vmatprep.subr.mxu0 0.0
        %2167 = vmatpush1.msra.mxu0 0.0
        %2168 = vmatprep.subr.mxu0 0.0
        %2169 = vmatpush1.msra.mxu0 0.0
        %2170 = vmatprep.subr.mxu0 0.0
        %2171 = vmatpush1.msra.mxu0 0.0
        %2172 = vmatprep.subr.mxu0 0.0
        %2173 = vmatpush1.msra.mxu0 0.0
        %2174 = vmatprep.subr.mxu0 0.0
        %2175 = vmatpush1.msra.mxu0 0.0
        %2176 = vmatprep.subr.mxu0 0.0
        %2177 = vmatpush1.msra.mxu0 0.0
        %2178 = vmatprep.subr.mxu0 0.0
        %2179 = vmatpush1.msra.mxu0 0.0
        %2180 = vmatprep.mubr.f32.mxu0 0.0
        %2181 = vmatmul.mubr.f32.gmra.mrb[0].mxu0 %v2044
        %v2182 = vpop.f32.mrb[0].mxu0
        %v2183 = vadd.f32 0.0, %v2182
        %v2184 = vpop.f32.mrb[0].mxu0
        %v2185 = vadd.f32 0.0, %v2184
        %2186 = vdwg.mxu0
        %2187 = vmatprep.subr.mxu0 %v2050
        %2188 = vmatpush1.msra.mxu0 %v2049
        %2189 = vmatprep.subr.mxu0 %v2054
        %2190 = vmatpush1.msra.mxu0 %v2053
        %2191 = vmatprep.subr.mxu0 %v2058
        %2192 = vmatpush1.msra.mxu0 %v2057
        %2193 = vmatprep.subr.mxu0 %v2062
        %2194 = vmatpush1.msra.mxu0 %v2061
        %2195 = vmatprep.subr.mxu0 %v2066
        %2196 = vmatpush1.msra.mxu0 %v2065
        %2197 = vmatprep.subr.mxu0 %v2070
        %2198 = vmatpush1.msra.mxu0 %v2069
        %2199 = vmatprep.subr.mxu0 %v2074
        %2200 = vmatpush1.msra.mxu0 %v2073
        %2201 = vmatprep.subr.mxu0 %v2078
        %2202 = vmatpush1.msra.mxu0 %v2077
        %2203 = vmatprep.subr.mxu0 %v2082
        %2204 = vmatpush1.msra.mxu0 %v2081
        %2205 = vmatprep.subr.mxu0 %v2086
        %2206 = vmatpush1.msra.mxu0 %v2085
        %2207 = vmatprep.subr.mxu0 %v2090
        %2208 = vmatpush1.msra.mxu0 %v2089
        %2209 = vmatprep.subr.mxu0 %v2094
        %2210 = vmatpush1.msra.mxu0 %v2093
        %2211 = vmatprep.subr.mxu0 %v2098
        %2212 = vmatpush1.msra.mxu0 %v2097
        %2213 = vmatprep.subr.mxu0 %v2102
        %2214 = vmatpush1.msra.mxu0 %v2101
        %2215 = vmatprep.subr.mxu0 %v2106
        %2216 = vmatpush1.msra.mxu0 %v2105
        %2217 = vmatprep.subr.mxu0 %v2110
        %2218 = vmatpush1.msra.mxu0 %v2109
        %2219 = vmatprep.subr.mxu0 0.0
        %2220 = vmatpush1.msra.mxu0 0.0
        %2221 = vmatprep.subr.mxu0 0.0
        %2222 = vmatpush1.msra.mxu0 0.0
        %2223 = vmatprep.subr.mxu0 0.0
        %2224 = vmatpush1.msra.mxu0 0.0
        %2225 = vmatprep.subr.mxu0 0.0
        %2226 = vmatpush1.msra.mxu0 0.0
        %2227 = vmatprep.subr.mxu0 0.0
        %2228 = vmatpush1.msra.mxu0 0.0
        %2229 = vmatprep.subr.mxu0 0.0
        %2230 = vmatpush1.msra.mxu0 0.0
        %2231 = vmatprep.subr.mxu0 0.0
        %2232 = vmatpush1.msra.mxu0 0.0
        %2233 = vmatprep.subr.mxu0 0.0
        %2234 = vmatpush1.msra.mxu0 0.0
        %2235 = vmatprep.subr.mxu0 0.0
        %2236 = vmatpush1.msra.mxu0 0.0
        %2237 = vmatprep.subr.mxu0 0.0
        %2238 = vmatpush1.msra.mxu0 0.0
        %2239 = vmatprep.subr.mxu0 0.0
        %2240 = vmatpush1.msra.mxu0 0.0
        %2241 = vmatprep.subr.mxu0 0.0
        %2242 = vmatpush1.msra.mxu0 0.0
        %2243 = vmatprep.subr.mxu0 0.0
        %2244 = vmatpush1.msra.mxu0 0.0
        %2245 = vmatprep.subr.mxu0 0.0
        %2246 = vmatpush1.msra.mxu0 0.0
        %2247 = vmatprep.subr.mxu0 0.0
        %2248 = vmatpush1.msra.mxu0 0.0
        %2249 = vmatprep.subr.mxu0 0.0
        %2250 = vmatpush1.msra.mxu0 0.0
        %2251 = vmatprep.mubr.f32.mxu0 0.0
        %2252 = vmatmul.mubr.f32.gmra.mrb[0].mxu0 %v2044
        %v2253 = vpop.f32.mrb[0].mxu0
        %v2254 = vadd.f32 0.0, %v2253
        %v2255 = vpop.f32.mrb[0].mxu0
        %v2256 = vadd.f32 0.0, %v2255
        %2257 = vdwg.mxu0
        %v2258 = vadd.f32 %v2112, %v2183
        %v2259 = vadd.f32 %v2113, %v2185
        %v2260 = vadd.f32 %v2114, %v2254
        %v2261 = vadd.f32 %v2115, %v2256
        %v2262 = vxor.u32 %v2258, 2147483648
        %v2263 = vmul.f32 %v2262, 1.442695
        %v2264 = vpow.pop %v2263
        %v2265 = vadd.f32 %v2264, 1.0
        %v2266 = vrcp.pop %v2265
        %v2267 = vmul.f32 1.0, %v2266
        %v2268 = vxor.u32 %v2259, 2147483648
        %v2269 = vmul.f32 %v2268, 1.442695
        %v2270 = vpow.pop %v2269
        %v2271 = vadd.f32 %v2270, 1.0
        %v2272 = vrcp.pop %v2271
        %v2273 = vmul.f32 1.0, %v2272
        %v2274 = vtanh.pop %v2260
        %v2275 = vxor.u32 %v2261, 2147483648
        %v2276 = vmul.f32 %v2275, 1.442695
        %v2277 = vpow.pop %v2276
        %v2278 = vadd.f32 %v2277, 1.0
        %v2279 = vrcp.pop %v2278
        %v2280 = vmul.f32 1.0, %v2279
        %v2281 = vmul.f32 %v2267, %v2274
        %v2282 = vmul.f32 %v2273, %v2042
        %v2283 = vadd.f32 %v2281, %v2282
        %v2284 = vtanh.pop %v2283
        %v2285 = vmul.f32 %v2280, %v2284
        %s2286 = scalar_lea.vmem %s296, 40 [#allocation5]
        %2287 = vst [vmem:[%s2286] sm:$0xff] %v2285
        %v2288 = vld [vmem:[%s2] sm:$0xff]
        %v2289 = vld [vmem:[%s2 + $0x8] sm:$0xff]
        %v2290 = vld [vmem:[%s2 + $0x10] sm:$0xff]
        %v2291 = vld [vmem:[%s2 + $0x18] sm:$0xff]
        %v2292 = vld [vmem:[%s2 + $0x20] sm:$0xff]
        %v2293 = vld [vmem:[%s2 + $0x28] sm:$0xff]
        %v2294 = vld [vmem:[%s2 + $0x30] sm:$0xff]
        %v2295 = vld [vmem:[%s2 + $0x38] sm:$0xff]
        %v2296 = vld [vmem:[%s2 + $0x40] sm:$0xff]
        %v2297 = vld [vmem:[%s2 + $0x48] sm:$0xff]
        %v2298 = vld [vmem:[%s2 + $0x50] sm:$0xff]
        %v2299 = vld [vmem:[%s2 + $0x58] sm:$0xff]
        %v2300 = vld [vmem:[%s2 + $0x60] sm:$0xff]
        %v2301 = vld [vmem:[%s2 + $0x68] sm:$0xff]
        %v2302 = vld [vmem:[%s2 + $0x70] sm:$0xff]
        %v2303 = vld [vmem:[%s2 + $0x78] sm:$0xff]
        %v2304 = vld [vmem:[%s2 + $0x80] sm:$0xff]
        %v2305 = vld [vmem:[%s2 + $0x88] sm:$0xff]
        %v2306 = vld [vmem:[%s2 + $0x90] sm:$0xff]
        %v2307 = vld [vmem:[%s2 + $0x98] sm:$0xff]
        %v2308 = vld [vmem:[%s2 + $0xa0] sm:$0xff]
        %v2309 = vld [vmem:[%s2 + $0xa8] sm:$0xff]
        %v2310 = vld [vmem:[%s2 + $0xb0] sm:$0xff]
        %v2311 = vld [vmem:[%s2 + $0xb8] sm:$0xff]
        %v2312 = vld [vmem:[%s2 + $0xc0] sm:$0xff]
        %v2313 = vld [vmem:[%s2 + $0xc8] sm:$0xff]
        %v2314 = vld [vmem:[%s2 + $0xd0] sm:$0xff]
        %v2315 = vld [vmem:[%s2 + $0xd8] sm:$0xff]
        %v2316 = vld [vmem:[%s2 + $0xe0] sm:$0xff]
        %v2317 = vld [vmem:[%s2 + $0xe8] sm:$0xff]
        %v2318 = vld [vmem:[%s2 + $0xf0] sm:$0xff]
        %v2319 = vld [vmem:[%s2 + $0xf8] sm:$0xff]
        %v2320 = vld [vmem:[%s2 + $0x100] sm:$0xff]
        %v2321 = vld [vmem:[%s2 + $0x108] sm:$0xff]
        %v2322 = vld [vmem:[%s2 + $0x110] sm:$0xff]
        %v2323 = vld [vmem:[%s2 + $0x118] sm:$0xff]
        %v2324 = vld [vmem:[%s2 + $0x120] sm:$0xff]
        %v2325 = vld [vmem:[%s2 + $0x128] sm:$0xff]
        %v2326 = vld [vmem:[%s2 + $0x130] sm:$0xff]
        %v2327 = vld [vmem:[%s2 + $0x138] sm:$0xff]
        %v2328 = vld [vmem:[%s2 + $0x140] sm:$0xff]
        %v2329 = vld [vmem:[%s2 + $0x148] sm:$0xff]
        %v2330 = vld [vmem:[%s2 + $0x150] sm:$0xff]
        %v2331 = vld [vmem:[%s2 + $0x158] sm:$0xff]
        %v2332 = vld [vmem:[%s2 + $0x160] sm:$0xff]
        %v2333 = vld [vmem:[%s2 + $0x168] sm:$0xff]
        %v2334 = vld [vmem:[%s2 + $0x170] sm:$0xff]
        %v2335 = vld [vmem:[%s2 + $0x178] sm:$0xff]
        %v2336 = vld [vmem:[%s2 + $0x180] sm:$0xff]
        %v2337 = vld [vmem:[%s2 + $0x188] sm:$0xff]
        %v2338 = vld [vmem:[%s2 + $0x190] sm:$0xff]
        %v2339 = vld [vmem:[%s2 + $0x198] sm:$0xff]
        %v2340 = vld [vmem:[%s2 + $0x1a0] sm:$0xff]
        %v2341 = vld [vmem:[%s2 + $0x1a8] sm:$0xff]
        %v2342 = vld [vmem:[%s2 + $0x1b0] sm:$0xff]
        %v2343 = vld [vmem:[%s2 + $0x1b8] sm:$0xff]
        %v2344 = vld [vmem:[%s2 + $0x1c0] sm:$0xff]
        %v2345 = vld [vmem:[%s2 + $0x1c8] sm:$0xff]
        %v2346 = vld [vmem:[%s2 + $0x1d0] sm:$0xff]
        %v2347 = vld [vmem:[%s2 + $0x1d8] sm:$0xff]
        %v2348 = vld [vmem:[%s2 + $0x1e0] sm:$0xff]
        %v2349 = vld [vmem:[%s2 + $0x1e8] sm:$0xff]
        %v2350 = vld [vmem:[%s2 + $0x1f0] sm:$0xff]
        %v2351 = vld [vmem:[%s2 + $0x1f8] sm:$0xff]
        %s2352 = scalar_lea.vmem [#allocation2], 192
        %v2353 = vld [vmem:[%s2352] sm:$0xff]
        %v2354 = vld [vmem:[%s2352 + $0x8] sm:$0xff]
        %v2355 = vld [vmem:[%s2352 + $0x10] sm:$0xff]
        %v2356 = vld [vmem:[%s2352 + $0x18] sm:$0xff]
        %2357 = vmatprep.subr.mxu0 %v2289
        %2358 = vmatpush1.msra.mxu0 %v2288
        %2359 = vmatprep.subr.mxu0 %v2293
        %2360 = vmatpush1.msra.mxu0 %v2292
        %2361 = vmatprep.subr.mxu0 %v2297
        %2362 = vmatpush1.msra.mxu0 %v2296
        %2363 = vmatprep.subr.mxu0 %v2301
        %2364 = vmatpush1.msra.mxu0 %v2300
        %2365 = vmatprep.subr.mxu0 %v2305
        %2366 = vmatpush1.msra.mxu0 %v2304
        %2367 = vmatprep.subr.mxu0 %v2309
        %2368 = vmatpush1.msra.mxu0 %v2308
        %2369 = vmatprep.subr.mxu0 %v2313
        %2370 = vmatpush1.msra.mxu0 %v2312
        %2371 = vmatprep.subr.mxu0 %v2317
        %2372 = vmatpush1.msra.mxu0 %v2316
        %2373 = vmatprep.subr.mxu0 %v2321
        %2374 = vmatpush1.msra.mxu0 %v2320
        %2375 = vmatprep.subr.mxu0 %v2325
        %2376 = vmatpush1.msra.mxu0 %v2324
        %2377 = vmatprep.subr.mxu0 %v2329
        %2378 = vmatpush1.msra.mxu0 %v2328
        %2379 = vmatprep.subr.mxu0 %v2333
        %2380 = vmatpush1.msra.mxu0 %v2332
        %2381 = vmatprep.subr.mxu0 %v2337
        %2382 = vmatpush1.msra.mxu0 %v2336
        %2383 = vmatprep.subr.mxu0 %v2341
        %2384 = vmatpush1.msra.mxu0 %v2340
        %2385 = vmatprep.subr.mxu0 %v2345
        %2386 = vmatpush1.msra.mxu0 %v2344
        %2387 = vmatprep.subr.mxu0 %v2349
        %2388 = vmatpush1.msra.mxu0 %v2348
        %2389 = vmatprep.subr.mxu0 0.0
        %2390 = vmatpush1.msra.mxu0 0.0
        %2391 = vmatprep.subr.mxu0 0.0
        %2392 = vmatpush1.msra.mxu0 0.0
        %2393 = vmatprep.subr.mxu0 0.0
        %2394 = vmatpush1.msra.mxu0 0.0
        %2395 = vmatprep.subr.mxu0 0.0
        %2396 = vmatpush1.msra.mxu0 0.0
        %2397 = vmatprep.subr.mxu0 0.0
        %2398 = vmatpush1.msra.mxu0 0.0
        %2399 = vmatprep.subr.mxu0 0.0
        %2400 = vmatpush1.msra.mxu0 0.0
        %2401 = vmatprep.subr.mxu0 0.0
        %2402 = vmatpush1.msra.mxu0 0.0
        %2403 = vmatprep.subr.mxu0 0.0
        %2404 = vmatpush1.msra.mxu0 0.0
        %2405 = vmatprep.subr.mxu0 0.0
        %2406 = vmatpush1.msra.mxu0 0.0
        %2407 = vmatprep.subr.mxu0 0.0
        %2408 = vmatpush1.msra.mxu0 0.0
        %2409 = vmatprep.subr.mxu0 0.0
        %2410 = vmatpush1.msra.mxu0 0.0
        %2411 = vmatprep.subr.mxu0 0.0
        %2412 = vmatpush1.msra.mxu0 0.0
        %2413 = vmatprep.subr.mxu0 0.0
        %2414 = vmatpush1.msra.mxu0 0.0
        %2415 = vmatprep.subr.mxu0 0.0
        %2416 = vmatpush1.msra.mxu0 0.0
        %2417 = vmatprep.subr.mxu0 0.0
        %2418 = vmatpush1.msra.mxu0 0.0
        %2419 = vmatprep.subr.mxu0 0.0
        %2420 = vmatpush1.msra.mxu0 0.0
        %2421 = vmatprep.mubr.f32.mxu0 0.0
        %2422 = vmatmul.mubr.f32.gmra.mrb[0].mxu0 %v2285
        %v2423 = vpop.f32.mrb[0].mxu0
        %v2424 = vadd.f32 0.0, %v2423
        %v2425 = vpop.f32.mrb[0].mxu0
        %v2426 = vadd.f32 0.0, %v2425
        %2427 = vdwg.mxu0
        %2428 = vmatprep.subr.mxu0 %v2291
        %2429 = vmatpush1.msra.mxu0 %v2290
        %2430 = vmatprep.subr.mxu0 %v2295
        %2431 = vmatpush1.msra.mxu0 %v2294
        %2432 = vmatprep.subr.mxu0 %v2299
        %2433 = vmatpush1.msra.mxu0 %v2298
        %2434 = vmatprep.subr.mxu0 %v2303
        %2435 = vmatpush1.msra.mxu0 %v2302
        %2436 = vmatprep.subr.mxu0 %v2307
        %2437 = vmatpush1.msra.mxu0 %v2306
        %2438 = vmatprep.subr.mxu0 %v2311
        %2439 = vmatpush1.msra.mxu0 %v2310
        %2440 = vmatprep.subr.mxu0 %v2315
        %2441 = vmatpush1.msra.mxu0 %v2314
        %2442 = vmatprep.subr.mxu0 %v2319
        %2443 = vmatpush1.msra.mxu0 %v2318
        %2444 = vmatprep.subr.mxu0 %v2323
        %2445 = vmatpush1.msra.mxu0 %v2322
        %2446 = vmatprep.subr.mxu0 %v2327
        %2447 = vmatpush1.msra.mxu0 %v2326
        %2448 = vmatprep.subr.mxu0 %v2331
        %2449 = vmatpush1.msra.mxu0 %v2330
        %2450 = vmatprep.subr.mxu0 %v2335
        %2451 = vmatpush1.msra.mxu0 %v2334
        %2452 = vmatprep.subr.mxu0 %v2339
        %2453 = vmatpush1.msra.mxu0 %v2338
        %2454 = vmatprep.subr.mxu0 %v2343
        %2455 = vmatpush1.msra.mxu0 %v2342
        %2456 = vmatprep.subr.mxu0 %v2347
        %2457 = vmatpush1.msra.mxu0 %v2346
        %2458 = vmatprep.subr.mxu0 %v2351
        %2459 = vmatpush1.msra.mxu0 %v2350
        %2460 = vmatprep.subr.mxu0 0.0
        %2461 = vmatpush1.msra.mxu0 0.0
        %2462 = vmatprep.subr.mxu0 0.0
        %2463 = vmatpush1.msra.mxu0 0.0
        %2464 = vmatprep.subr.mxu0 0.0
        %2465 = vmatpush1.msra.mxu0 0.0
        %2466 = vmatprep.subr.mxu0 0.0
        %2467 = vmatpush1.msra.mxu0 0.0
        %2468 = vmatprep.subr.mxu0 0.0
        %2469 = vmatpush1.msra.mxu0 0.0
        %2470 = vmatprep.subr.mxu0 0.0
        %2471 = vmatpush1.msra.mxu0 0.0
        %2472 = vmatprep.subr.mxu0 0.0
        %2473 = vmatpush1.msra.mxu0 0.0
        %2474 = vmatprep.subr.mxu0 0.0
        %2475 = vmatpush1.msra.mxu0 0.0
        %2476 = vmatprep.subr.mxu0 0.0
        %2477 = vmatpush1.msra.mxu0 0.0
        %2478 = vmatprep.subr.mxu0 0.0
        %2479 = vmatpush1.msra.mxu0 0.0
        %2480 = vmatprep.subr.mxu0 0.0
        %2481 = vmatpush1.msra.mxu0 0.0
        %2482 = vmatprep.subr.mxu0 0.0
        %2483 = vmatpush1.msra.mxu0 0.0
        %2484 = vmatprep.subr.mxu0 0.0
        %2485 = vmatpush1.msra.mxu0 0.0
        %2486 = vmatprep.subr.mxu0 0.0
        %2487 = vmatpush1.msra.mxu0 0.0
        %2488 = vmatprep.subr.mxu0 0.0
        %2489 = vmatpush1.msra.mxu0 0.0
        %2490 = vmatprep.subr.mxu0 0.0
        %2491 = vmatpush1.msra.mxu0 0.0
        %2492 = vmatprep.mubr.f32.mxu0 0.0
        %2493 = vmatmul.mubr.f32.gmra.mrb[0].mxu0 %v2285
        %v2494 = vpop.f32.mrb[0].mxu0
        %v2495 = vadd.f32 0.0, %v2494
        %v2496 = vpop.f32.mrb[0].mxu0
        %v2497 = vadd.f32 0.0, %v2496
        %2498 = vdwg.mxu0
        %v2499 = vadd.f32 %v2353, %v2424
        %v2500 = vadd.f32 %v2354, %v2426
        %v2501 = vadd.f32 %v2355, %v2495
        %v2502 = vadd.f32 %v2356, %v2497
        %v2503 = vxor.u32 %v2499, 2147483648
        %v2504 = vmul.f32 %v2503, 1.442695
        %v2505 = vpow.pop %v2504
        %v2506 = vadd.f32 %v2505, 1.0
        %v2507 = vrcp.pop %v2506
        %v2508 = vmul.f32 1.0, %v2507
        %v2509 = vxor.u32 %v2500, 2147483648
        %v2510 = vmul.f32 %v2509, 1.442695
        %v2511 = vpow.pop %v2510
        %v2512 = vadd.f32 %v2511, 1.0
        %v2513 = vrcp.pop %v2512
        %v2514 = vmul.f32 1.0, %v2513
        %v2515 = vtanh.pop %v2501
        %v2516 = vxor.u32 %v2502, 2147483648
        %v2517 = vmul.f32 %v2516, 1.442695
        %v2518 = vpow.pop %v2517
        %v2519 = vadd.f32 %v2518, 1.0
        %v2520 = vrcp.pop %v2519
        %v2521 = vmul.f32 1.0, %v2520
        %v2522 = vmul.f32 %v2508, %v2515
        %v2523 = vmul.f32 %v2514, %v2283
        %v2524 = vadd.f32 %v2522, %v2523
        %v2525 = vtanh.pop %v2524
        %v2526 = vmul.f32 %v2521, %v2525
        %s2527 = scalar_lea.vmem %s296, 48 [#allocation5]
        %2528 = vst [vmem:[%s2527] sm:$0xff] %v2526
        %v2529 = vld [vmem:[%s2] sm:$0xff]
        %v2530 = vld [vmem:[%s2 + $0x8] sm:$0xff]
        %v2531 = vld [vmem:[%s2 + $0x10] sm:$0xff]
        %v2532 = vld [vmem:[%s2 + $0x18] sm:$0xff]
        %v2533 = vld [vmem:[%s2 + $0x20] sm:$0xff]
        %v2534 = vld [vmem:[%s2 + $0x28] sm:$0xff]
        %v2535 = vld [vmem:[%s2 + $0x30] sm:$0xff]
        %v2536 = vld [vmem:[%s2 + $0x38] sm:$0xff]
        %v2537 = vld [vmem:[%s2 + $0x40] sm:$0xff]
        %v2538 = vld [vmem:[%s2 + $0x48] sm:$0xff]
        %v2539 = vld [vmem:[%s2 + $0x50] sm:$0xff]
        %v2540 = vld [vmem:[%s2 + $0x58] sm:$0xff]
        %v2541 = vld [vmem:[%s2 + $0x60] sm:$0xff]
        %v2542 = vld [vmem:[%s2 + $0x68] sm:$0xff]
        %v2543 = vld [vmem:[%s2 + $0x70] sm:$0xff]
        %v2544 = vld [vmem:[%s2 + $0x78] sm:$0xff]
        %v2545 = vld [vmem:[%s2 + $0x80] sm:$0xff]
        %v2546 = vld [vmem:[%s2 + $0x88] sm:$0xff]
        %v2547 = vld [vmem:[%s2 + $0x90] sm:$0xff]
        %v2548 = vld [vmem:[%s2 + $0x98] sm:$0xff]
        %v2549 = vld [vmem:[%s2 + $0xa0] sm:$0xff]
        %v2550 = vld [vmem:[%s2 + $0xa8] sm:$0xff]
        %v2551 = vld [vmem:[%s2 + $0xb0] sm:$0xff]
        %v2552 = vld [vmem:[%s2 + $0xb8] sm:$0xff]
        %v2553 = vld [vmem:[%s2 + $0xc0] sm:$0xff]
        %v2554 = vld [vmem:[%s2 + $0xc8] sm:$0xff]
        %v2555 = vld [vmem:[%s2 + $0xd0] sm:$0xff]
        %v2556 = vld [vmem:[%s2 + $0xd8] sm:$0xff]
        %v2557 = vld [vmem:[%s2 + $0xe0] sm:$0xff]
        %v2558 = vld [vmem:[%s2 + $0xe8] sm:$0xff]
        %v2559 = vld [vmem:[%s2 + $0xf0] sm:$0xff]
        %v2560 = vld [vmem:[%s2 + $0xf8] sm:$0xff]
        %v2561 = vld [vmem:[%s2 + $0x100] sm:$0xff]
        %v2562 = vld [vmem:[%s2 + $0x108] sm:$0xff]
        %v2563 = vld [vmem:[%s2 + $0x110] sm:$0xff]
        %v2564 = vld [vmem:[%s2 + $0x118] sm:$0xff]
        %v2565 = vld [vmem:[%s2 + $0x120] sm:$0xff]
        %v2566 = vld [vmem:[%s2 + $0x128] sm:$0xff]
        %v2567 = vld [vmem:[%s2 + $0x130] sm:$0xff]
        %v2568 = vld [vmem:[%s2 + $0x138] sm:$0xff]
        %v2569 = vld [vmem:[%s2 + $0x140] sm:$0xff]
        %v2570 = vld [vmem:[%s2 + $0x148] sm:$0xff]
        %v2571 = vld [vmem:[%s2 + $0x150] sm:$0xff]
        %v2572 = vld [vmem:[%s2 + $0x158] sm:$0xff]
        %v2573 = vld [vmem:[%s2 + $0x160] sm:$0xff]
        %v2574 = vld [vmem:[%s2 + $0x168] sm:$0xff]
        %v2575 = vld [vmem:[%s2 + $0x170] sm:$0xff]
        %v2576 = vld [vmem:[%s2 + $0x178] sm:$0xff]
        %v2577 = vld [vmem:[%s2 + $0x180] sm:$0xff]
        %v2578 = vld [vmem:[%s2 + $0x188] sm:$0xff]
        %v2579 = vld [vmem:[%s2 + $0x190] sm:$0xff]
        %v2580 = vld [vmem:[%s2 + $0x198] sm:$0xff]
        %v2581 = vld [vmem:[%s2 + $0x1a0] sm:$0xff]
        %v2582 = vld [vmem:[%s2 + $0x1a8] sm:$0xff]
        %v2583 = vld [vmem:[%s2 + $0x1b0] sm:$0xff]
        %v2584 = vld [vmem:[%s2 + $0x1b8] sm:$0xff]
        %v2585 = vld [vmem:[%s2 + $0x1c0] sm:$0xff]
        %v2586 = vld [vmem:[%s2 + $0x1c8] sm:$0xff]
        %v2587 = vld [vmem:[%s2 + $0x1d0] sm:$0xff]
        %v2588 = vld [vmem:[%s2 + $0x1d8] sm:$0xff]
        %v2589 = vld [vmem:[%s2 + $0x1e0] sm:$0xff]
        %v2590 = vld [vmem:[%s2 + $0x1e8] sm:$0xff]
        %v2591 = vld [vmem:[%s2 + $0x1f0] sm:$0xff]
        %v2592 = vld [vmem:[%s2 + $0x1f8] sm:$0xff]
        %s2593 = scalar_lea.vmem [#allocation2], 224
        %v2594 = vld [vmem:[%s2593] sm:$0xff]
        %v2595 = vld [vmem:[%s2593 + $0x8] sm:$0xff]
        %v2596 = vld [vmem:[%s2593 + $0x10] sm:$0xff]
        %v2597 = vld [vmem:[%s2593 + $0x18] sm:$0xff]
        %2598 = vmatprep.subr.mxu0 %v2530
        %2599 = vmatpush1.msra.mxu0 %v2529
        %2600 = vmatprep.subr.mxu0 %v2534
        %2601 = vmatpush1.msra.mxu0 %v2533
        %2602 = vmatprep.subr.mxu0 %v2538
        %2603 = vmatpush1.msra.mxu0 %v2537
        %2604 = vmatprep.subr.mxu0 %v2542
        %2605 = vmatpush1.msra.mxu0 %v2541
        %2606 = vmatprep.subr.mxu0 %v2546
        %2607 = vmatpush1.msra.mxu0 %v2545
        %2608 = vmatprep.subr.mxu0 %v2550
        %2609 = vmatpush1.msra.mxu0 %v2549
        %2610 = vmatprep.subr.mxu0 %v2554
        %2611 = vmatpush1.msra.mxu0 %v2553
        %2612 = vmatprep.subr.mxu0 %v2558
        %2613 = vmatpush1.msra.mxu0 %v2557
        %2614 = vmatprep.subr.mxu0 %v2562
        %2615 = vmatpush1.msra.mxu0 %v2561
        %2616 = vmatprep.subr.mxu0 %v2566
        %2617 = vmatpush1.msra.mxu0 %v2565
        %2618 = vmatprep.subr.mxu0 %v2570
        %2619 = vmatpush1.msra.mxu0 %v2569
        %2620 = vmatprep.subr.mxu0 %v2574
        %2621 = vmatpush1.msra.mxu0 %v2573
        %2622 = vmatprep.subr.mxu0 %v2578
        %2623 = vmatpush1.msra.mxu0 %v2577
        %2624 = vmatprep.subr.mxu0 %v2582
        %2625 = vmatpush1.msra.mxu0 %v2581
        %2626 = vmatprep.subr.mxu0 %v2586
        %2627 = vmatpush1.msra.mxu0 %v2585
        %2628 = vmatprep.subr.mxu0 %v2590
        %2629 = vmatpush1.msra.mxu0 %v2589
        %2630 = vmatprep.subr.mxu0 0.0
        %2631 = vmatpush1.msra.mxu0 0.0
        %2632 = vmatprep.subr.mxu0 0.0
        %2633 = vmatpush1.msra.mxu0 0.0
        %2634 = vmatprep.subr.mxu0 0.0
        %2635 = vmatpush1.msra.mxu0 0.0
        %2636 = vmatprep.subr.mxu0 0.0
        %2637 = vmatpush1.msra.mxu0 0.0
        %2638 = vmatprep.subr.mxu0 0.0
        %2639 = vmatpush1.msra.mxu0 0.0
        %2640 = vmatprep.subr.mxu0 0.0
        %2641 = vmatpush1.msra.mxu0 0.0
        %2642 = vmatprep.subr.mxu0 0.0
        %2643 = vmatpush1.msra.mxu0 0.0
        %2644 = vmatprep.subr.mxu0 0.0
        %2645 = vmatpush1.msra.mxu0 0.0
        %2646 = vmatprep.subr.mxu0 0.0
        %2647 = vmatpush1.msra.mxu0 0.0
        %2648 = vmatprep.subr.mxu0 0.0
        %2649 = vmatpush1.msra.mxu0 0.0
        %2650 = vmatprep.subr.mxu0 0.0
        %2651 = vmatpush1.msra.mxu0 0.0
        %2652 = vmatprep.subr.mxu0 0.0
        %2653 = vmatpush1.msra.mxu0 0.0
        %2654 = vmatprep.subr.mxu0 0.0
        %2655 = vmatpush1.msra.mxu0 0.0
        %2656 = vmatprep.subr.mxu0 0.0
        %2657 = vmatpush1.msra.mxu0 0.0
        %2658 = vmatprep.subr.mxu0 0.0
        %2659 = vmatpush1.msra.mxu0 0.0
        %2660 = vmatprep.subr.mxu0 0.0
        %2661 = vmatpush1.msra.mxu0 0.0
        %2662 = vmatprep.mubr.f32.mxu0 0.0
        %2663 = vmatmul.mubr.f32.gmra.mrb[0].mxu0 %v2526
        %v2664 = vpop.f32.mrb[0].mxu0
        %v2665 = vadd.f32 0.0, %v2664
        %v2666 = vpop.f32.mrb[0].mxu0
        %v2667 = vadd.f32 0.0, %v2666
        %2668 = vdwg.mxu0
        %2669 = vmatprep.subr.mxu0 %v2532
        %2670 = vmatpush1.msra.mxu0 %v2531
        %2671 = vmatprep.subr.mxu0 %v2536
        %2672 = vmatpush1.msra.mxu0 %v2535
        %2673 = vmatprep.subr.mxu0 %v2540
        %2674 = vmatpush1.msra.mxu0 %v2539
        %2675 = vmatprep.subr.mxu0 %v2544
        %2676 = vmatpush1.msra.mxu0 %v2543
        %2677 = vmatprep.subr.mxu0 %v2548
        %2678 = vmatpush1.msra.mxu0 %v2547
        %2679 = vmatprep.subr.mxu0 %v2552
        %2680 = vmatpush1.msra.mxu0 %v2551
        %2681 = vmatprep.subr.mxu0 %v2556
        %2682 = vmatpush1.msra.mxu0 %v2555
        %2683 = vmatprep.subr.mxu0 %v2560
        %2684 = vmatpush1.msra.mxu0 %v2559
        %2685 = vmatprep.subr.mxu0 %v2564
        %2686 = vmatpush1.msra.mxu0 %v2563
        %2687 = vmatprep.subr.mxu0 %v2568
        %2688 = vmatpush1.msra.mxu0 %v2567
        %2689 = vmatprep.subr.mxu0 %v2572
        %2690 = vmatpush1.msra.mxu0 %v2571
        %2691 = vmatprep.subr.mxu0 %v2576
        %2692 = vmatpush1.msra.mxu0 %v2575
        %2693 = vmatprep.subr.mxu0 %v2580
        %2694 = vmatpush1.msra.mxu0 %v2579
        %2695 = vmatprep.subr.mxu0 %v2584
        %2696 = vmatpush1.msra.mxu0 %v2583
        %2697 = vmatprep.subr.mxu0 %v2588
        %2698 = vmatpush1.msra.mxu0 %v2587
        %2699 = vmatprep.subr.mxu0 %v2592
        %2700 = vmatpush1.msra.mxu0 %v2591
        %2701 = vmatprep.subr.mxu0 0.0
        %2702 = vmatpush1.msra.mxu0 0.0
        %2703 = vmatprep.subr.mxu0 0.0
        %2704 = vmatpush1.msra.mxu0 0.0
        %2705 = vmatprep.subr.mxu0 0.0
        %2706 = vmatpush1.msra.mxu0 0.0
        %2707 = vmatprep.subr.mxu0 0.0
        %2708 = vmatpush1.msra.mxu0 0.0
        %2709 = vmatprep.subr.mxu0 0.0
        %2710 = vmatpush1.msra.mxu0 0.0
        %2711 = vmatprep.subr.mxu0 0.0
        %2712 = vmatpush1.msra.mxu0 0.0
        %2713 = vmatprep.subr.mxu0 0.0
        %2714 = vmatpush1.msra.mxu0 0.0
        %2715 = vmatprep.subr.mxu0 0.0
        %2716 = vmatpush1.msra.mxu0 0.0
        %2717 = vmatprep.subr.mxu0 0.0
        %2718 = vmatpush1.msra.mxu0 0.0
        %2719 = vmatprep.subr.mxu0 0.0
        %2720 = vmatpush1.msra.mxu0 0.0
        %2721 = vmatprep.subr.mxu0 0.0
        %2722 = vmatpush1.msra.mxu0 0.0
        %2723 = vmatprep.subr.mxu0 0.0
        %2724 = vmatpush1.msra.mxu0 0.0
        %2725 = vmatprep.subr.mxu0 0.0
        %2726 = vmatpush1.msra.mxu0 0.0
        %2727 = vmatprep.subr.mxu0 0.0
        %2728 = vmatpush1.msra.mxu0 0.0
        %2729 = vmatprep.subr.mxu0 0.0
        %2730 = vmatpush1.msra.mxu0 0.0
        %2731 = vmatprep.subr.mxu0 0.0
        %2732 = vmatpush1.msra.mxu0 0.0
        %2733 = vmatprep.mubr.f32.mxu0 0.0
        %2734 = vmatmul.mubr.f32.gmra.mrb[0].mxu0 %v2526
        %v2735 = vpop.f32.mrb[0].mxu0
        %v2736 = vadd.f32 0.0, %v2735
        %v2737 = vpop.f32.mrb[0].mxu0
        %v2738 = vadd.f32 0.0, %v2737
        %2739 = vdwg.mxu0
        %v2740 = vadd.f32 %v2594, %v2665
        %v2741 = vadd.f32 %v2595, %v2667
        %v2742 = vadd.f32 %v2596, %v2736
        %v2743 = vadd.f32 %v2597, %v2738
        %v2744 = vxor.u32 %v2740, 2147483648
        %v2745 = vmul.f32 %v2744, 1.442695
        %v2746 = vpow.pop %v2745
        %v2747 = vadd.f32 %v2746, 1.0
        %v2748 = vrcp.pop %v2747
        %v2749 = vmul.f32 1.0, %v2748
        %v2750 = vxor.u32 %v2741, 2147483648
        %v2751 = vmul.f32 %v2750, 1.442695
        %v2752 = vpow.pop %v2751
        %v2753 = vadd.f32 %v2752, 1.0
        %v2754 = vrcp.pop %v2753
        %v2755 = vmul.f32 1.0, %v2754
        %v2756 = vtanh.pop %v2742
        %v2757 = vxor.u32 %v2743, 2147483648
        %v2758 = vmul.f32 %v2757, 1.442695
        %v2759 = vpow.pop %v2758
        %v2760 = vadd.f32 %v2759, 1.0
        %v2761 = vrcp.pop %v2760
        %v2762 = vmul.f32 1.0, %v2761
        %v2763 = vmul.f32 %v2749, %v2756
        %v2764 = vmul.f32 %v2755, %v2524
        %v2765 = vadd.f32 %v2763, %v2764
        %v2766 = vtanh.pop %v2765
        %v2767 = vmul.f32 %v2762, %v2766
        %s2768 = scalar_lea.vmem %s296, 56 [#allocation5]
        %2769 = vst [vmem:[%s2768] sm:$0xff] %v2767
        %v2770 = vld [vmem:[%s2] sm:$0xff]
        %v2771 = vld [vmem:[%s2 + $0x8] sm:$0xff]
        %v2772 = vld [vmem:[%s2 + $0x10] sm:$0xff]
        %v2773 = vld [vmem:[%s2 + $0x18] sm:$0xff]
        %v2774 = vld [vmem:[%s2 + $0x20] sm:$0xff]
        %v2775 = vld [vmem:[%s2 + $0x28] sm:$0xff]
        %v2776 = vld [vmem:[%s2 + $0x30] sm:$0xff]
        %v2777 = vld [vmem:[%s2 + $0x38] sm:$0xff]
        %v2778 = vld [vmem:[%s2 + $0x40] sm:$0xff]
        %v2779 = vld [vmem:[%s2 + $0x48] sm:$0xff]
        %v2780 = vld [vmem:[%s2 + $0x50] sm:$0xff]
        %v2781 = vld [vmem:[%s2 + $0x58] sm:$0xff]
        %v2782 = vld [vmem:[%s2 + $0x60] sm:$0xff]
        %v2783 = vld [vmem:[%s2 + $0x68] sm:$0xff]
        %v2784 = vld [vmem:[%s2 + $0x70] sm:$0xff]
        %v2785 = vld [vmem:[%s2 + $0x78] sm:$0xff]
        %v2786 = vld [vmem:[%s2 + $0x80] sm:$0xff]
        %v2787 = vld [vmem:[%s2 + $0x88] sm:$0xff]
        %v2788 = vld [vmem:[%s2 + $0x90] sm:$0xff]
        %v2789 = vld [vmem:[%s2 + $0x98] sm:$0xff]
        %v2790 = vld [vmem:[%s2 + $0xa0] sm:$0xff]
        %v2791 = vld [vmem:[%s2 + $0xa8] sm:$0xff]
        %v2792 = vld [vmem:[%s2 + $0xb0] sm:$0xff]
        %v2793 = vld [vmem:[%s2 + $0xb8] sm:$0xff]
        %v2794 = vld [vmem:[%s2 + $0xc0] sm:$0xff]
        %v2795 = vld [vmem:[%s2 + $0xc8] sm:$0xff]
        %v2796 = vld [vmem:[%s2 + $0xd0] sm:$0xff]
        %v2797 = vld [vmem:[%s2 + $0xd8] sm:$0xff]
        %v2798 = vld [vmem:[%s2 + $0xe0] sm:$0xff]
        %v2799 = vld [vmem:[%s2 + $0xe8] sm:$0xff]
        %v2800 = vld [vmem:[%s2 + $0xf0] sm:$0xff]
        %v2801 = vld [vmem:[%s2 + $0xf8] sm:$0xff]
        %v2802 = vld [vmem:[%s2 + $0x100] sm:$0xff]
        %v2803 = vld [vmem:[%s2 + $0x108] sm:$0xff]
        %v2804 = vld [vmem:[%s2 + $0x110] sm:$0xff]
        %v2805 = vld [vmem:[%s2 + $0x118] sm:$0xff]
        %v2806 = vld [vmem:[%s2 + $0x120] sm:$0xff]
        %v2807 = vld [vmem:[%s2 + $0x128] sm:$0xff]
        %v2808 = vld [vmem:[%s2 + $0x130] sm:$0xff]
        %v2809 = vld [vmem:[%s2 + $0x138] sm:$0xff]
        %v2810 = vld [vmem:[%s2 + $0x140] sm:$0xff]
        %v2811 = vld [vmem:[%s2 + $0x148] sm:$0xff]
        %v2812 = vld [vmem:[%s2 + $0x150] sm:$0xff]
        %v2813 = vld [vmem:[%s2 + $0x158] sm:$0xff]
        %v2814 = vld [vmem:[%s2 + $0x160] sm:$0xff]
        %v2815 = vld [vmem:[%s2 + $0x168] sm:$0xff]
        %v2816 = vld [vmem:[%s2 + $0x170] sm:$0xff]
        %v2817 = vld [vmem:[%s2 + $0x178] sm:$0xff]
        %v2818 = vld [vmem:[%s2 + $0x180] sm:$0xff]
        %v2819 = vld [vmem:[%s2 + $0x188] sm:$0xff]
        %v2820 = vld [vmem:[%s2 + $0x190] sm:$0xff]
        %v2821 = vld [vmem:[%s2 + $0x198] sm:$0xff]
        %v2822 = vld [vmem:[%s2 + $0x1a0] sm:$0xff]
        %v2823 = vld [vmem:[%s2 + $0x1a8] sm:$0xff]
        %v2824 = vld [vmem:[%s2 + $0x1b0] sm:$0xff]
        %v2825 = vld [vmem:[%s2 + $0x1b8] sm:$0xff]
        %v2826 = vld [vmem:[%s2 + $0x1c0] sm:$0xff]
        %v2827 = vld [vmem:[%s2 + $0x1c8] sm:$0xff]
        %v2828 = vld [vmem:[%s2 + $0x1d0] sm:$0xff]
        %v2829 = vld [vmem:[%s2 + $0x1d8] sm:$0xff]
        %v2830 = vld [vmem:[%s2 + $0x1e0] sm:$0xff]
        %v2831 = vld [vmem:[%s2 + $0x1e8] sm:$0xff]
        %v2832 = vld [vmem:[%s2 + $0x1f0] sm:$0xff]
        %v2833 = vld [vmem:[%s2 + $0x1f8] sm:$0xff]
        %s2834 = scalar_lea.vmem [#allocation2], 256
        %v2835 = vld [vmem:[%s2834] sm:$0xff]
        %v2836 = vld [vmem:[%s2834 + $0x8] sm:$0xff]
        %v2837 = vld [vmem:[%s2834 + $0x10] sm:$0xff]
        %v2838 = vld [vmem:[%s2834 + $0x18] sm:$0xff]
        %2839 = vmatprep.subr.mxu0 %v2771
        %2840 = vmatpush1.msra.mxu0 %v2770
        %2841 = vmatprep.subr.mxu0 %v2775
        %2842 = vmatpush1.msra.mxu0 %v2774
        %2843 = vmatprep.subr.mxu0 %v2779
        %2844 = vmatpush1.msra.mxu0 %v2778
        %2845 = vmatprep.subr.mxu0 %v2783
        %2846 = vmatpush1.msra.mxu0 %v2782
        %2847 = vmatprep.subr.mxu0 %v2787
        %2848 = vmatpush1.msra.mxu0 %v2786
        %2849 = vmatprep.subr.mxu0 %v2791
        %2850 = vmatpush1.msra.mxu0 %v2790
        %2851 = vmatprep.subr.mxu0 %v2795
        %2852 = vmatpush1.msra.mxu0 %v2794
        %2853 = vmatprep.subr.mxu0 %v2799
        %2854 = vmatpush1.msra.mxu0 %v2798
        %2855 = vmatprep.subr.mxu0 %v2803
        %2856 = vmatpush1.msra.mxu0 %v2802
        %2857 = vmatprep.subr.mxu0 %v2807
        %2858 = vmatpush1.msra.mxu0 %v2806
        %2859 = vmatprep.subr.mxu0 %v2811
        %2860 = vmatpush1.msra.mxu0 %v2810
        %2861 = vmatprep.subr.mxu0 %v2815
        %2862 = vmatpush1.msra.mxu0 %v2814
        %2863 = vmatprep.subr.mxu0 %v2819
        %2864 = vmatpush1.msra.mxu0 %v2818
        %2865 = vmatprep.subr.mxu0 %v2823
        %2866 = vmatpush1.msra.mxu0 %v2822
        %2867 = vmatprep.subr.mxu0 %v2827
        %2868 = vmatpush1.msra.mxu0 %v2826
        %2869 = vmatprep.subr.mxu0 %v2831
        %2870 = vmatpush1.msra.mxu0 %v2830
        %2871 = vmatprep.subr.mxu0 0.0
        %2872 = vmatpush1.msra.mxu0 0.0
        %2873 = vmatprep.subr.mxu0 0.0
        %2874 = vmatpush1.msra.mxu0 0.0
        %2875 = vmatprep.subr.mxu0 0.0
        %2876 = vmatpush1.msra.mxu0 0.0
        %2877 = vmatprep.subr.mxu0 0.0
        %2878 = vmatpush1.msra.mxu0 0.0
        %2879 = vmatprep.subr.mxu0 0.0
        %2880 = vmatpush1.msra.mxu0 0.0
        %2881 = vmatprep.subr.mxu0 0.0
        %2882 = vmatpush1.msra.mxu0 0.0
        %2883 = vmatprep.subr.mxu0 0.0
        %2884 = vmatpush1.msra.mxu0 0.0
        %2885 = vmatprep.subr.mxu0 0.0
        %2886 = vmatpush1.msra.mxu0 0.0
        %2887 = vmatprep.subr.mxu0 0.0
        %2888 = vmatpush1.msra.mxu0 0.0
        %2889 = vmatprep.subr.mxu0 0.0
        %2890 = vmatpush1.msra.mxu0 0.0
        %2891 = vmatprep.subr.mxu0 0.0
        %2892 = vmatpush1.msra.mxu0 0.0
        %2893 = vmatprep.subr.mxu0 0.0
        %2894 = vmatpush1.msra.mxu0 0.0
        %2895 = vmatprep.subr.mxu0 0.0
        %2896 = vmatpush1.msra.mxu0 0.0
        %2897 = vmatprep.subr.mxu0 0.0
        %2898 = vmatpush1.msra.mxu0 0.0
        %2899 = vmatprep.subr.mxu0 0.0
        %2900 = vmatpush1.msra.mxu0 0.0
        %2901 = vmatprep.subr.mxu0 0.0
        %2902 = vmatpush1.msra.mxu0 0.0
        %2903 = vmatprep.mubr.f32.mxu0 0.0
        %2904 = vmatmul.mubr.f32.gmra.mrb[0].mxu0 %v2767
        %v2905 = vpop.f32.mrb[0].mxu0
        %v2906 = vadd.f32 0.0, %v2905
        %v2907 = vpop.f32.mrb[0].mxu0
        %v2908 = vadd.f32 0.0, %v2907
        %2909 = vdwg.mxu0
        %2910 = vmatprep.subr.mxu0 %v2773
        %2911 = vmatpush1.msra.mxu0 %v2772
        %2912 = vmatprep.subr.mxu0 %v2777
        %2913 = vmatpush1.msra.mxu0 %v2776
        %2914 = vmatprep.subr.mxu0 %v2781
        %2915 = vmatpush1.msra.mxu0 %v2780
        %2916 = vmatprep.subr.mxu0 %v2785
        %2917 = vmatpush1.msra.mxu0 %v2784
        %2918 = vmatprep.subr.mxu0 %v2789
        %2919 = vmatpush1.msra.mxu0 %v2788
        %2920 = vmatprep.subr.mxu0 %v2793
        %2921 = vmatpush1.msra.mxu0 %v2792
        %2922 = vmatprep.subr.mxu0 %v2797
        %2923 = vmatpush1.msra.mxu0 %v2796
        %2924 = vmatprep.subr.mxu0 %v2801
        %2925 = vmatpush1.msra.mxu0 %v2800
        %2926 = vmatprep.subr.mxu0 %v2805
        %2927 = vmatpush1.msra.mxu0 %v2804
        %2928 = vmatprep.subr.mxu0 %v2809
        %2929 = vmatpush1.msra.mxu0 %v2808
        %2930 = vmatprep.subr.mxu0 %v2813
        %2931 = vmatpush1.msra.mxu0 %v2812
        %2932 = vmatprep.subr.mxu0 %v2817
        %2933 = vmatpush1.msra.mxu0 %v2816
        %2934 = vmatprep.subr.mxu0 %v2821
        %2935 = vmatpush1.msra.mxu0 %v2820
        %2936 = vmatprep.subr.mxu0 %v2825
        %2937 = vmatpush1.msra.mxu0 %v2824
        %2938 = vmatprep.subr.mxu0 %v2829
        %2939 = vmatpush1.msra.mxu0 %v2828
        %2940 = vmatprep.subr.mxu0 %v2833
        %2941 = vmatpush1.msra.mxu0 %v2832
        %2942 = vmatprep.subr.mxu0 0.0
        %2943 = vmatpush1.msra.mxu0 0.0
        %2944 = vmatprep.subr.mxu0 0.0
        %2945 = vmatpush1.msra.mxu0 0.0
        %2946 = vmatprep.subr.mxu0 0.0
        %2947 = vmatpush1.msra.mxu0 0.0
        %2948 = vmatprep.subr.mxu0 0.0
        %2949 = vmatpush1.msra.mxu0 0.0
        %2950 = vmatprep.subr.mxu0 0.0
        %2951 = vmatpush1.msra.mxu0 0.0
        %2952 = vmatprep.subr.mxu0 0.0
        %2953 = vmatpush1.msra.mxu0 0.0
        %2954 = vmatprep.subr.mxu0 0.0
        %2955 = vmatpush1.msra.mxu0 0.0
        %2956 = vmatprep.subr.mxu0 0.0
        %2957 = vmatpush1.msra.mxu0 0.0
        %2958 = vmatprep.subr.mxu0 0.0
        %2959 = vmatpush1.msra.mxu0 0.0
        %2960 = vmatprep.subr.mxu0 0.0
        %2961 = vmatpush1.msra.mxu0 0.0
        %2962 = vmatprep.subr.mxu0 0.0
        %2963 = vmatpush1.msra.mxu0 0.0
        %2964 = vmatprep.subr.mxu0 0.0
        %2965 = vmatpush1.msra.mxu0 0.0
        %2966 = vmatprep.subr.mxu0 0.0
        %2967 = vmatpush1.msra.mxu0 0.0
        %2968 = vmatprep.subr.mxu0 0.0
        %2969 = vmatpush1.msra.mxu0 0.0
        %2970 = vmatprep.subr.mxu0 0.0
        %2971 = vmatpush1.msra.mxu0 0.0
        %2972 = vmatprep.subr.mxu0 0.0
        %2973 = vmatpush1.msra.mxu0 0.0
        %2974 = vmatprep.mubr.f32.mxu0 0.0
        %2975 = vmatmul.mubr.f32.gmra.mrb[0].mxu0 %v2767
        %v2976 = vpop.f32.mrb[0].mxu0
        %v2977 = vadd.f32 0.0, %v2976
        %v2978 = vpop.f32.mrb[0].mxu0
        %v2979 = vadd.f32 0.0, %v2978
        %2980 = vdwg.mxu0
        %v2981 = vadd.f32 %v2835, %v2906
        %v2982 = vadd.f32 %v2836, %v2908
        %v2983 = vadd.f32 %v2837, %v2977
        %v2984 = vadd.f32 %v2838, %v2979
        %v2985 = vxor.u32 %v2981, 2147483648
        %v2986 = vmul.f32 %v2985, 1.442695
        %v2987 = vpow.pop %v2986
        %v2988 = vadd.f32 %v2987, 1.0
        %v2989 = vrcp.pop %v2988
        %v2990 = vmul.f32 1.0, %v2989
        %v2991 = vxor.u32 %v2982, 2147483648
        %v2992 = vmul.f32 %v2991, 1.442695
        %v2993 = vpow.pop %v2992
        %v2994 = vadd.f32 %v2993, 1.0
        %v2995 = vrcp.pop %v2994
        %v2996 = vmul.f32 1.0, %v2995
        %v2997 = vtanh.pop %v2983
        %v2998 = vxor.u32 %v2984, 2147483648
        %v2999 = vmul.f32 %v2998, 1.442695
        %v3000 = vpow.pop %v2999
        %v3001 = vadd.f32 %v3000, 1.0
        %v3002 = vrcp.pop %v3001
        %v3003 = vmul.f32 1.0, %v3002
        %v3004 = vmul.f32 %v2990, %v2997
        %v3005 = vmul.f32 %v2996, %v2765
        %v3006 = vadd.f32 %v3004, %v3005
        %v3007 = vtanh.pop %v3006
        %v3008 = vmul.f32 %v3003, %v3007
        %s3009 = scalar_lea.vmem %s296, 64 [#allocation5]
        %3010 = vst [vmem:[%s3009] sm:$0xff] %v3008
        %v3011 = vld [vmem:[%s2] sm:$0xff]
        %v3012 = vld [vmem:[%s2 + $0x8] sm:$0xff]
        %v3013 = vld [vmem:[%s2 + $0x10] sm:$0xff]
        %v3014 = vld [vmem:[%s2 + $0x18] sm:$0xff]
        %v3015 = vld [vmem:[%s2 + $0x20] sm:$0xff]
        %v3016 = vld [vmem:[%s2 + $0x28] sm:$0xff]
        %v3017 = vld [vmem:[%s2 + $0x30] sm:$0xff]
        %v3018 = vld [vmem:[%s2 + $0x38] sm:$0xff]
        %v3019 = vld [vmem:[%s2 + $0x40] sm:$0xff]
        %v3020 = vld [vmem:[%s2 + $0x48] sm:$0xff]
        %v3021 = vld [vmem:[%s2 + $0x50] sm:$0xff]
        %v3022 = vld [vmem:[%s2 + $0x58] sm:$0xff]
        %v3023 = vld [vmem:[%s2 + $0x60] sm:$0xff]
        %v3024 = vld [vmem:[%s2 + $0x68] sm:$0xff]
        %v3025 = vld [vmem:[%s2 + $0x70] sm:$0xff]
        %v3026 = vld [vmem:[%s2 + $0x78] sm:$0xff]
        %v3027 = vld [vmem:[%s2 + $0x80] sm:$0xff]
        %v3028 = vld [vmem:[%s2 + $0x88] sm:$0xff]
        %v3029 = vld [vmem:[%s2 + $0x90] sm:$0xff]
        %v3030 = vld [vmem:[%s2 + $0x98] sm:$0xff]
        %v3031 = vld [vmem:[%s2 + $0xa0] sm:$0xff]
        %v3032 = vld [vmem:[%s2 + $0xa8] sm:$0xff]
        %v3033 = vld [vmem:[%s2 + $0xb0] sm:$0xff]
        %v3034 = vld [vmem:[%s2 + $0xb8] sm:$0xff]
        %v3035 = vld [vmem:[%s2 + $0xc0] sm:$0xff]
        %v3036 = vld [vmem:[%s2 + $0xc8] sm:$0xff]
        %v3037 = vld [vmem:[%s2 + $0xd0] sm:$0xff]
        %v3038 = vld [vmem:[%s2 + $0xd8] sm:$0xff]
        %v3039 = vld [vmem:[%s2 + $0xe0] sm:$0xff]
        %v3040 = vld [vmem:[%s2 + $0xe8] sm:$0xff]
        %v3041 = vld [vmem:[%s2 + $0xf0] sm:$0xff]
        %v3042 = vld [vmem:[%s2 + $0xf8] sm:$0xff]
        %v3043 = vld [vmem:[%s2 + $0x100] sm:$0xff]
        %v3044 = vld [vmem:[%s2 + $0x108] sm:$0xff]
        %v3045 = vld [vmem:[%s2 + $0x110] sm:$0xff]
        %v3046 = vld [vmem:[%s2 + $0x118] sm:$0xff]
        %v3047 = vld [vmem:[%s2 + $0x120] sm:$0xff]
        %v3048 = vld [vmem:[%s2 + $0x128] sm:$0xff]
        %v3049 = vld [vmem:[%s2 + $0x130] sm:$0xff]
        %v3050 = vld [vmem:[%s2 + $0x138] sm:$0xff]
        %v3051 = vld [vmem:[%s2 + $0x140] sm:$0xff]
        %v3052 = vld [vmem:[%s2 + $0x148] sm:$0xff]
        %v3053 = vld [vmem:[%s2 + $0x150] sm:$0xff]
        %v3054 = vld [vmem:[%s2 + $0x158] sm:$0xff]
        %v3055 = vld [vmem:[%s2 + $0x160] sm:$0xff]
        %v3056 = vld [vmem:[%s2 + $0x168] sm:$0xff]
        %v3057 = vld [vmem:[%s2 + $0x170] sm:$0xff]
        %v3058 = vld [vmem:[%s2 + $0x178] sm:$0xff]
        %v3059 = vld [vmem:[%s2 + $0x180] sm:$0xff]
        %v3060 = vld [vmem:[%s2 + $0x188] sm:$0xff]
        %v3061 = vld [vmem:[%s2 + $0x190] sm:$0xff]
        %v3062 = vld [vmem:[%s2 + $0x198] sm:$0xff]
        %v3063 = vld [vmem:[%s2 + $0x1a0] sm:$0xff]
        %v3064 = vld [vmem:[%s2 + $0x1a8] sm:$0xff]
        %v3065 = vld [vmem:[%s2 + $0x1b0] sm:$0xff]
        %v3066 = vld [vmem:[%s2 + $0x1b8] sm:$0xff]
        %v3067 = vld [vmem:[%s2 + $0x1c0] sm:$0xff]
        %v3068 = vld [vmem:[%s2 + $0x1c8] sm:$0xff]
        %v3069 = vld [vmem:[%s2 + $0x1d0] sm:$0xff]
        %v3070 = vld [vmem:[%s2 + $0x1d8] sm:$0xff]
        %v3071 = vld [vmem:[%s2 + $0x1e0] sm:$0xff]
        %v3072 = vld [vmem:[%s2 + $0x1e8] sm:$0xff]
        %v3073 = vld [vmem:[%s2 + $0x1f0] sm:$0xff]
        %v3074 = vld [vmem:[%s2 + $0x1f8] sm:$0xff]
        %s3075 = scalar_lea.vmem [#allocation2], 288
        %v3076 = vld [vmem:[%s3075] sm:$0xff]
        %v3077 = vld [vmem:[%s3075 + $0x8] sm:$0xff]
        %v3078 = vld [vmem:[%s3075 + $0x10] sm:$0xff]
        %v3079 = vld [vmem:[%s3075 + $0x18] sm:$0xff]
        %3080 = vmatprep.subr.mxu0 %v3012
        %3081 = vmatpush1.msra.mxu0 %v3011
        %3082 = vmatprep.subr.mxu0 %v3016
        %3083 = vmatpush1.msra.mxu0 %v3015
        %3084 = vmatprep.subr.mxu0 %v3020
        %3085 = vmatpush1.msra.mxu0 %v3019
        %3086 = vmatprep.subr.mxu0 %v3024
        %3087 = vmatpush1.msra.mxu0 %v3023
        %3088 = vmatprep.subr.mxu0 %v3028
        %3089 = vmatpush1.msra.mxu0 %v3027
        %3090 = vmatprep.subr.mxu0 %v3032
        %3091 = vmatpush1.msra.mxu0 %v3031
        %3092 = vmatprep.subr.mxu0 %v3036
        %3093 = vmatpush1.msra.mxu0 %v3035
        %3094 = vmatprep.subr.mxu0 %v3040
        %3095 = vmatpush1.msra.mxu0 %v3039
        %3096 = vmatprep.subr.mxu0 %v3044
        %3097 = vmatpush1.msra.mxu0 %v3043
        %3098 = vmatprep.subr.mxu0 %v3048
        %3099 = vmatpush1.msra.mxu0 %v3047
        %3100 = vmatprep.subr.mxu0 %v3052
        %3101 = vmatpush1.msra.mxu0 %v3051
        %3102 = vmatprep.subr.mxu0 %v3056
        %3103 = vmatpush1.msra.mxu0 %v3055
        %3104 = vmatprep.subr.mxu0 %v3060
        %3105 = vmatpush1.msra.mxu0 %v3059
        %3106 = vmatprep.subr.mxu0 %v3064
        %3107 = vmatpush1.msra.mxu0 %v3063
        %3108 = vmatprep.subr.mxu0 %v3068
        %3109 = vmatpush1.msra.mxu0 %v3067
        %3110 = vmatprep.subr.mxu0 %v3072
        %3111 = vmatpush1.msra.mxu0 %v3071
        %3112 = vmatprep.subr.mxu0 0.0
        %3113 = vmatpush1.msra.mxu0 0.0
        %3114 = vmatprep.subr.mxu0 0.0
        %3115 = vmatpush1.msra.mxu0 0.0
        %3116 = vmatprep.subr.mxu0 0.0
        %3117 = vmatpush1.msra.mxu0 0.0
        %3118 = vmatprep.subr.mxu0 0.0
        %3119 = vmatpush1.msra.mxu0 0.0
        %3120 = vmatprep.subr.mxu0 0.0
        %3121 = vmatpush1.msra.mxu0 0.0
        %3122 = vmatprep.subr.mxu0 0.0
        %3123 = vmatpush1.msra.mxu0 0.0
        %3124 = vmatprep.subr.mxu0 0.0
        %3125 = vmatpush1.msra.mxu0 0.0
        %3126 = vmatprep.subr.mxu0 0.0
        %3127 = vmatpush1.msra.mxu0 0.0
        %3128 = vmatprep.subr.mxu0 0.0
        %3129 = vmatpush1.msra.mxu0 0.0
        %3130 = vmatprep.subr.mxu0 0.0
        %3131 = vmatpush1.msra.mxu0 0.0
        %3132 = vmatprep.subr.mxu0 0.0
        %3133 = vmatpush1.msra.mxu0 0.0
        %3134 = vmatprep.subr.mxu0 0.0
        %3135 = vmatpush1.msra.mxu0 0.0
        %3136 = vmatprep.subr.mxu0 0.0
        %3137 = vmatpush1.msra.mxu0 0.0
        %3138 = vmatprep.subr.mxu0 0.0
        %3139 = vmatpush1.msra.mxu0 0.0
        %3140 = vmatprep.subr.mxu0 0.0
        %3141 = vmatpush1.msra.mxu0 0.0
        %3142 = vmatprep.subr.mxu0 0.0
        %3143 = vmatpush1.msra.mxu0 0.0
        %3144 = vmatprep.mubr.f32.mxu0 0.0
        %3145 = vmatmul.mubr.f32.gmra.mrb[0].mxu0 %v3008
        %v3146 = vpop.f32.mrb[0].mxu0
        %v3147 = vadd.f32 0.0, %v3146
        %v3148 = vpop.f32.mrb[0].mxu0
        %v3149 = vadd.f32 0.0, %v3148
        %3150 = vdwg.mxu0
        %3151 = vmatprep.subr.mxu0 %v3014
        %3152 = vmatpush1.msra.mxu0 %v3013
        %3153 = vmatprep.subr.mxu0 %v3018
        %3154 = vmatpush1.msra.mxu0 %v3017
        %3155 = vmatprep.subr.mxu0 %v3022
        %3156 = vmatpush1.msra.mxu0 %v3021
        %3157 = vmatprep.subr.mxu0 %v3026
        %3158 = vmatpush1.msra.mxu0 %v3025
        %3159 = vmatprep.subr.mxu0 %v3030
        %3160 = vmatpush1.msra.mxu0 %v3029
        %3161 = vmatprep.subr.mxu0 %v3034
        %3162 = vmatpush1.msra.mxu0 %v3033
        %3163 = vmatprep.subr.mxu0 %v3038
        %3164 = vmatpush1.msra.mxu0 %v3037
        %3165 = vmatprep.subr.mxu0 %v3042
        %3166 = vmatpush1.msra.mxu0 %v3041
        %3167 = vmatprep.subr.mxu0 %v3046
        %3168 = vmatpush1.msra.mxu0 %v3045
        %3169 = vmatprep.subr.mxu0 %v3050
        %3170 = vmatpush1.msra.mxu0 %v3049
        %3171 = vmatprep.subr.mxu0 %v3054
        %3172 = vmatpush1.msra.mxu0 %v3053
        %3173 = vmatprep.subr.mxu0 %v3058
        %3174 = vmatpush1.msra.mxu0 %v3057
        %3175 = vmatprep.subr.mxu0 %v3062
        %3176 = vmatpush1.msra.mxu0 %v3061
        %3177 = vmatprep.subr.mxu0 %v3066
        %3178 = vmatpush1.msra.mxu0 %v3065
        %3179 = vmatprep.subr.mxu0 %v3070
        %3180 = vmatpush1.msra.mxu0 %v3069
        %3181 = vmatprep.subr.mxu0 %v3074
        %3182 = vmatpush1.msra.mxu0 %v3073
        %3183 = vmatprep.subr.mxu0 0.0
        %3184 = vmatpush1.msra.mxu0 0.0
        %3185 = vmatprep.subr.mxu0 0.0
        %3186 = vmatpush1.msra.mxu0 0.0
        %3187 = vmatprep.subr.mxu0 0.0
        %3188 = vmatpush1.msra.mxu0 0.0
        %3189 = vmatprep.subr.mxu0 0.0
        %3190 = vmatpush1.msra.mxu0 0.0
        %3191 = vmatprep.subr.mxu0 0.0
        %3192 = vmatpush1.msra.mxu0 0.0
        %3193 = vmatprep.subr.mxu0 0.0
        %3194 = vmatpush1.msra.mxu0 0.0
        %3195 = vmatprep.subr.mxu0 0.0
        %3196 = vmatpush1.msra.mxu0 0.0
        %3197 = vmatprep.subr.mxu0 0.0
        %3198 = vmatpush1.msra.mxu0 0.0
        %3199 = vmatprep.subr.mxu0 0.0
        %3200 = vmatpush1.msra.mxu0 0.0
        %3201 = vmatprep.subr.mxu0 0.0
        %3202 = vmatpush1.msra.mxu0 0.0
        %3203 = vmatprep.subr.mxu0 0.0
        %3204 = vmatpush1.msra.mxu0 0.0
        %3205 = vmatprep.subr.mxu0 0.0
        %3206 = vmatpush1.msra.mxu0 0.0
        %3207 = vmatprep.subr.mxu0 0.0
        %3208 = vmatpush1.msra.mxu0 0.0
        %3209 = vmatprep.subr.mxu0 0.0
        %3210 = vmatpush1.msra.mxu0 0.0
        %3211 = vmatprep.subr.mxu0 0.0
        %3212 = vmatpush1.msra.mxu0 0.0
        %3213 = vmatprep.subr.mxu0 0.0
        %3214 = vmatpush1.msra.mxu0 0.0
        %3215 = vmatprep.mubr.f32.mxu0 0.0
        %3216 = vmatmul.mubr.f32.gmra.mrb[0].mxu0 %v3008
        %v3217 = vpop.f32.mrb[0].mxu0
        %v3218 = vadd.f32 0.0, %v3217
        %v3219 = vpop.f32.mrb[0].mxu0
        %v3220 = vadd.f32 0.0, %v3219
        %3221 = vdwg.mxu0
        %v3222 = vadd.f32 %v3076, %v3147
        %v3223 = vadd.f32 %v3077, %v3149
        %v3224 = vadd.f32 %v3078, %v3218
        %v3225 = vadd.f32 %v3079, %v3220
        %v3226 = vxor.u32 %v3222, 2147483648
        %v3227 = vmul.f32 %v3226, 1.442695
        %v3228 = vpow.pop %v3227
        %v3229 = vadd.f32 %v3228, 1.0
        %v3230 = vrcp.pop %v3229
        %v3231 = vmul.f32 1.0, %v3230
        %v3232 = vxor.u32 %v3223, 2147483648
        %v3233 = vmul.f32 %v3232, 1.442695
        %v3234 = vpow.pop %v3233
        %v3235 = vadd.f32 %v3234, 1.0
        %v3236 = vrcp.pop %v3235
        %v3237 = vmul.f32 1.0, %v3236
        %v3238 = vtanh.pop %v3224
        %v3239 = vxor.u32 %v3225, 2147483648
        %v3240 = vmul.f32 %v3239, 1.442695
        %v3241 = vpow.pop %v3240
        %v3242 = vadd.f32 %v3241, 1.0
        %v3243 = vrcp.pop %v3242
        %v3244 = vmul.f32 1.0, %v3243
        %v3245 = vmul.f32 %v3231, %v3238
        %v3246 = vmul.f32 %v3237, %v3006
        %v3247 = vadd.f32 %v3245, %v3246
        %v3248 = vtanh.pop %v3247
        %v3249 = vmul.f32 %v3244, %v3248
        %s3250 = scalar_lea.vmem %s296, 72 [#allocation5]
        %3251 = vst [vmem:[%s3250] sm:$0xff] %v3249
        %v3252 = vld [vmem:[%s2] sm:$0xff]
        %v3253 = vld [vmem:[%s2 + $0x8] sm:$0xff]
        %v3254 = vld [vmem:[%s2 + $0x10] sm:$0xff]
        %v3255 = vld [vmem:[%s2 + $0x18] sm:$0xff]
        %v3256 = vld [vmem:[%s2 + $0x20] sm:$0xff]
        %v3257 = vld [vmem:[%s2 + $0x28] sm:$0xff]
        %v3258 = vld [vmem:[%s2 + $0x30] sm:$0xff]
        %v3259 = vld [vmem:[%s2 + $0x38] sm:$0xff]
        %v3260 = vld [vmem:[%s2 + $0x40] sm:$0xff]
        %v3261 = vld [vmem:[%s2 + $0x48] sm:$0xff]
        %v3262 = vld [vmem:[%s2 + $0x50] sm:$0xff]
        %v3263 = vld [vmem:[%s2 + $0x58] sm:$0xff]
        %v3264 = vld [vmem:[%s2 + $0x60] sm:$0xff]
        %v3265 = vld [vmem:[%s2 + $0x68] sm:$0xff]
        %v3266 = vld [vmem:[%s2 + $0x70] sm:$0xff]
        %v3267 = vld [vmem:[%s2 + $0x78] sm:$0xff]
        %v3268 = vld [vmem:[%s2 + $0x80] sm:$0xff]
        %v3269 = vld [vmem:[%s2 + $0x88] sm:$0xff]
        %v3270 = vld [vmem:[%s2 + $0x90] sm:$0xff]
        %v3271 = vld [vmem:[%s2 + $0x98] sm:$0xff]
        %v3272 = vld [vmem:[%s2 + $0xa0] sm:$0xff]
        %v3273 = vld [vmem:[%s2 + $0xa8] sm:$0xff]
        %v3274 = vld [vmem:[%s2 + $0xb0] sm:$0xff]
        %v3275 = vld [vmem:[%s2 + $0xb8] sm:$0xff]
        %v3276 = vld [vmem:[%s2 + $0xc0] sm:$0xff]
        %v3277 = vld [vmem:[%s2 + $0xc8] sm:$0xff]
        %v3278 = vld [vmem:[%s2 + $0xd0] sm:$0xff]
        %v3279 = vld [vmem:[%s2 + $0xd8] sm:$0xff]
        %v3280 = vld [vmem:[%s2 + $0xe0] sm:$0xff]
        %v3281 = vld [vmem:[%s2 + $0xe8] sm:$0xff]
        %v3282 = vld [vmem:[%s2 + $0xf0] sm:$0xff]
        %v3283 = vld [vmem:[%s2 + $0xf8] sm:$0xff]
        %v3284 = vld [vmem:[%s2 + $0x100] sm:$0xff]
        %v3285 = vld [vmem:[%s2 + $0x108] sm:$0xff]
        %v3286 = vld [vmem:[%s2 + $0x110] sm:$0xff]
        %v3287 = vld [vmem:[%s2 + $0x118] sm:$0xff]
        %v3288 = vld [vmem:[%s2 + $0x120] sm:$0xff]
        %v3289 = vld [vmem:[%s2 + $0x128] sm:$0xff]
        %v3290 = vld [vmem:[%s2 + $0x130] sm:$0xff]
        %v3291 = vld [vmem:[%s2 + $0x138] sm:$0xff]
        %v3292 = vld [vmem:[%s2 + $0x140] sm:$0xff]
        %v3293 = vld [vmem:[%s2 + $0x148] sm:$0xff]
        %v3294 = vld [vmem:[%s2 + $0x150] sm:$0xff]
        %v3295 = vld [vmem:[%s2 + $0x158] sm:$0xff]
        %v3296 = vld [vmem:[%s2 + $0x160] sm:$0xff]
        %v3297 = vld [vmem:[%s2 + $0x168] sm:$0xff]
        %v3298 = vld [vmem:[%s2 + $0x170] sm:$0xff]
        %v3299 = vld [vmem:[%s2 + $0x178] sm:$0xff]
        %v3300 = vld [vmem:[%s2 + $0x180] sm:$0xff]
        %v3301 = vld [vmem:[%s2 + $0x188] sm:$0xff]
        %v3302 = vld [vmem:[%s2 + $0x190] sm:$0xff]
        %v3303 = vld [vmem:[%s2 + $0x198] sm:$0xff]
        %v3304 = vld [vmem:[%s2 + $0x1a0] sm:$0xff]
        %v3305 = vld [vmem:[%s2 + $0x1a8] sm:$0xff]
        %v3306 = vld [vmem:[%s2 + $0x1b0] sm:$0xff]
        %v3307 = vld [vmem:[%s2 + $0x1b8] sm:$0xff]
        %v3308 = vld [vmem:[%s2 + $0x1c0] sm:$0xff]
        %v3309 = vld [vmem:[%s2 + $0x1c8] sm:$0xff]
        %v3310 = vld [vmem:[%s2 + $0x1d0] sm:$0xff]
        %v3311 = vld [vmem:[%s2 + $0x1d8] sm:$0xff]
        %v3312 = vld [vmem:[%s2 + $0x1e0] sm:$0xff]
        %v3313 = vld [vmem:[%s2 + $0x1e8] sm:$0xff]
        %v3314 = vld [vmem:[%s2 + $0x1f0] sm:$0xff]
        %v3315 = vld [vmem:[%s2 + $0x1f8] sm:$0xff]
        %s3316 = scalar_lea.vmem [#allocation2], 320
        %v3317 = vld [vmem:[%s3316] sm:$0xff]
        %v3318 = vld [vmem:[%s3316 + $0x8] sm:$0xff]
        %v3319 = vld [vmem:[%s3316 + $0x10] sm:$0xff]
        %v3320 = vld [vmem:[%s3316 + $0x18] sm:$0xff]
        %3321 = vmatprep.subr.mxu0 %v3253
        %3322 = vmatpush1.msra.mxu0 %v3252
        %3323 = vmatprep.subr.mxu0 %v3257
        %3324 = vmatpush1.msra.mxu0 %v3256
        %3325 = vmatprep.subr.mxu0 %v3261
        %3326 = vmatpush1.msra.mxu0 %v3260
        %3327 = vmatprep.subr.mxu0 %v3265
        %3328 = vmatpush1.msra.mxu0 %v3264
        %3329 = vmatprep.subr.mxu0 %v3269
        %3330 = vmatpush1.msra.mxu0 %v3268
        %3331 = vmatprep.subr.mxu0 %v3273
        %3332 = vmatpush1.msra.mxu0 %v3272
        %3333 = vmatprep.subr.mxu0 %v3277
        %3334 = vmatpush1.msra.mxu0 %v3276
        %3335 = vmatprep.subr.mxu0 %v3281
        %3336 = vmatpush1.msra.mxu0 %v3280
        %3337 = vmatprep.subr.mxu0 %v3285
        %3338 = vmatpush1.msra.mxu0 %v3284
        %3339 = vmatprep.subr.mxu0 %v3289
        %3340 = vmatpush1.msra.mxu0 %v3288
        %3341 = vmatprep.subr.mxu0 %v3293
        %3342 = vmatpush1.msra.mxu0 %v3292
        %3343 = vmatprep.subr.mxu0 %v3297
        %3344 = vmatpush1.msra.mxu0 %v3296
        %3345 = vmatprep.subr.mxu0 %v3301
        %3346 = vmatpush1.msra.mxu0 %v3300
        %3347 = vmatprep.subr.mxu0 %v3305
        %3348 = vmatpush1.msra.mxu0 %v3304
        %3349 = vmatprep.subr.mxu0 %v3309
        %3350 = vmatpush1.msra.mxu0 %v3308
        %3351 = vmatprep.subr.mxu0 %v3313
        %3352 = vmatpush1.msra.mxu0 %v3312
        %3353 = vmatprep.subr.mxu0 0.0
        %3354 = vmatpush1.msra.mxu0 0.0
        %3355 = vmatprep.subr.mxu0 0.0
        %3356 = vmatpush1.msra.mxu0 0.0
        %3357 = vmatprep.subr.mxu0 0.0
        %3358 = vmatpush1.msra.mxu0 0.0
        %3359 = vmatprep.subr.mxu0 0.0
        %3360 = vmatpush1.msra.mxu0 0.0
        %3361 = vmatprep.subr.mxu0 0.0
        %3362 = vmatpush1.msra.mxu0 0.0
        %3363 = vmatprep.subr.mxu0 0.0
        %3364 = vmatpush1.msra.mxu0 0.0
        %3365 = vmatprep.subr.mxu0 0.0
        %3366 = vmatpush1.msra.mxu0 0.0
        %3367 = vmatprep.subr.mxu0 0.0
        %3368 = vmatpush1.msra.mxu0 0.0
        %3369 = vmatprep.subr.mxu0 0.0
        %3370 = vmatpush1.msra.mxu0 0.0
        %3371 = vmatprep.subr.mxu0 0.0
        %3372 = vmatpush1.msra.mxu0 0.0
        %3373 = vmatprep.subr.mxu0 0.0
        %3374 = vmatpush1.msra.mxu0 0.0
        %3375 = vmatprep.subr.mxu0 0.0
        %3376 = vmatpush1.msra.mxu0 0.0
        %3377 = vmatprep.subr.mxu0 0.0
        %3378 = vmatpush1.msra.mxu0 0.0
        %3379 = vmatprep.subr.mxu0 0.0
        %3380 = vmatpush1.msra.mxu0 0.0
        %3381 = vmatprep.subr.mxu0 0.0
        %3382 = vmatpush1.msra.mxu0 0.0
        %3383 = vmatprep.subr.mxu0 0.0
        %3384 = vmatpush1.msra.mxu0 0.0
        %3385 = vmatprep.mubr.f32.mxu0 0.0
        %3386 = vmatmul.mubr.f32.gmra.mrb[0].mxu0 %v3249
        %v3387 = vpop.f32.mrb[0].mxu0
        %v3388 = vadd.f32 0.0, %v3387
        %v3389 = vpop.f32.mrb[0].mxu0
        %v3390 = vadd.f32 0.0, %v3389
        %3391 = vdwg.mxu0
        %3392 = vmatprep.subr.mxu0 %v3255
        %3393 = vmatpush1.msra.mxu0 %v3254
        %3394 = vmatprep.subr.mxu0 %v3259
        %3395 = vmatpush1.msra.mxu0 %v3258
        %3396 = vmatprep.subr.mxu0 %v3263
        %3397 = vmatpush1.msra.mxu0 %v3262
        %3398 = vmatprep.subr.mxu0 %v3267
        %3399 = vmatpush1.msra.mxu0 %v3266
        %3400 = vmatprep.subr.mxu0 %v3271
        %3401 = vmatpush1.msra.mxu0 %v3270
        %3402 = vmatprep.subr.mxu0 %v3275
        %3403 = vmatpush1.msra.mxu0 %v3274
        %3404 = vmatprep.subr.mxu0 %v3279
        %3405 = vmatpush1.msra.mxu0 %v3278
        %3406 = vmatprep.subr.mxu0 %v3283
        %3407 = vmatpush1.msra.mxu0 %v3282
        %3408 = vmatprep.subr.mxu0 %v3287
        %3409 = vmatpush1.msra.mxu0 %v3286
        %3410 = vmatprep.subr.mxu0 %v3291
        %3411 = vmatpush1.msra.mxu0 %v3290
        %3412 = vmatprep.subr.mxu0 %v3295
        %3413 = vmatpush1.msra.mxu0 %v3294
        %3414 = vmatprep.subr.mxu0 %v3299
        %3415 = vmatpush1.msra.mxu0 %v3298
        %3416 = vmatprep.subr.mxu0 %v3303
        %3417 = vmatpush1.msra.mxu0 %v3302
        %3418 = vmatprep.subr.mxu0 %v3307
        %3419 = vmatpush1.msra.mxu0 %v3306
        %3420 = vmatprep.subr.mxu0 %v3311
        %3421 = vmatpush1.msra.mxu0 %v3310
        %3422 = vmatprep.subr.mxu0 %v3315
        %3423 = vmatpush1.msra.mxu0 %v3314
        %3424 = vmatprep.subr.mxu0 0.0
        %3425 = vmatpush1.msra.mxu0 0.0
        %3426 = vmatprep.subr.mxu0 0.0
        %3427 = vmatpush1.msra.mxu0 0.0
        %3428 = vmatprep.subr.mxu0 0.0
        %3429 = vmatpush1.msra.mxu0 0.0
        %3430 = vmatprep.subr.mxu0 0.0
        %3431 = vmatpush1.msra.mxu0 0.0
        %3432 = vmatprep.subr.mxu0 0.0
        %3433 = vmatpush1.msra.mxu0 0.0
        %3434 = vmatprep.subr.mxu0 0.0
        %3435 = vmatpush1.msra.mxu0 0.0
        %3436 = vmatprep.subr.mxu0 0.0
        %3437 = vmatpush1.msra.mxu0 0.0
        %3438 = vmatprep.subr.mxu0 0.0
        %3439 = vmatpush1.msra.mxu0 0.0
        %3440 = vmatprep.subr.mxu0 0.0
        %3441 = vmatpush1.msra.mxu0 0.0
        %3442 = vmatprep.subr.mxu0 0.0
        %3443 = vmatpush1.msra.mxu0 0.0
        %3444 = vmatprep.subr.mxu0 0.0
        %3445 = vmatpush1.msra.mxu0 0.0
        %3446 = vmatprep.subr.mxu0 0.0
        %3447 = vmatpush1.msra.mxu0 0.0
        %3448 = vmatprep.subr.mxu0 0.0
        %3449 = vmatpush1.msra.mxu0 0.0
        %3450 = vmatprep.subr.mxu0 0.0
        %3451 = vmatpush1.msra.mxu0 0.0
        %3452 = vmatprep.subr.mxu0 0.0
        %3453 = vmatpush1.msra.mxu0 0.0
        %3454 = vmatprep.subr.mxu0 0.0
        %3455 = vmatpush1.msra.mxu0 0.0
        %3456 = vmatprep.mubr.f32.mxu0 0.0
        %3457 = vmatmul.mubr.f32.gmra.mrb[0].mxu0 %v3249
        %v3458 = vpop.f32.mrb[0].mxu0
        %v3459 = vadd.f32 0.0, %v3458
        %v3460 = vpop.f32.mrb[0].mxu0
        %v3461 = vadd.f32 0.0, %v3460
        %3462 = vdwg.mxu0
        %v3463 = vadd.f32 %v3317, %v3388
        %v3464 = vadd.f32 %v3318, %v3390
        %v3465 = vadd.f32 %v3319, %v3459
        %v3466 = vadd.f32 %v3320, %v3461
        %v3467 = vxor.u32 %v3463, 2147483648
        %v3468 = vmul.f32 %v3467, 1.442695
        %v3469 = vpow.pop %v3468
        %v3470 = vadd.f32 %v3469, 1.0
        %v3471 = vrcp.pop %v3470
        %v3472 = vmul.f32 1.0, %v3471
        %v3473 = vxor.u32 %v3464, 2147483648
        %v3474 = vmul.f32 %v3473, 1.442695
        %v3475 = vpow.pop %v3474
        %v3476 = vadd.f32 %v3475, 1.0
        %v3477 = vrcp.pop %v3476
        %v3478 = vmul.f32 1.0, %v3477
        %v3479 = vtanh.pop %v3465
        %v3480 = vxor.u32 %v3466, 2147483648
        %v3481 = vmul.f32 %v3480, 1.442695
        %v3482 = vpow.pop %v3481
        %v3483 = vadd.f32 %v3482, 1.0
        %v3484 = vrcp.pop %v3483
        %v3485 = vmul.f32 1.0, %v3484
        %v3486 = vmul.f32 %v3472, %v3479
        %v3487 = vmul.f32 %v3478, %v3247
        %v3488 = vadd.f32 %v3486, %v3487
        %v3489 = vtanh.pop %v3488
        %v3490 = vmul.f32 %v3485, %v3489
        %s3491 = scalar_lea.vmem %s296, 80 [#allocation5]
        %3492 = vst [vmem:[%s3491] sm:$0xff] %v3490
        %v3493 = vld [vmem:[%s2] sm:$0xff]
        %v3494 = vld [vmem:[%s2 + $0x8] sm:$0xff]
        %v3495 = vld [vmem:[%s2 + $0x10] sm:$0xff]
        %v3496 = vld [vmem:[%s2 + $0x18] sm:$0xff]
        %v3497 = vld [vmem:[%s2 + $0x20] sm:$0xff]
        %v3498 = vld [vmem:[%s2 + $0x28] sm:$0xff]
        %v3499 = vld [vmem:[%s2 + $0x30] sm:$0xff]
        %v3500 = vld [vmem:[%s2 + $0x38] sm:$0xff]
        %v3501 = vld [vmem:[%s2 + $0x40] sm:$0xff]
        %v3502 = vld [vmem:[%s2 + $0x48] sm:$0xff]
        %v3503 = vld [vmem:[%s2 + $0x50] sm:$0xff]
        %v3504 = vld [vmem:[%s2 + $0x58] sm:$0xff]
        %v3505 = vld [vmem:[%s2 + $0x60] sm:$0xff]
        %v3506 = vld [vmem:[%s2 + $0x68] sm:$0xff]
        %v3507 = vld [vmem:[%s2 + $0x70] sm:$0xff]
        %v3508 = vld [vmem:[%s2 + $0x78] sm:$0xff]
        %v3509 = vld [vmem:[%s2 + $0x80] sm:$0xff]
        %v3510 = vld [vmem:[%s2 + $0x88] sm:$0xff]
        %v3511 = vld [vmem:[%s2 + $0x90] sm:$0xff]
        %v3512 = vld [vmem:[%s2 + $0x98] sm:$0xff]
        %v3513 = vld [vmem:[%s2 + $0xa0] sm:$0xff]
        %v3514 = vld [vmem:[%s2 + $0xa8] sm:$0xff]
        %v3515 = vld [vmem:[%s2 + $0xb0] sm:$0xff]
        %v3516 = vld [vmem:[%s2 + $0xb8] sm:$0xff]
        %v3517 = vld [vmem:[%s2 + $0xc0] sm:$0xff]
        %v3518 = vld [vmem:[%s2 + $0xc8] sm:$0xff]
        %v3519 = vld [vmem:[%s2 + $0xd0] sm:$0xff]
        %v3520 = vld [vmem:[%s2 + $0xd8] sm:$0xff]
        %v3521 = vld [vmem:[%s2 + $0xe0] sm:$0xff]
        %v3522 = vld [vmem:[%s2 + $0xe8] sm:$0xff]
        %v3523 = vld [vmem:[%s2 + $0xf0] sm:$0xff]
        %v3524 = vld [vmem:[%s2 + $0xf8] sm:$0xff]
        %v3525 = vld [vmem:[%s2 + $0x100] sm:$0xff]
        %v3526 = vld [vmem:[%s2 + $0x108] sm:$0xff]
        %v3527 = vld [vmem:[%s2 + $0x110] sm:$0xff]
        %v3528 = vld [vmem:[%s2 + $0x118] sm:$0xff]
        %v3529 = vld [vmem:[%s2 + $0x120] sm:$0xff]
        %v3530 = vld [vmem:[%s2 + $0x128] sm:$0xff]
        %v3531 = vld [vmem:[%s2 + $0x130] sm:$0xff]
        %v3532 = vld [vmem:[%s2 + $0x138] sm:$0xff]
        %v3533 = vld [vmem:[%s2 + $0x140] sm:$0xff]
        %v3534 = vld [vmem:[%s2 + $0x148] sm:$0xff]
        %v3535 = vld [vmem:[%s2 + $0x150] sm:$0xff]
        %v3536 = vld [vmem:[%s2 + $0x158] sm:$0xff]
        %v3537 = vld [vmem:[%s2 + $0x160] sm:$0xff]
        %v3538 = vld [vmem:[%s2 + $0x168] sm:$0xff]
        %v3539 = vld [vmem:[%s2 + $0x170] sm:$0xff]
        %v3540 = vld [vmem:[%s2 + $0x178] sm:$0xff]
        %v3541 = vld [vmem:[%s2 + $0x180] sm:$0xff]
        %v3542 = vld [vmem:[%s2 + $0x188] sm:$0xff]
        %v3543 = vld [vmem:[%s2 + $0x190] sm:$0xff]
        %v3544 = vld [vmem:[%s2 + $0x198] sm:$0xff]
        %v3545 = vld [vmem:[%s2 + $0x1a0] sm:$0xff]
        %v3546 = vld [vmem:[%s2 + $0x1a8] sm:$0xff]
        %v3547 = vld [vmem:[%s2 + $0x1b0] sm:$0xff]
        %v3548 = vld [vmem:[%s2 + $0x1b8] sm:$0xff]
        %v3549 = vld [vmem:[%s2 + $0x1c0] sm:$0xff]
        %v3550 = vld [vmem:[%s2 + $0x1c8] sm:$0xff]
        %v3551 = vld [vmem:[%s2 + $0x1d0] sm:$0xff]
        %v3552 = vld [vmem:[%s2 + $0x1d8] sm:$0xff]
        %v3553 = vld [vmem:[%s2 + $0x1e0] sm:$0xff]
        %v3554 = vld [vmem:[%s2 + $0x1e8] sm:$0xff]
        %v3555 = vld [vmem:[%s2 + $0x1f0] sm:$0xff]
        %v3556 = vld [vmem:[%s2 + $0x1f8] sm:$0xff]
        %s3557 = scalar_lea.vmem [#allocation2], 352
        %v3558 = vld [vmem:[%s3557] sm:$0xff]
        %v3559 = vld [vmem:[%s3557 + $0x8] sm:$0xff]
        %v3560 = vld [vmem:[%s3557 + $0x10] sm:$0xff]
        %v3561 = vld [vmem:[%s3557 + $0x18] sm:$0xff]
        %3562 = vmatprep.subr.mxu0 %v3494
        %3563 = vmatpush1.msra.mxu0 %v3493
        %3564 = vmatprep.subr.mxu0 %v3498
        %3565 = vmatpush1.msra.mxu0 %v3497
        %3566 = vmatprep.subr.mxu0 %v3502
        %3567 = vmatpush1.msra.mxu0 %v3501
        %3568 = vmatprep.subr.mxu0 %v3506
        %3569 = vmatpush1.msra.mxu0 %v3505
        %3570 = vmatprep.subr.mxu0 %v3510
        %3571 = vmatpush1.msra.mxu0 %v3509
        %3572 = vmatprep.subr.mxu0 %v3514
        %3573 = vmatpush1.msra.mxu0 %v3513
        %3574 = vmatprep.subr.mxu0 %v3518
        %3575 = vmatpush1.msra.mxu0 %v3517
        %3576 = vmatprep.subr.mxu0 %v3522
        %3577 = vmatpush1.msra.mxu0 %v3521
        %3578 = vmatprep.subr.mxu0 %v3526
        %3579 = vmatpush1.msra.mxu0 %v3525
        %3580 = vmatprep.subr.mxu0 %v3530
        %3581 = vmatpush1.msra.mxu0 %v3529
        %3582 = vmatprep.subr.mxu0 %v3534
        %3583 = vmatpush1.msra.mxu0 %v3533
        %3584 = vmatprep.subr.mxu0 %v3538
        %3585 = vmatpush1.msra.mxu0 %v3537
        %3586 = vmatprep.subr.mxu0 %v3542
        %3587 = vmatpush1.msra.mxu0 %v3541
        %3588 = vmatprep.subr.mxu0 %v3546
        %3589 = vmatpush1.msra.mxu0 %v3545
        %3590 = vmatprep.subr.mxu0 %v3550
        %3591 = vmatpush1.msra.mxu0 %v3549
        %3592 = vmatprep.subr.mxu0 %v3554
        %3593 = vmatpush1.msra.mxu0 %v3553
        %3594 = vmatprep.subr.mxu0 0.0
        %3595 = vmatpush1.msra.mxu0 0.0
        %3596 = vmatprep.subr.mxu0 0.0
        %3597 = vmatpush1.msra.mxu0 0.0
        %3598 = vmatprep.subr.mxu0 0.0
        %3599 = vmatpush1.msra.mxu0 0.0
        %3600 = vmatprep.subr.mxu0 0.0
        %3601 = vmatpush1.msra.mxu0 0.0
        %3602 = vmatprep.subr.mxu0 0.0
        %3603 = vmatpush1.msra.mxu0 0.0
        %3604 = vmatprep.subr.mxu0 0.0
        %3605 = vmatpush1.msra.mxu0 0.0
        %3606 = vmatprep.subr.mxu0 0.0
        %3607 = vmatpush1.msra.mxu0 0.0
        %3608 = vmatprep.subr.mxu0 0.0
        %3609 = vmatpush1.msra.mxu0 0.0
        %3610 = vmatprep.subr.mxu0 0.0
        %3611 = vmatpush1.msra.mxu0 0.0
        %3612 = vmatprep.subr.mxu0 0.0
        %3613 = vmatpush1.msra.mxu0 0.0
        %3614 = vmatprep.subr.mxu0 0.0
        %3615 = vmatpush1.msra.mxu0 0.0
        %3616 = vmatprep.subr.mxu0 0.0
        %3617 = vmatpush1.msra.mxu0 0.0
        %3618 = vmatprep.subr.mxu0 0.0
        %3619 = vmatpush1.msra.mxu0 0.0
        %3620 = vmatprep.subr.mxu0 0.0
        %3621 = vmatpush1.msra.mxu0 0.0
        %3622 = vmatprep.subr.mxu0 0.0
        %3623 = vmatpush1.msra.mxu0 0.0
        %3624 = vmatprep.subr.mxu0 0.0
        %3625 = vmatpush1.msra.mxu0 0.0
        %3626 = vmatprep.mubr.f32.mxu0 0.0
        %3627 = vmatmul.mubr.f32.gmra.mrb[0].mxu0 %v3490
        %v3628 = vpop.f32.mrb[0].mxu0
        %v3629 = vadd.f32 0.0, %v3628
        %v3630 = vpop.f32.mrb[0].mxu0
        %v3631 = vadd.f32 0.0, %v3630
        %3632 = vdwg.mxu0
        %3633 = vmatprep.subr.mxu0 %v3496
        %3634 = vmatpush1.msra.mxu0 %v3495
        %3635 = vmatprep.subr.mxu0 %v3500
        %3636 = vmatpush1.msra.mxu0 %v3499
        %3637 = vmatprep.subr.mxu0 %v3504
        %3638 = vmatpush1.msra.mxu0 %v3503
        %3639 = vmatprep.subr.mxu0 %v3508
        %3640 = vmatpush1.msra.mxu0 %v3507
        %3641 = vmatprep.subr.mxu0 %v3512
        %3642 = vmatpush1.msra.mxu0 %v3511
        %3643 = vmatprep.subr.mxu0 %v3516
        %3644 = vmatpush1.msra.mxu0 %v3515
        %3645 = vmatprep.subr.mxu0 %v3520
        %3646 = vmatpush1.msra.mxu0 %v3519
        %3647 = vmatprep.subr.mxu0 %v3524
        %3648 = vmatpush1.msra.mxu0 %v3523
        %3649 = vmatprep.subr.mxu0 %v3528
        %3650 = vmatpush1.msra.mxu0 %v3527
        %3651 = vmatprep.subr.mxu0 %v3532
        %3652 = vmatpush1.msra.mxu0 %v3531
        %3653 = vmatprep.subr.mxu0 %v3536
        %3654 = vmatpush1.msra.mxu0 %v3535
        %3655 = vmatprep.subr.mxu0 %v3540
        %3656 = vmatpush1.msra.mxu0 %v3539
        %3657 = vmatprep.subr.mxu0 %v3544
        %3658 = vmatpush1.msra.mxu0 %v3543
        %3659 = vmatprep.subr.mxu0 %v3548
        %3660 = vmatpush1.msra.mxu0 %v3547
        %3661 = vmatprep.subr.mxu0 %v3552
        %3662 = vmatpush1.msra.mxu0 %v3551
        %3663 = vmatprep.subr.mxu0 %v3556
        %3664 = vmatpush1.msra.mxu0 %v3555
        %3665 = vmatprep.subr.mxu0 0.0
        %3666 = vmatpush1.msra.mxu0 0.0
        %3667 = vmatprep.subr.mxu0 0.0
        %3668 = vmatpush1.msra.mxu0 0.0
        %3669 = vmatprep.subr.mxu0 0.0
        %3670 = vmatpush1.msra.mxu0 0.0
        %3671 = vmatprep.subr.mxu0 0.0
        %3672 = vmatpush1.msra.mxu0 0.0
        %3673 = vmatprep.subr.mxu0 0.0
        %3674 = vmatpush1.msra.mxu0 0.0
        %3675 = vmatprep.subr.mxu0 0.0
        %3676 = vmatpush1.msra.mxu0 0.0
        %3677 = vmatprep.subr.mxu0 0.0
        %3678 = vmatpush1.msra.mxu0 0.0
        %3679 = vmatprep.subr.mxu0 0.0
        %3680 = vmatpush1.msra.mxu0 0.0
        %3681 = vmatprep.subr.mxu0 0.0
        %3682 = vmatpush1.msra.mxu0 0.0
        %3683 = vmatprep.subr.mxu0 0.0
        %3684 = vmatpush1.msra.mxu0 0.0
        %3685 = vmatprep.subr.mxu0 0.0
        %3686 = vmatpush1.msra.mxu0 0.0
        %3687 = vmatprep.subr.mxu0 0.0
        %3688 = vmatpush1.msra.mxu0 0.0
        %3689 = vmatprep.subr.mxu0 0.0
        %3690 = vmatpush1.msra.mxu0 0.0
        %3691 = vmatprep.subr.mxu0 0.0
        %3692 = vmatpush1.msra.mxu0 0.0
        %3693 = vmatprep.subr.mxu0 0.0
        %3694 = vmatpush1.msra.mxu0 0.0
        %3695 = vmatprep.subr.mxu0 0.0
        %3696 = vmatpush1.msra.mxu0 0.0
        %3697 = vmatprep.mubr.f32.mxu0 0.0
        %3698 = vmatmul.mubr.f32.gmra.mrb[0].mxu0 %v3490
        %v3699 = vpop.f32.mrb[0].mxu0
        %v3700 = vadd.f32 0.0, %v3699
        %v3701 = vpop.f32.mrb[0].mxu0
        %v3702 = vadd.f32 0.0, %v3701
        %3703 = vdwg.mxu0
        %v3704 = vadd.f32 %v3558, %v3629
        %v3705 = vadd.f32 %v3559, %v3631
        %v3706 = vadd.f32 %v3560, %v3700
        %v3707 = vadd.f32 %v3561, %v3702
        %v3708 = vxor.u32 %v3704, 2147483648
        %v3709 = vmul.f32 %v3708, 1.442695
        %v3710 = vpow.pop %v3709
        %v3711 = vadd.f32 %v3710, 1.0
        %v3712 = vrcp.pop %v3711
        %v3713 = vmul.f32 1.0, %v3712
        %v3714 = vxor.u32 %v3705, 2147483648
        %v3715 = vmul.f32 %v3714, 1.442695
        %v3716 = vpow.pop %v3715
        %v3717 = vadd.f32 %v3716, 1.0
        %v3718 = vrcp.pop %v3717
        %v3719 = vmul.f32 1.0, %v3718
        %v3720 = vtanh.pop %v3706
        %v3721 = vxor.u32 %v3707, 2147483648
        %v3722 = vmul.f32 %v3721, 1.442695
        %v3723 = vpow.pop %v3722
        %v3724 = vadd.f32 %v3723, 1.0
        %v3725 = vrcp.pop %v3724
        %v3726 = vmul.f32 1.0, %v3725
        %v3727 = vmul.f32 %v3713, %v3720
        %v3728 = vmul.f32 %v3719, %v3488
        %v3729 = vadd.f32 %v3727, %v3728
        %v3730 = vtanh.pop %v3729
        %v3731 = vmul.f32 %v3726, %v3730
        %s3732 = scalar_lea.vmem %s296, 88 [#allocation5]
        %3733 = vst [vmem:[%s3732] sm:$0xff] %v3731
        %v3734 = vld [vmem:[%s2] sm:$0xff]
        %v3735 = vld [vmem:[%s2 + $0x8] sm:$0xff]
        %v3736 = vld [vmem:[%s2 + $0x10] sm:$0xff]
        %v3737 = vld [vmem:[%s2 + $0x18] sm:$0xff]
        %v3738 = vld [vmem:[%s2 + $0x20] sm:$0xff]
        %v3739 = vld [vmem:[%s2 + $0x28] sm:$0xff]
        %v3740 = vld [vmem:[%s2 + $0x30] sm:$0xff]
        %v3741 = vld [vmem:[%s2 + $0x38] sm:$0xff]
        %v3742 = vld [vmem:[%s2 + $0x40] sm:$0xff]
        %v3743 = vld [vmem:[%s2 + $0x48] sm:$0xff]
        %v3744 = vld [vmem:[%s2 + $0x50] sm:$0xff]
        %v3745 = vld [vmem:[%s2 + $0x58] sm:$0xff]
        %v3746 = vld [vmem:[%s2 + $0x60] sm:$0xff]
        %v3747 = vld [vmem:[%s2 + $0x68] sm:$0xff]
        %v3748 = vld [vmem:[%s2 + $0x70] sm:$0xff]
        %v3749 = vld [vmem:[%s2 + $0x78] sm:$0xff]
        %v3750 = vld [vmem:[%s2 + $0x80] sm:$0xff]
        %v3751 = vld [vmem:[%s2 + $0x88] sm:$0xff]
        %v3752 = vld [vmem:[%s2 + $0x90] sm:$0xff]
        %v3753 = vld [vmem:[%s2 + $0x98] sm:$0xff]
        %v3754 = vld [vmem:[%s2 + $0xa0] sm:$0xff]
        %v3755 = vld [vmem:[%s2 + $0xa8] sm:$0xff]
        %v3756 = vld [vmem:[%s2 + $0xb0] sm:$0xff]
        %v3757 = vld [vmem:[%s2 + $0xb8] sm:$0xff]
        %v3758 = vld [vmem:[%s2 + $0xc0] sm:$0xff]
        %v3759 = vld [vmem:[%s2 + $0xc8] sm:$0xff]
        %v3760 = vld [vmem:[%s2 + $0xd0] sm:$0xff]
        %v3761 = vld [vmem:[%s2 + $0xd8] sm:$0xff]
        %v3762 = vld [vmem:[%s2 + $0xe0] sm:$0xff]
        %v3763 = vld [vmem:[%s2 + $0xe8] sm:$0xff]
        %v3764 = vld [vmem:[%s2 + $0xf0] sm:$0xff]
        %v3765 = vld [vmem:[%s2 + $0xf8] sm:$0xff]
        %v3766 = vld [vmem:[%s2 + $0x100] sm:$0xff]
        %v3767 = vld [vmem:[%s2 + $0x108] sm:$0xff]
        %v3768 = vld [vmem:[%s2 + $0x110] sm:$0xff]
        %v3769 = vld [vmem:[%s2 + $0x118] sm:$0xff]
        %v3770 = vld [vmem:[%s2 + $0x120] sm:$0xff]
        %v3771 = vld [vmem:[%s2 + $0x128] sm:$0xff]
        %v3772 = vld [vmem:[%s2 + $0x130] sm:$0xff]
        %v3773 = vld [vmem:[%s2 + $0x138] sm:$0xff]
        %v3774 = vld [vmem:[%s2 + $0x140] sm:$0xff]
        %v3775 = vld [vmem:[%s2 + $0x148] sm:$0xff]
        %v3776 = vld [vmem:[%s2 + $0x150] sm:$0xff]
        %v3777 = vld [vmem:[%s2 + $0x158] sm:$0xff]
        %v3778 = vld [vmem:[%s2 + $0x160] sm:$0xff]
        %v3779 = vld [vmem:[%s2 + $0x168] sm:$0xff]
        %v3780 = vld [vmem:[%s2 + $0x170] sm:$0xff]
        %v3781 = vld [vmem:[%s2 + $0x178] sm:$0xff]
        %v3782 = vld [vmem:[%s2 + $0x180] sm:$0xff]
        %v3783 = vld [vmem:[%s2 + $0x188] sm:$0xff]
        %v3784 = vld [vmem:[%s2 + $0x190] sm:$0xff]
        %v3785 = vld [vmem:[%s2 + $0x198] sm:$0xff]
        %v3786 = vld [vmem:[%s2 + $0x1a0] sm:$0xff]
        %v3787 = vld [vmem:[%s2 + $0x1a8] sm:$0xff]
        %v3788 = vld [vmem:[%s2 + $0x1b0] sm:$0xff]
        %v3789 = vld [vmem:[%s2 + $0x1b8] sm:$0xff]
        %v3790 = vld [vmem:[%s2 + $0x1c0] sm:$0xff]
        %v3791 = vld [vmem:[%s2 + $0x1c8] sm:$0xff]
        %v3792 = vld [vmem:[%s2 + $0x1d0] sm:$0xff]
        %v3793 = vld [vmem:[%s2 + $0x1d8] sm:$0xff]
        %v3794 = vld [vmem:[%s2 + $0x1e0] sm:$0xff]
        %v3795 = vld [vmem:[%s2 + $0x1e8] sm:$0xff]
        %v3796 = vld [vmem:[%s2 + $0x1f0] sm:$0xff]
        %v3797 = vld [vmem:[%s2 + $0x1f8] sm:$0xff]
        %s3798 = scalar_lea.vmem [#allocation2], 384
        %v3799 = vld [vmem:[%s3798] sm:$0xff]
        %v3800 = vld [vmem:[%s3798 + $0x8] sm:$0xff]
        %v3801 = vld [vmem:[%s3798 + $0x10] sm:$0xff]
        %v3802 = vld [vmem:[%s3798 + $0x18] sm:$0xff]
        %3803 = vmatprep.subr.mxu0 %v3735
        %3804 = vmatpush1.msra.mxu0 %v3734
        %3805 = vmatprep.subr.mxu0 %v3739
        %3806 = vmatpush1.msra.mxu0 %v3738
        %3807 = vmatprep.subr.mxu0 %v3743
        %3808 = vmatpush1.msra.mxu0 %v3742
        %3809 = vmatprep.subr.mxu0 %v3747
        %3810 = vmatpush1.msra.mxu0 %v3746
        %3811 = vmatprep.subr.mxu0 %v3751
        %3812 = vmatpush1.msra.mxu0 %v3750
        %3813 = vmatprep.subr.mxu0 %v3755
        %3814 = vmatpush1.msra.mxu0 %v3754
        %3815 = vmatprep.subr.mxu0 %v3759
        %3816 = vmatpush1.msra.mxu0 %v3758
        %3817 = vmatprep.subr.mxu0 %v3763
        %3818 = vmatpush1.msra.mxu0 %v3762
        %3819 = vmatprep.subr.mxu0 %v3767
        %3820 = vmatpush1.msra.mxu0 %v3766
        %3821 = vmatprep.subr.mxu0 %v3771
        %3822 = vmatpush1.msra.mxu0 %v3770
        %3823 = vmatprep.subr.mxu0 %v3775
        %3824 = vmatpush1.msra.mxu0 %v3774
        %3825 = vmatprep.subr.mxu0 %v3779
        %3826 = vmatpush1.msra.mxu0 %v3778
        %3827 = vmatprep.subr.mxu0 %v3783
        %3828 = vmatpush1.msra.mxu0 %v3782
        %3829 = vmatprep.subr.mxu0 %v3787
        %3830 = vmatpush1.msra.mxu0 %v3786
        %3831 = vmatprep.subr.mxu0 %v3791
        %3832 = vmatpush1.msra.mxu0 %v3790
        %3833 = vmatprep.subr.mxu0 %v3795
        %3834 = vmatpush1.msra.mxu0 %v3794
        %3835 = vmatprep.subr.mxu0 0.0
        %3836 = vmatpush1.msra.mxu0 0.0
        %3837 = vmatprep.subr.mxu0 0.0
        %3838 = vmatpush1.msra.mxu0 0.0
        %3839 = vmatprep.subr.mxu0 0.0
        %3840 = vmatpush1.msra.mxu0 0.0
        %3841 = vmatprep.subr.mxu0 0.0
        %3842 = vmatpush1.msra.mxu0 0.0
        %3843 = vmatprep.subr.mxu0 0.0
        %3844 = vmatpush1.msra.mxu0 0.0
        %3845 = vmatprep.subr.mxu0 0.0
        %3846 = vmatpush1.msra.mxu0 0.0
        %3847 = vmatprep.subr.mxu0 0.0
        %3848 = vmatpush1.msra.mxu0 0.0
        %3849 = vmatprep.subr.mxu0 0.0
        %3850 = vmatpush1.msra.mxu0 0.0
        %3851 = vmatprep.subr.mxu0 0.0
        %3852 = vmatpush1.msra.mxu0 0.0
        %3853 = vmatprep.subr.mxu0 0.0
        %3854 = vmatpush1.msra.mxu0 0.0
        %3855 = vmatprep.subr.mxu0 0.0
        %3856 = vmatpush1.msra.mxu0 0.0
        %3857 = vmatprep.subr.mxu0 0.0
        %3858 = vmatpush1.msra.mxu0 0.0
        %3859 = vmatprep.subr.mxu0 0.0
        %3860 = vmatpush1.msra.mxu0 0.0
        %3861 = vmatprep.subr.mxu0 0.0
        %3862 = vmatpush1.msra.mxu0 0.0
        %3863 = vmatprep.subr.mxu0 0.0
        %3864 = vmatpush1.msra.mxu0 0.0
        %3865 = vmatprep.subr.mxu0 0.0
        %3866 = vmatpush1.msra.mxu0 0.0
        %3867 = vmatprep.mubr.f32.mxu0 0.0
        %3868 = vmatmul.mubr.f32.gmra.mrb[0].mxu0 %v3731
        %v3869 = vpop.f32.mrb[0].mxu0
        %v3870 = vadd.f32 0.0, %v3869
        %v3871 = vpop.f32.mrb[0].mxu0
        %v3872 = vadd.f32 0.0, %v3871
        %3873 = vdwg.mxu0
        %3874 = vmatprep.subr.mxu0 %v3737
        %3875 = vmatpush1.msra.mxu0 %v3736
        %3876 = vmatprep.subr.mxu0 %v3741
        %3877 = vmatpush1.msra.mxu0 %v3740
        %3878 = vmatprep.subr.mxu0 %v3745
        %3879 = vmatpush1.msra.mxu0 %v3744
        %3880 = vmatprep.subr.mxu0 %v3749
        %3881 = vmatpush1.msra.mxu0 %v3748
        %3882 = vmatprep.subr.mxu0 %v3753
        %3883 = vmatpush1.msra.mxu0 %v3752
        %3884 = vmatprep.subr.mxu0 %v3757
        %3885 = vmatpush1.msra.mxu0 %v3756
        %3886 = vmatprep.subr.mxu0 %v3761
        %3887 = vmatpush1.msra.mxu0 %v3760
        %3888 = vmatprep.subr.mxu0 %v3765
        %3889 = vmatpush1.msra.mxu0 %v3764
        %3890 = vmatprep.subr.mxu0 %v3769
        %3891 = vmatpush1.msra.mxu0 %v3768
        %3892 = vmatprep.subr.mxu0 %v3773
        %3893 = vmatpush1.msra.mxu0 %v3772
        %3894 = vmatprep.subr.mxu0 %v3777
        %3895 = vmatpush1.msra.mxu0 %v3776
        %3896 = vmatprep.subr.mxu0 %v3781
        %3897 = vmatpush1.msra.mxu0 %v3780
        %3898 = vmatprep.subr.mxu0 %v3785
        %3899 = vmatpush1.msra.mxu0 %v3784
        %3900 = vmatprep.subr.mxu0 %v3789
        %3901 = vmatpush1.msra.mxu0 %v3788
        %3902 = vmatprep.subr.mxu0 %v3793
        %3903 = vmatpush1.msra.mxu0 %v3792
        %3904 = vmatprep.subr.mxu0 %v3797
        %3905 = vmatpush1.msra.mxu0 %v3796
        %3906 = vmatprep.subr.mxu0 0.0
        %3907 = vmatpush1.msra.mxu0 0.0
        %3908 = vmatprep.subr.mxu0 0.0
        %3909 = vmatpush1.msra.mxu0 0.0
        %3910 = vmatprep.subr.mxu0 0.0
        %3911 = vmatpush1.msra.mxu0 0.0
        %3912 = vmatprep.subr.mxu0 0.0
        %3913 = vmatpush1.msra.mxu0 0.0
        %3914 = vmatprep.subr.mxu0 0.0
        %3915 = vmatpush1.msra.mxu0 0.0
        %3916 = vmatprep.subr.mxu0 0.0
        %3917 = vmatpush1.msra.mxu0 0.0
        %3918 = vmatprep.subr.mxu0 0.0
        %3919 = vmatpush1.msra.mxu0 0.0
        %3920 = vmatprep.subr.mxu0 0.0
        %3921 = vmatpush1.msra.mxu0 0.0
        %3922 = vmatprep.subr.mxu0 0.0
        %3923 = vmatpush1.msra.mxu0 0.0
        %3924 = vmatprep.subr.mxu0 0.0
        %3925 = vmatpush1.msra.mxu0 0.0
        %3926 = vmatprep.subr.mxu0 0.0
        %3927 = vmatpush1.msra.mxu0 0.0
        %3928 = vmatprep.subr.mxu0 0.0
        %3929 = vmatpush1.msra.mxu0 0.0
        %3930 = vmatprep.subr.mxu0 0.0
        %3931 = vmatpush1.msra.mxu0 0.0
        %3932 = vmatprep.subr.mxu0 0.0
        %3933 = vmatpush1.msra.mxu0 0.0
        %3934 = vmatprep.subr.mxu0 0.0
        %3935 = vmatpush1.msra.mxu0 0.0
        %3936 = vmatprep.subr.mxu0 0.0
        %3937 = vmatpush1.msra.mxu0 0.0
        %3938 = vmatprep.mubr.f32.mxu0 0.0
        %3939 = vmatmul.mubr.f32.gmra.mrb[0].mxu0 %v3731
        %v3940 = vpop.f32.mrb[0].mxu0
        %v3941 = vadd.f32 0.0, %v3940
        %v3942 = vpop.f32.mrb[0].mxu0
        %v3943 = vadd.f32 0.0, %v3942
        %3944 = vdwg.mxu0
        %v3945 = vadd.f32 %v3799, %v3870
        %v3946 = vadd.f32 %v3800, %v3872
        %v3947 = vadd.f32 %v3801, %v3941
        %v3948 = vadd.f32 %v3802, %v3943
        %v3949 = vxor.u32 %v3945, 2147483648
        %v3950 = vmul.f32 %v3949, 1.442695
        %v3951 = vpow.pop %v3950
        %v3952 = vadd.f32 %v3951, 1.0
        %v3953 = vrcp.pop %v3952
        %v3954 = vmul.f32 1.0, %v3953
        %v3955 = vxor.u32 %v3946, 2147483648
        %v3956 = vmul.f32 %v3955, 1.442695
        %v3957 = vpow.pop %v3956
        %v3958 = vadd.f32 %v3957, 1.0
        %v3959 = vrcp.pop %v3958
        %v3960 = vmul.f32 1.0, %v3959
        %v3961 = vtanh.pop %v3947
        %v3962 = vxor.u32 %v3948, 2147483648
        %v3963 = vmul.f32 %v3962, 1.442695
        %v3964 = vpow.pop %v3963
        %v3965 = vadd.f32 %v3964, 1.0
        %v3966 = vrcp.pop %v3965
        %v3967 = vmul.f32 1.0, %v3966
        %v3968 = vmul.f32 %v3954, %v3961
        %v3969 = vmul.f32 %v3960, %v3729
        %v3970 = vadd.f32 %v3968, %v3969
        %v3971 = vtanh.pop %v3970
        %v3972 = vmul.f32 %v3967, %v3971
        %s3973 = scalar_lea.vmem %s296, 96 [#allocation5]
        %3974 = vst [vmem:[%s3973] sm:$0xff] %v3972
        %v3975 = vld [vmem:[%s2] sm:$0xff]
        %v3976 = vld [vmem:[%s2 + $0x8] sm:$0xff]
        %v3977 = vld [vmem:[%s2 + $0x10] sm:$0xff]
        %v3978 = vld [vmem:[%s2 + $0x18] sm:$0xff]
        %v3979 = vld [vmem:[%s2 + $0x20] sm:$0xff]
        %v3980 = vld [vmem:[%s2 + $0x28] sm:$0xff]
        %v3981 = vld [vmem:[%s2 + $0x30] sm:$0xff]
        %v3982 = vld [vmem:[%s2 + $0x38] sm:$0xff]
        %v3983 = vld [vmem:[%s2 + $0x40] sm:$0xff]
        %v3984 = vld [vmem:[%s2 + $0x48] sm:$0xff]
        %v3985 = vld [vmem:[%s2 + $0x50] sm:$0xff]
        %v3986 = vld [vmem:[%s2 + $0x58] sm:$0xff]
        %v3987 = vld [vmem:[%s2 + $0x60] sm:$0xff]
        %v3988 = vld [vmem:[%s2 + $0x68] sm:$0xff]
        %v3989 = vld [vmem:[%s2 + $0x70] sm:$0xff]
        %v3990 = vld [vmem:[%s2 + $0x78] sm:$0xff]
        %v3991 = vld [vmem:[%s2 + $0x80] sm:$0xff]
        %v3992 = vld [vmem:[%s2 + $0x88] sm:$0xff]
        %v3993 = vld [vmem:[%s2 + $0x90] sm:$0xff]
        %v3994 = vld [vmem:[%s2 + $0x98] sm:$0xff]
        %v3995 = vld [vmem:[%s2 + $0xa0] sm:$0xff]
        %v3996 = vld [vmem:[%s2 + $0xa8] sm:$0xff]
        %v3997 = vld [vmem:[%s2 + $0xb0] sm:$0xff]
        %v3998 = vld [vmem:[%s2 + $0xb8] sm:$0xff]
        %v3999 = vld [vmem:[%s2 + $0xc0] sm:$0xff]
        %v4000 = vld [vmem:[%s2 + $0xc8] sm:$0xff]
        %v4001 = vld [vmem:[%s2 + $0xd0] sm:$0xff]
        %v4002 = vld [vmem:[%s2 + $0xd8] sm:$0xff]
        %v4003 = vld [vmem:[%s2 + $0xe0] sm:$0xff]
        %v4004 = vld [vmem:[%s2 + $0xe8] sm:$0xff]
        %v4005 = vld [vmem:[%s2 + $0xf0] sm:$0xff]
        %v4006 = vld [vmem:[%s2 + $0xf8] sm:$0xff]
        %v4007 = vld [vmem:[%s2 + $0x100] sm:$0xff]
        %v4008 = vld [vmem:[%s2 + $0x108] sm:$0xff]
        %v4009 = vld [vmem:[%s2 + $0x110] sm:$0xff]
        %v4010 = vld [vmem:[%s2 + $0x118] sm:$0xff]
        %v4011 = vld [vmem:[%s2 + $0x120] sm:$0xff]
        %v4012 = vld [vmem:[%s2 + $0x128] sm:$0xff]
        %v4013 = vld [vmem:[%s2 + $0x130] sm:$0xff]
        %v4014 = vld [vmem:[%s2 + $0x138] sm:$0xff]
        %v4015 = vld [vmem:[%s2 + $0x140] sm:$0xff]
        %v4016 = vld [vmem:[%s2 + $0x148] sm:$0xff]
        %v4017 = vld [vmem:[%s2 + $0x150] sm:$0xff]
        %v4018 = vld [vmem:[%s2 + $0x158] sm:$0xff]
        %v4019 = vld [vmem:[%s2 + $0x160] sm:$0xff]
        %v4020 = vld [vmem:[%s2 + $0x168] sm:$0xff]
        %v4021 = vld [vmem:[%s2 + $0x170] sm:$0xff]
        %v4022 = vld [vmem:[%s2 + $0x178] sm:$0xff]
        %v4023 = vld [vmem:[%s2 + $0x180] sm:$0xff]
        %v4024 = vld [vmem:[%s2 + $0x188] sm:$0xff]
        %v4025 = vld [vmem:[%s2 + $0x190] sm:$0xff]
        %v4026 = vld [vmem:[%s2 + $0x198] sm:$0xff]
        %v4027 = vld [vmem:[%s2 + $0x1a0] sm:$0xff]
        %v4028 = vld [vmem:[%s2 + $0x1a8] sm:$0xff]
        %v4029 = vld [vmem:[%s2 + $0x1b0] sm:$0xff]
        %v4030 = vld [vmem:[%s2 + $0x1b8] sm:$0xff]
        %v4031 = vld [vmem:[%s2 + $0x1c0] sm:$0xff]
        %v4032 = vld [vmem:[%s2 + $0x1c8] sm:$0xff]
        %v4033 = vld [vmem:[%s2 + $0x1d0] sm:$0xff]
        %v4034 = vld [vmem:[%s2 + $0x1d8] sm:$0xff]
        %v4035 = vld [vmem:[%s2 + $0x1e0] sm:$0xff]
        %v4036 = vld [vmem:[%s2 + $0x1e8] sm:$0xff]
        %v4037 = vld [vmem:[%s2 + $0x1f0] sm:$0xff]
        %v4038 = vld [vmem:[%s2 + $0x1f8] sm:$0xff]
        %s4039 = scalar_lea.vmem [#allocation2], 416
        %v4040 = vld [vmem:[%s4039] sm:$0xff]
        %v4041 = vld [vmem:[%s4039 + $0x8] sm:$0xff]
        %v4042 = vld [vmem:[%s4039 + $0x10] sm:$0xff]
        %v4043 = vld [vmem:[%s4039 + $0x18] sm:$0xff]
        %4044 = vmatprep.subr.mxu0 %v3976
        %4045 = vmatpush1.msra.mxu0 %v3975
        %4046 = vmatprep.subr.mxu0 %v3980
        %4047 = vmatpush1.msra.mxu0 %v3979
        %4048 = vmatprep.subr.mxu0 %v3984
        %4049 = vmatpush1.msra.mxu0 %v3983
        %4050 = vmatprep.subr.mxu0 %v3988
        %4051 = vmatpush1.msra.mxu0 %v3987
        %4052 = vmatprep.subr.mxu0 %v3992
        %4053 = vmatpush1.msra.mxu0 %v3991
        %4054 = vmatprep.subr.mxu0 %v3996
        %4055 = vmatpush1.msra.mxu0 %v3995
        %4056 = vmatprep.subr.mxu0 %v4000
        %4057 = vmatpush1.msra.mxu0 %v3999
        %4058 = vmatprep.subr.mxu0 %v4004
        %4059 = vmatpush1.msra.mxu0 %v4003
        %4060 = vmatprep.subr.mxu0 %v4008
        %4061 = vmatpush1.msra.mxu0 %v4007
        %4062 = vmatprep.subr.mxu0 %v4012
        %4063 = vmatpush1.msra.mxu0 %v4011
        %4064 = vmatprep.subr.mxu0 %v4016
        %4065 = vmatpush1.msra.mxu0 %v4015
        %4066 = vmatprep.subr.mxu0 %v4020
        %4067 = vmatpush1.msra.mxu0 %v4019
        %4068 = vmatprep.subr.mxu0 %v4024
        %4069 = vmatpush1.msra.mxu0 %v4023
        %4070 = vmatprep.subr.mxu0 %v4028
        %4071 = vmatpush1.msra.mxu0 %v4027
        %4072 = vmatprep.subr.mxu0 %v4032
        %4073 = vmatpush1.msra.mxu0 %v4031
        %4074 = vmatprep.subr.mxu0 %v4036
        %4075 = vmatpush1.msra.mxu0 %v4035
        %4076 = vmatprep.subr.mxu0 0.0
        %4077 = vmatpush1.msra.mxu0 0.0
        %4078 = vmatprep.subr.mxu0 0.0
        %4079 = vmatpush1.msra.mxu0 0.0
        %4080 = vmatprep.subr.mxu0 0.0
        %4081 = vmatpush1.msra.mxu0 0.0
        %4082 = vmatprep.subr.mxu0 0.0
        %4083 = vmatpush1.msra.mxu0 0.0
        %4084 = vmatprep.subr.mxu0 0.0
        %4085 = vmatpush1.msra.mxu0 0.0
        %4086 = vmatprep.subr.mxu0 0.0
        %4087 = vmatpush1.msra.mxu0 0.0
        %4088 = vmatprep.subr.mxu0 0.0
        %4089 = vmatpush1.msra.mxu0 0.0
        %4090 = vmatprep.subr.mxu0 0.0
        %4091 = vmatpush1.msra.mxu0 0.0
        %4092 = vmatprep.subr.mxu0 0.0
        %4093 = vmatpush1.msra.mxu0 0.0
        %4094 = vmatprep.subr.mxu0 0.0
        %4095 = vmatpush1.msra.mxu0 0.0
        %4096 = vmatprep.subr.mxu0 0.0
        %4097 = vmatpush1.msra.mxu0 0.0
        %4098 = vmatprep.subr.mxu0 0.0
        %4099 = vmatpush1.msra.mxu0 0.0
        %4100 = vmatprep.subr.mxu0 0.0
        %4101 = vmatpush1.msra.mxu0 0.0
        %4102 = vmatprep.subr.mxu0 0.0
        %4103 = vmatpush1.msra.mxu0 0.0
        %4104 = vmatprep.subr.mxu0 0.0
        %4105 = vmatpush1.msra.mxu0 0.0
        %4106 = vmatprep.subr.mxu0 0.0
        %4107 = vmatpush1.msra.mxu0 0.0
        %4108 = vmatprep.mubr.f32.mxu0 0.0
        %4109 = vmatmul.mubr.f32.gmra.mrb[0].mxu0 %v3972
        %v4110 = vpop.f32.mrb[0].mxu0
        %v4111 = vadd.f32 0.0, %v4110
        %v4112 = vpop.f32.mrb[0].mxu0
        %v4113 = vadd.f32 0.0, %v4112
        %4114 = vdwg.mxu0
        %4115 = vmatprep.subr.mxu0 %v3978
        %4116 = vmatpush1.msra.mxu0 %v3977
        %4117 = vmatprep.subr.mxu0 %v3982
        %4118 = vmatpush1.msra.mxu0 %v3981
        %4119 = vmatprep.subr.mxu0 %v3986
        %4120 = vmatpush1.msra.mxu0 %v3985
        %4121 = vmatprep.subr.mxu0 %v3990
        %4122 = vmatpush1.msra.mxu0 %v3989
        %4123 = vmatprep.subr.mxu0 %v3994
        %4124 = vmatpush1.msra.mxu0 %v3993
        %4125 = vmatprep.subr.mxu0 %v3998
        %4126 = vmatpush1.msra.mxu0 %v3997
        %4127 = vmatprep.subr.mxu0 %v4002
        %4128 = vmatpush1.msra.mxu0 %v4001
        %4129 = vmatprep.subr.mxu0 %v4006
        %4130 = vmatpush1.msra.mxu0 %v4005
        %4131 = vmatprep.subr.mxu0 %v4010
        %4132 = vmatpush1.msra.mxu0 %v4009
        %4133 = vmatprep.subr.mxu0 %v4014
        %4134 = vmatpush1.msra.mxu0 %v4013
        %4135 = vmatprep.subr.mxu0 %v4018
        %4136 = vmatpush1.msra.mxu0 %v4017
        %4137 = vmatprep.subr.mxu0 %v4022
        %4138 = vmatpush1.msra.mxu0 %v4021
        %4139 = vmatprep.subr.mxu0 %v4026
        %4140 = vmatpush1.msra.mxu0 %v4025
        %4141 = vmatprep.subr.mxu0 %v4030
        %4142 = vmatpush1.msra.mxu0 %v4029
        %4143 = vmatprep.subr.mxu0 %v4034
        %4144 = vmatpush1.msra.mxu0 %v4033
        %4145 = vmatprep.subr.mxu0 %v4038
        %4146 = vmatpush1.msra.mxu0 %v4037
        %4147 = vmatprep.subr.mxu0 0.0
        %4148 = vmatpush1.msra.mxu0 0.0
        %4149 = vmatprep.subr.mxu0 0.0
        %4150 = vmatpush1.msra.mxu0 0.0
        %4151 = vmatprep.subr.mxu0 0.0
        %4152 = vmatpush1.msra.mxu0 0.0
        %4153 = vmatprep.subr.mxu0 0.0
        %4154 = vmatpush1.msra.mxu0 0.0
        %4155 = vmatprep.subr.mxu0 0.0
        %4156 = vmatpush1.msra.mxu0 0.0
        %4157 = vmatprep.subr.mxu0 0.0
        %4158 = vmatpush1.msra.mxu0 0.0
        %4159 = vmatprep.subr.mxu0 0.0
        %4160 = vmatpush1.msra.mxu0 0.0
        %4161 = vmatprep.subr.mxu0 0.0
        %4162 = vmatpush1.msra.mxu0 0.0
        %4163 = vmatprep.subr.mxu0 0.0
        %4164 = vmatpush1.msra.mxu0 0.0
        %4165 = vmatprep.subr.mxu0 0.0
        %4166 = vmatpush1.msra.mxu0 0.0
        %4167 = vmatprep.subr.mxu0 0.0
        %4168 = vmatpush1.msra.mxu0 0.0
        %4169 = vmatprep.subr.mxu0 0.0
        %4170 = vmatpush1.msra.mxu0 0.0
        %4171 = vmatprep.subr.mxu0 0.0
        %4172 = vmatpush1.msra.mxu0 0.0
        %4173 = vmatprep.subr.mxu0 0.0
        %4174 = vmatpush1.msra.mxu0 0.0
        %4175 = vmatprep.subr.mxu0 0.0
        %4176 = vmatpush1.msra.mxu0 0.0
        %4177 = vmatprep.subr.mxu0 0.0
        %4178 = vmatpush1.msra.mxu0 0.0
        %4179 = vmatprep.mubr.f32.mxu0 0.0
        %4180 = vmatmul.mubr.f32.gmra.mrb[0].mxu0 %v3972
        %v4181 = vpop.f32.mrb[0].mxu0
        %v4182 = vadd.f32 0.0, %v4181
        %v4183 = vpop.f32.mrb[0].mxu0
        %v4184 = vadd.f32 0.0, %v4183
        %4185 = vdwg.mxu0
        %v4186 = vadd.f32 %v4040, %v4111
        %v4187 = vadd.f32 %v4041, %v4113
        %v4188 = vadd.f32 %v4042, %v4182
        %v4189 = vadd.f32 %v4043, %v4184
        %v4190 = vxor.u32 %v4186, 2147483648
        %v4191 = vmul.f32 %v4190, 1.442695
        %v4192 = vpow.pop %v4191
        %v4193 = vadd.f32 %v4192, 1.0
        %v4194 = vrcp.pop %v4193
        %v4195 = vmul.f32 1.0, %v4194
        %v4196 = vxor.u32 %v4187, 2147483648
        %v4197 = vmul.f32 %v4196, 1.442695
        %v4198 = vpow.pop %v4197
        %v4199 = vadd.f32 %v4198, 1.0
        %v4200 = vrcp.pop %v4199
        %v4201 = vmul.f32 1.0, %v4200
        %v4202 = vtanh.pop %v4188
        %v4203 = vxor.u32 %v4189, 2147483648
        %v4204 = vmul.f32 %v4203, 1.442695
        %v4205 = vpow.pop %v4204
        %v4206 = vadd.f32 %v4205, 1.0
        %v4207 = vrcp.pop %v4206
        %v4208 = vmul.f32 1.0, %v4207
        %v4209 = vmul.f32 %v4195, %v4202
        %v4210 = vmul.f32 %v4201, %v3970
        %v4211 = vadd.f32 %v4209, %v4210
        %v4212 = vtanh.pop %v4211
        %v4213 = vmul.f32 %v4208, %v4212
        %s4214 = scalar_lea.vmem %s296, 104 [#allocation5]
        %4215 = vst [vmem:[%s4214] sm:$0xff] %v4213
        %v4216 = vld [vmem:[%s2] sm:$0xff]
        %v4217 = vld [vmem:[%s2 + $0x8] sm:$0xff]
        %v4218 = vld [vmem:[%s2 + $0x10] sm:$0xff]
        %v4219 = vld [vmem:[%s2 + $0x18] sm:$0xff]
        %v4220 = vld [vmem:[%s2 + $0x20] sm:$0xff]
        %v4221 = vld [vmem:[%s2 + $0x28] sm:$0xff]
        %v4222 = vld [vmem:[%s2 + $0x30] sm:$0xff]
        %v4223 = vld [vmem:[%s2 + $0x38] sm:$0xff]
        %v4224 = vld [vmem:[%s2 + $0x40] sm:$0xff]
        %v4225 = vld [vmem:[%s2 + $0x48] sm:$0xff]
        %v4226 = vld [vmem:[%s2 + $0x50] sm:$0xff]
        %v4227 = vld [vmem:[%s2 + $0x58] sm:$0xff]
        %v4228 = vld [vmem:[%s2 + $0x60] sm:$0xff]
        %v4229 = vld [vmem:[%s2 + $0x68] sm:$0xff]
        %v4230 = vld [vmem:[%s2 + $0x70] sm:$0xff]
        %v4231 = vld [vmem:[%s2 + $0x78] sm:$0xff]
        %v4232 = vld [vmem:[%s2 + $0x80] sm:$0xff]
        %v4233 = vld [vmem:[%s2 + $0x88] sm:$0xff]
        %v4234 = vld [vmem:[%s2 + $0x90] sm:$0xff]
        %v4235 = vld [vmem:[%s2 + $0x98] sm:$0xff]
        %v4236 = vld [vmem:[%s2 + $0xa0] sm:$0xff]
        %v4237 = vld [vmem:[%s2 + $0xa8] sm:$0xff]
        %v4238 = vld [vmem:[%s2 + $0xb0] sm:$0xff]
        %v4239 = vld [vmem:[%s2 + $0xb8] sm:$0xff]
        %v4240 = vld [vmem:[%s2 + $0xc0] sm:$0xff]
        %v4241 = vld [vmem:[%s2 + $0xc8] sm:$0xff]
        %v4242 = vld [vmem:[%s2 + $0xd0] sm:$0xff]
        %v4243 = vld [vmem:[%s2 + $0xd8] sm:$0xff]
        %v4244 = vld [vmem:[%s2 + $0xe0] sm:$0xff]
        %v4245 = vld [vmem:[%s2 + $0xe8] sm:$0xff]
        %v4246 = vld [vmem:[%s2 + $0xf0] sm:$0xff]
        %v4247 = vld [vmem:[%s2 + $0xf8] sm:$0xff]
        %v4248 = vld [vmem:[%s2 + $0x100] sm:$0xff]
        %v4249 = vld [vmem:[%s2 + $0x108] sm:$0xff]
        %v4250 = vld [vmem:[%s2 + $0x110] sm:$0xff]
        %v4251 = vld [vmem:[%s2 + $0x118] sm:$0xff]
        %v4252 = vld [vmem:[%s2 + $0x120] sm:$0xff]
        %v4253 = vld [vmem:[%s2 + $0x128] sm:$0xff]
        %v4254 = vld [vmem:[%s2 + $0x130] sm:$0xff]
        %v4255 = vld [vmem:[%s2 + $0x138] sm:$0xff]
        %v4256 = vld [vmem:[%s2 + $0x140] sm:$0xff]
        %v4257 = vld [vmem:[%s2 + $0x148] sm:$0xff]
        %v4258 = vld [vmem:[%s2 + $0x150] sm:$0xff]
        %v4259 = vld [vmem:[%s2 + $0x158] sm:$0xff]
        %v4260 = vld [vmem:[%s2 + $0x160] sm:$0xff]
        %v4261 = vld [vmem:[%s2 + $0x168] sm:$0xff]
        %v4262 = vld [vmem:[%s2 + $0x170] sm:$0xff]
        %v4263 = vld [vmem:[%s2 + $0x178] sm:$0xff]
        %v4264 = vld [vmem:[%s2 + $0x180] sm:$0xff]
        %v4265 = vld [vmem:[%s2 + $0x188] sm:$0xff]
        %v4266 = vld [vmem:[%s2 + $0x190] sm:$0xff]
        %v4267 = vld [vmem:[%s2 + $0x198] sm:$0xff]
        %v4268 = vld [vmem:[%s2 + $0x1a0] sm:$0xff]
        %v4269 = vld [vmem:[%s2 + $0x1a8] sm:$0xff]
        %v4270 = vld [vmem:[%s2 + $0x1b0] sm:$0xff]
        %v4271 = vld [vmem:[%s2 + $0x1b8] sm:$0xff]
        %v4272 = vld [vmem:[%s2 + $0x1c0] sm:$0xff]
        %v4273 = vld [vmem:[%s2 + $0x1c8] sm:$0xff]
        %v4274 = vld [vmem:[%s2 + $0x1d0] sm:$0xff]
        %v4275 = vld [vmem:[%s2 + $0x1d8] sm:$0xff]
        %v4276 = vld [vmem:[%s2 + $0x1e0] sm:$0xff]
        %v4277 = vld [vmem:[%s2 + $0x1e8] sm:$0xff]
        %v4278 = vld [vmem:[%s2 + $0x1f0] sm:$0xff]
        %v4279 = vld [vmem:[%s2 + $0x1f8] sm:$0xff]
        %s4280 = scalar_lea.vmem [#allocation2], 448
        %v4281 = vld [vmem:[%s4280] sm:$0xff]
        %v4282 = vld [vmem:[%s4280 + $0x8] sm:$0xff]
        %v4283 = vld [vmem:[%s4280 + $0x10] sm:$0xff]
        %v4284 = vld [vmem:[%s4280 + $0x18] sm:$0xff]
        %4285 = vmatprep.subr.mxu0 %v4217
        %4286 = vmatpush1.msra.mxu0 %v4216
        %4287 = vmatprep.subr.mxu0 %v4221
        %4288 = vmatpush1.msra.mxu0 %v4220
        %4289 = vmatprep.subr.mxu0 %v4225
        %4290 = vmatpush1.msra.mxu0 %v4224
        %4291 = vmatprep.subr.mxu0 %v4229
        %4292 = vmatpush1.msra.mxu0 %v4228
        %4293 = vmatprep.subr.mxu0 %v4233
        %4294 = vmatpush1.msra.mxu0 %v4232
        %4295 = vmatprep.subr.mxu0 %v4237
        %4296 = vmatpush1.msra.mxu0 %v4236
        %4297 = vmatprep.subr.mxu0 %v4241
        %4298 = vmatpush1.msra.mxu0 %v4240
        %4299 = vmatprep.subr.mxu0 %v4245
        %4300 = vmatpush1.msra.mxu0 %v4244
        %4301 = vmatprep.subr.mxu0 %v4249
        %4302 = vmatpush1.msra.mxu0 %v4248
        %4303 = vmatprep.subr.mxu0 %v4253
        %4304 = vmatpush1.msra.mxu0 %v4252
        %4305 = vmatprep.subr.mxu0 %v4257
        %4306 = vmatpush1.msra.mxu0 %v4256
        %4307 = vmatprep.subr.mxu0 %v4261
        %4308 = vmatpush1.msra.mxu0 %v4260
        %4309 = vmatprep.subr.mxu0 %v4265
        %4310 = vmatpush1.msra.mxu0 %v4264
        %4311 = vmatprep.subr.mxu0 %v4269
        %4312 = vmatpush1.msra.mxu0 %v4268
        %4313 = vmatprep.subr.mxu0 %v4273
        %4314 = vmatpush1.msra.mxu0 %v4272
        %4315 = vmatprep.subr.mxu0 %v4277
        %4316 = vmatpush1.msra.mxu0 %v4276
        %4317 = vmatprep.subr.mxu0 0.0
        %4318 = vmatpush1.msra.mxu0 0.0
        %4319 = vmatprep.subr.mxu0 0.0
        %4320 = vmatpush1.msra.mxu0 0.0
        %4321 = vmatprep.subr.mxu0 0.0
        %4322 = vmatpush1.msra.mxu0 0.0
        %4323 = vmatprep.subr.mxu0 0.0
        %4324 = vmatpush1.msra.mxu0 0.0
        %4325 = vmatprep.subr.mxu0 0.0
        %4326 = vmatpush1.msra.mxu0 0.0
        %4327 = vmatprep.subr.mxu0 0.0
        %4328 = vmatpush1.msra.mxu0 0.0
        %4329 = vmatprep.subr.mxu0 0.0
        %4330 = vmatpush1.msra.mxu0 0.0
        %4331 = vmatprep.subr.mxu0 0.0
        %4332 = vmatpush1.msra.mxu0 0.0
        %4333 = vmatprep.subr.mxu0 0.0
        %4334 = vmatpush1.msra.mxu0 0.0
        %4335 = vmatprep.subr.mxu0 0.0
        %4336 = vmatpush1.msra.mxu0 0.0
        %4337 = vmatprep.subr.mxu0 0.0
        %4338 = vmatpush1.msra.mxu0 0.0
        %4339 = vmatprep.subr.mxu0 0.0
        %4340 = vmatpush1.msra.mxu0 0.0
        %4341 = vmatprep.subr.mxu0 0.0
        %4342 = vmatpush1.msra.mxu0 0.0
        %4343 = vmatprep.subr.mxu0 0.0
        %4344 = vmatpush1.msra.mxu0 0.0
        %4345 = vmatprep.subr.mxu0 0.0
        %4346 = vmatpush1.msra.mxu0 0.0
        %4347 = vmatprep.subr.mxu0 0.0
        %4348 = vmatpush1.msra.mxu0 0.0
        %4349 = vmatprep.mubr.f32.mxu0 0.0
        %4350 = vmatmul.mubr.f32.gmra.mrb[0].mxu0 %v4213
        %v4351 = vpop.f32.mrb[0].mxu0
        %v4352 = vadd.f32 0.0, %v4351
        %v4353 = vpop.f32.mrb[0].mxu0
        %v4354 = vadd.f32 0.0, %v4353
        %4355 = vdwg.mxu0
        %4356 = vmatprep.subr.mxu0 %v4219
        %4357 = vmatpush1.msra.mxu0 %v4218
        %4358 = vmatprep.subr.mxu0 %v4223
        %4359 = vmatpush1.msra.mxu0 %v4222
        %4360 = vmatprep.subr.mxu0 %v4227
        %4361 = vmatpush1.msra.mxu0 %v4226
        %4362 = vmatprep.subr.mxu0 %v4231
        %4363 = vmatpush1.msra.mxu0 %v4230
        %4364 = vmatprep.subr.mxu0 %v4235
        %4365 = vmatpush1.msra.mxu0 %v4234
        %4366 = vmatprep.subr.mxu0 %v4239
        %4367 = vmatpush1.msra.mxu0 %v4238
        %4368 = vmatprep.subr.mxu0 %v4243
        %4369 = vmatpush1.msra.mxu0 %v4242
        %4370 = vmatprep.subr.mxu0 %v4247
        %4371 = vmatpush1.msra.mxu0 %v4246
        %4372 = vmatprep.subr.mxu0 %v4251
        %4373 = vmatpush1.msra.mxu0 %v4250
        %4374 = vmatprep.subr.mxu0 %v4255
        %4375 = vmatpush1.msra.mxu0 %v4254
        %4376 = vmatprep.subr.mxu0 %v4259
        %4377 = vmatpush1.msra.mxu0 %v4258
        %4378 = vmatprep.subr.mxu0 %v4263
        %4379 = vmatpush1.msra.mxu0 %v4262
        %4380 = vmatprep.subr.mxu0 %v4267
        %4381 = vmatpush1.msra.mxu0 %v4266
        %4382 = vmatprep.subr.mxu0 %v4271
        %4383 = vmatpush1.msra.mxu0 %v4270
        %4384 = vmatprep.subr.mxu0 %v4275
        %4385 = vmatpush1.msra.mxu0 %v4274
        %4386 = vmatprep.subr.mxu0 %v4279
        %4387 = vmatpush1.msra.mxu0 %v4278
        %4388 = vmatprep.subr.mxu0 0.0
        %4389 = vmatpush1.msra.mxu0 0.0
        %4390 = vmatprep.subr.mxu0 0.0
        %4391 = vmatpush1.msra.mxu0 0.0
        %4392 = vmatprep.subr.mxu0 0.0
        %4393 = vmatpush1.msra.mxu0 0.0
        %4394 = vmatprep.subr.mxu0 0.0
        %4395 = vmatpush1.msra.mxu0 0.0
        %4396 = vmatprep.subr.mxu0 0.0
        %4397 = vmatpush1.msra.mxu0 0.0
        %4398 = vmatprep.subr.mxu0 0.0
        %4399 = vmatpush1.msra.mxu0 0.0
        %4400 = vmatprep.subr.mxu0 0.0
        %4401 = vmatpush1.msra.mxu0 0.0
        %4402 = vmatprep.subr.mxu0 0.0
        %4403 = vmatpush1.msra.mxu0 0.0
        %4404 = vmatprep.subr.mxu0 0.0
        %4405 = vmatpush1.msra.mxu0 0.0
        %4406 = vmatprep.subr.mxu0 0.0
        %4407 = vmatpush1.msra.mxu0 0.0
        %4408 = vmatprep.subr.mxu0 0.0
        %4409 = vmatpush1.msra.mxu0 0.0
        %4410 = vmatprep.subr.mxu0 0.0
        %4411 = vmatpush1.msra.mxu0 0.0
        %4412 = vmatprep.subr.mxu0 0.0
        %4413 = vmatpush1.msra.mxu0 0.0
        %4414 = vmatprep.subr.mxu0 0.0
        %4415 = vmatpush1.msra.mxu0 0.0
        %4416 = vmatprep.subr.mxu0 0.0
        %4417 = vmatpush1.msra.mxu0 0.0
        %4418 = vmatprep.subr.mxu0 0.0
        %4419 = vmatpush1.msra.mxu0 0.0
        %4420 = vmatprep.mubr.f32.mxu0 0.0
        %4421 = vmatmul.mubr.f32.gmra.mrb[0].mxu0 %v4213
        %v4422 = vpop.f32.mrb[0].mxu0
        %v4423 = vadd.f32 0.0, %v4422
        %v4424 = vpop.f32.mrb[0].mxu0
        %v4425 = vadd.f32 0.0, %v4424
        %4426 = vdwg.mxu0
        %v4427 = vadd.f32 %v4281, %v4352
        %v4428 = vadd.f32 %v4282, %v4354
        %v4429 = vadd.f32 %v4283, %v4423
        %v4430 = vadd.f32 %v4284, %v4425
        %v4431 = vxor.u32 %v4427, 2147483648
        %v4432 = vmul.f32 %v4431, 1.442695
        %v4433 = vpow.pop %v4432
        %v4434 = vadd.f32 %v4433, 1.0
        %v4435 = vrcp.pop %v4434
        %v4436 = vmul.f32 1.0, %v4435
        %v4437 = vxor.u32 %v4428, 2147483648
        %v4438 = vmul.f32 %v4437, 1.442695
        %v4439 = vpow.pop %v4438
        %v4440 = vadd.f32 %v4439, 1.0
        %v4441 = vrcp.pop %v4440
        %v4442 = vmul.f32 1.0, %v4441
        %v4443 = vtanh.pop %v4429
        %v4444 = vxor.u32 %v4430, 2147483648
        %v4445 = vmul.f32 %v4444, 1.442695
        %v4446 = vpow.pop %v4445
        %v4447 = vadd.f32 %v4446, 1.0
        %v4448 = vrcp.pop %v4447
        %v4449 = vmul.f32 1.0, %v4448
        %v4450 = vmul.f32 %v4436, %v4443
        %v4451 = vmul.f32 %v4442, %v4211
        %v4452 = vadd.f32 %v4450, %v4451
        %v4453 = vtanh.pop %v4452
        %v4454 = vmul.f32 %v4449, %v4453
        %s4455 = scalar_lea.vmem %s296, 112 [#allocation5]
        %4456 = vst [vmem:[%s4455] sm:$0xff] %v4454
        %v4457 = vld [vmem:[%s2] sm:$0xff]
        %v4458 = vld [vmem:[%s2 + $0x8] sm:$0xff]
        %v4459 = vld [vmem:[%s2 + $0x10] sm:$0xff]
        %v4460 = vld [vmem:[%s2 + $0x18] sm:$0xff]
        %v4461 = vld [vmem:[%s2 + $0x20] sm:$0xff]
        %v4462 = vld [vmem:[%s2 + $0x28] sm:$0xff]
        %v4463 = vld [vmem:[%s2 + $0x30] sm:$0xff]
        %v4464 = vld [vmem:[%s2 + $0x38] sm:$0xff]
        %v4465 = vld [vmem:[%s2 + $0x40] sm:$0xff]
        %v4466 = vld [vmem:[%s2 + $0x48] sm:$0xff]
        %v4467 = vld [vmem:[%s2 + $0x50] sm:$0xff]
        %v4468 = vld [vmem:[%s2 + $0x58] sm:$0xff]
        %v4469 = vld [vmem:[%s2 + $0x60] sm:$0xff]
        %v4470 = vld [vmem:[%s2 + $0x68] sm:$0xff]
        %v4471 = vld [vmem:[%s2 + $0x70] sm:$0xff]
        %v4472 = vld [vmem:[%s2 + $0x78] sm:$0xff]
        %v4473 = vld [vmem:[%s2 + $0x80] sm:$0xff]
        %v4474 = vld [vmem:[%s2 + $0x88] sm:$0xff]
        %v4475 = vld [vmem:[%s2 + $0x90] sm:$0xff]
        %v4476 = vld [vmem:[%s2 + $0x98] sm:$0xff]
        %v4477 = vld [vmem:[%s2 + $0xa0] sm:$0xff]
        %v4478 = vld [vmem:[%s2 + $0xa8] sm:$0xff]
        %v4479 = vld [vmem:[%s2 + $0xb0] sm:$0xff]
        %v4480 = vld [vmem:[%s2 + $0xb8] sm:$0xff]
        %v4481 = vld [vmem:[%s2 + $0xc0] sm:$0xff]
        %v4482 = vld [vmem:[%s2 + $0xc8] sm:$0xff]
        %v4483 = vld [vmem:[%s2 + $0xd0] sm:$0xff]
        %v4484 = vld [vmem:[%s2 + $0xd8] sm:$0xff]
        %v4485 = vld [vmem:[%s2 + $0xe0] sm:$0xff]
        %v4486 = vld [vmem:[%s2 + $0xe8] sm:$0xff]
        %v4487 = vld [vmem:[%s2 + $0xf0] sm:$0xff]
        %v4488 = vld [vmem:[%s2 + $0xf8] sm:$0xff]
        %v4489 = vld [vmem:[%s2 + $0x100] sm:$0xff]
        %v4490 = vld [vmem:[%s2 + $0x108] sm:$0xff]
        %v4491 = vld [vmem:[%s2 + $0x110] sm:$0xff]
        %v4492 = vld [vmem:[%s2 + $0x118] sm:$0xff]
        %v4493 = vld [vmem:[%s2 + $0x120] sm:$0xff]
        %v4494 = vld [vmem:[%s2 + $0x128] sm:$0xff]
        %v4495 = vld [vmem:[%s2 + $0x130] sm:$0xff]
        %v4496 = vld [vmem:[%s2 + $0x138] sm:$0xff]
        %v4497 = vld [vmem:[%s2 + $0x140] sm:$0xff]
        %v4498 = vld [vmem:[%s2 + $0x148] sm:$0xff]
        %v4499 = vld [vmem:[%s2 + $0x150] sm:$0xff]
        %v4500 = vld [vmem:[%s2 + $0x158] sm:$0xff]
        %v4501 = vld [vmem:[%s2 + $0x160] sm:$0xff]
        %v4502 = vld [vmem:[%s2 + $0x168] sm:$0xff]
        %v4503 = vld [vmem:[%s2 + $0x170] sm:$0xff]
        %v4504 = vld [vmem:[%s2 + $0x178] sm:$0xff]
        %v4505 = vld [vmem:[%s2 + $0x180] sm:$0xff]
        %v4506 = vld [vmem:[%s2 + $0x188] sm:$0xff]
        %v4507 = vld [vmem:[%s2 + $0x190] sm:$0xff]
        %v4508 = vld [vmem:[%s2 + $0x198] sm:$0xff]
        %v4509 = vld [vmem:[%s2 + $0x1a0] sm:$0xff]
        %v4510 = vld [vmem:[%s2 + $0x1a8] sm:$0xff]
        %v4511 = vld [vmem:[%s2 + $0x1b0] sm:$0xff]
        %v4512 = vld [vmem:[%s2 + $0x1b8] sm:$0xff]
        %v4513 = vld [vmem:[%s2 + $0x1c0] sm:$0xff]
        %v4514 = vld [vmem:[%s2 + $0x1c8] sm:$0xff]
        %v4515 = vld [vmem:[%s2 + $0x1d0] sm:$0xff]
        %v4516 = vld [vmem:[%s2 + $0x1d8] sm:$0xff]
        %v4517 = vld [vmem:[%s2 + $0x1e0] sm:$0xff]
        %v4518 = vld [vmem:[%s2 + $0x1e8] sm:$0xff]
        %v4519 = vld [vmem:[%s2 + $0x1f0] sm:$0xff]
        %v4520 = vld [vmem:[%s2 + $0x1f8] sm:$0xff]
        %s4521 = scalar_lea.vmem [#allocation2], 480
        %v4522 = vld [vmem:[%s4521] sm:$0xff]
        %v4523 = vld [vmem:[%s4521 + $0x8] sm:$0xff]
        %v4524 = vld [vmem:[%s4521 + $0x10] sm:$0xff]
        %v4525 = vld [vmem:[%s4521 + $0x18] sm:$0xff]
        %4526 = vmatprep.subr.mxu0 %v4458
        %4527 = vmatpush1.msra.mxu0 %v4457
        %4528 = vmatprep.subr.mxu0 %v4462
        %4529 = vmatpush1.msra.mxu0 %v4461
        %4530 = vmatprep.subr.mxu0 %v4466
        %4531 = vmatpush1.msra.mxu0 %v4465
        %4532 = vmatprep.subr.mxu0 %v4470
        %4533 = vmatpush1.msra.mxu0 %v4469
        %4534 = vmatprep.subr.mxu0 %v4474
        %4535 = vmatpush1.msra.mxu0 %v4473
        %4536 = vmatprep.subr.mxu0 %v4478
        %4537 = vmatpush1.msra.mxu0 %v4477
        %4538 = vmatprep.subr.mxu0 %v4482
        %4539 = vmatpush1.msra.mxu0 %v4481
        %4540 = vmatprep.subr.mxu0 %v4486
        %4541 = vmatpush1.msra.mxu0 %v4485
        %4542 = vmatprep.subr.mxu0 %v4490
        %4543 = vmatpush1.msra.mxu0 %v4489
        %4544 = vmatprep.subr.mxu0 %v4494
        %4545 = vmatpush1.msra.mxu0 %v4493
        %4546 = vmatprep.subr.mxu0 %v4498
        %4547 = vmatpush1.msra.mxu0 %v4497
        %4548 = vmatprep.subr.mxu0 %v4502
        %4549 = vmatpush1.msra.mxu0 %v4501
        %4550 = vmatprep.subr.mxu0 %v4506
        %4551 = vmatpush1.msra.mxu0 %v4505
        %4552 = vmatprep.subr.mxu0 %v4510
        %4553 = vmatpush1.msra.mxu0 %v4509
        %4554 = vmatprep.subr.mxu0 %v4514
        %4555 = vmatpush1.msra.mxu0 %v4513
        %4556 = vmatprep.subr.mxu0 %v4518
        %4557 = vmatpush1.msra.mxu0 %v4517
        %4558 = vmatprep.subr.mxu0 0.0
        %4559 = vmatpush1.msra.mxu0 0.0
        %4560 = vmatprep.subr.mxu0 0.0
        %4561 = vmatpush1.msra.mxu0 0.0
        %4562 = vmatprep.subr.mxu0 0.0
        %4563 = vmatpush1.msra.mxu0 0.0
        %4564 = vmatprep.subr.mxu0 0.0
        %4565 = vmatpush1.msra.mxu0 0.0
        %4566 = vmatprep.subr.mxu0 0.0
        %4567 = vmatpush1.msra.mxu0 0.0
        %4568 = vmatprep.subr.mxu0 0.0
        %4569 = vmatpush1.msra.mxu0 0.0
        %4570 = vmatprep.subr.mxu0 0.0
        %4571 = vmatpush1.msra.mxu0 0.0
        %4572 = vmatprep.subr.mxu0 0.0
        %4573 = vmatpush1.msra.mxu0 0.0
        %4574 = vmatprep.subr.mxu0 0.0
        %4575 = vmatpush1.msra.mxu0 0.0
        %4576 = vmatprep.subr.mxu0 0.0
        %4577 = vmatpush1.msra.mxu0 0.0
        %4578 = vmatprep.subr.mxu0 0.0
        %4579 = vmatpush1.msra.mxu0 0.0
        %4580 = vmatprep.subr.mxu0 0.0
        %4581 = vmatpush1.msra.mxu0 0.0
        %4582 = vmatprep.subr.mxu0 0.0
        %4583 = vmatpush1.msra.mxu0 0.0
        %4584 = vmatprep.subr.mxu0 0.0
        %4585 = vmatpush1.msra.mxu0 0.0
        %4586 = vmatprep.subr.mxu0 0.0
        %4587 = vmatpush1.msra.mxu0 0.0
        %4588 = vmatprep.subr.mxu0 0.0
        %4589 = vmatpush1.msra.mxu0 0.0
        %4590 = vmatprep.mubr.f32.mxu0 0.0
        %4591 = vmatmul.mubr.f32.gmra.mrb[0].mxu0 %v4454
        %v4592 = vpop.f32.mrb[0].mxu0
        %v4593 = vadd.f32 0.0, %v4592
        %v4594 = vpop.f32.mrb[0].mxu0
        %v4595 = vadd.f32 0.0, %v4594
        %4596 = vdwg.mxu0
        %4597 = vmatprep.subr.mxu0 %v4460
        %4598 = vmatpush1.msra.mxu0 %v4459
        %4599 = vmatprep.subr.mxu0 %v4464
        %4600 = vmatpush1.msra.mxu0 %v4463
        %4601 = vmatprep.subr.mxu0 %v4468
        %4602 = vmatpush1.msra.mxu0 %v4467
        %4603 = vmatprep.subr.mxu0 %v4472
        %4604 = vmatpush1.msra.mxu0 %v4471
        %4605 = vmatprep.subr.mxu0 %v4476
        %4606 = vmatpush1.msra.mxu0 %v4475
        %4607 = vmatprep.subr.mxu0 %v4480
        %4608 = vmatpush1.msra.mxu0 %v4479
        %4609 = vmatprep.subr.mxu0 %v4484
        %4610 = vmatpush1.msra.mxu0 %v4483
        %4611 = vmatprep.subr.mxu0 %v4488
        %4612 = vmatpush1.msra.mxu0 %v4487
        %4613 = vmatprep.subr.mxu0 %v4492
        %4614 = vmatpush1.msra.mxu0 %v4491
        %4615 = vmatprep.subr.mxu0 %v4496
        %4616 = vmatpush1.msra.mxu0 %v4495
        %4617 = vmatprep.subr.mxu0 %v4500
        %4618 = vmatpush1.msra.mxu0 %v4499
        %4619 = vmatprep.subr.mxu0 %v4504
        %4620 = vmatpush1.msra.mxu0 %v4503
        %4621 = vmatprep.subr.mxu0 %v4508
        %4622 = vmatpush1.msra.mxu0 %v4507
        %4623 = vmatprep.subr.mxu0 %v4512
        %4624 = vmatpush1.msra.mxu0 %v4511
        %4625 = vmatprep.subr.mxu0 %v4516
        %4626 = vmatpush1.msra.mxu0 %v4515
        %4627 = vmatprep.subr.mxu0 %v4520
        %4628 = vmatpush1.msra.mxu0 %v4519
        %4629 = vmatprep.subr.mxu0 0.0
        %4630 = vmatpush1.msra.mxu0 0.0
        %4631 = vmatprep.subr.mxu0 0.0
        %4632 = vmatpush1.msra.mxu0 0.0
        %4633 = vmatprep.subr.mxu0 0.0
        %4634 = vmatpush1.msra.mxu0 0.0
        %4635 = vmatprep.subr.mxu0 0.0
        %4636 = vmatpush1.msra.mxu0 0.0
        %4637 = vmatprep.subr.mxu0 0.0
        %4638 = vmatpush1.msra.mxu0 0.0
        %4639 = vmatprep.subr.mxu0 0.0
        %4640 = vmatpush1.msra.mxu0 0.0
        %4641 = vmatprep.subr.mxu0 0.0
        %4642 = vmatpush1.msra.mxu0 0.0
        %4643 = vmatprep.subr.mxu0 0.0
        %4644 = vmatpush1.msra.mxu0 0.0
        %4645 = vmatprep.subr.mxu0 0.0
        %4646 = vmatpush1.msra.mxu0 0.0
        %4647 = vmatprep.subr.mxu0 0.0
        %4648 = vmatpush1.msra.mxu0 0.0
        %4649 = vmatprep.subr.mxu0 0.0
        %4650 = vmatpush1.msra.mxu0 0.0
        %4651 = vmatprep.subr.mxu0 0.0
        %4652 = vmatpush1.msra.mxu0 0.0
        %4653 = vmatprep.subr.mxu0 0.0
        %4654 = vmatpush1.msra.mxu0 0.0
        %4655 = vmatprep.subr.mxu0 0.0
        %4656 = vmatpush1.msra.mxu0 0.0
        %4657 = vmatprep.subr.mxu0 0.0
        %4658 = vmatpush1.msra.mxu0 0.0
        %4659 = vmatprep.subr.mxu0 0.0
        %4660 = vmatpush1.msra.mxu0 0.0
        %4661 = vmatprep.mubr.f32.mxu0 0.0
        %4662 = vmatmul.mubr.f32.gmra.mrb[0].mxu0 %v4454
        %v4663 = vpop.f32.mrb[0].mxu0
        %v4664 = vadd.f32 0.0, %v4663
        %v4665 = vpop.f32.mrb[0].mxu0
        %v4666 = vadd.f32 0.0, %v4665
        %4667 = vdwg.mxu0
        %v4668 = vadd.f32 %v4522, %v4593
        %v4669 = vadd.f32 %v4523, %v4595
        %v4670 = vadd.f32 %v4524, %v4664
        %v4671 = vadd.f32 %v4525, %v4666
        %v4672 = vxor.u32 %v4668, 2147483648
        %v4673 = vmul.f32 %v4672, 1.442695
        %v4674 = vpow.pop %v4673
        %v4675 = vadd.f32 %v4674, 1.0
        %v4676 = vrcp.pop %v4675
        %v4677 = vmul.f32 1.0, %v4676
        %v4678 = vxor.u32 %v4669, 2147483648
        %v4679 = vmul.f32 %v4678, 1.442695
        %v4680 = vpow.pop %v4679
        %v4681 = vadd.f32 %v4680, 1.0
        %v4682 = vrcp.pop %v4681
        %v4683 = vmul.f32 1.0, %v4682
        %v4684 = vtanh.pop %v4670
        %v4685 = vxor.u32 %v4671, 2147483648
        %v4686 = vmul.f32 %v4685, 1.442695
        %v4687 = vpow.pop %v4686
        %v4688 = vadd.f32 %v4687, 1.0
        %v4689 = vrcp.pop %v4688
        %v4690 = vmul.f32 1.0, %v4689
        %v4691 = vmul.f32 %v4677, %v4684
        %v4692 = vmul.f32 %v4683, %v4452
        %v4693 = vadd.f32 %v4691, %v4692
        %v4694 = vtanh.pop %v4693
        %v4695 = vmul.f32 %v4690, %v4694
        %s4696 = scalar_lea.vmem %s296, 120 [#allocation5]
        %4697 = vst [vmem:[%s4696] sm:$0xff] %v4695
        %4698 = vst [vmem:[#allocation3] sm:$0xff] %v4695
        %4699 = vst [vmem:[#allocation4] sm:$0xff] %v4693
        %p4700 = scmp.eq.s32.totalorder %s28, 2
        // Predicated region
        $region45: #{tpu_custom_call.1} parent=39 // pred_check
          %p4701 = pneg %p4700
        $region46: #{tpu_custom_call.1} parent=39 // pred_check_branch
          %4703 = sbr.rel (%p4701) target = $region48
        $region47: #{tpu_custom_call.1} parent=39 // pred_region
          %4704 = vst [vmem:[#allocation7] sm:$0xff] %v4695
          %4705 = vst [vmem:[#allocation9] sm:$0xff] %v4693
        $region48: #{tpu_custom_call.1} parent=39 // pred_fallthru
          _
        %s4706 = sand.u32 %s157, 1
        %s4707 = scalar_lea.sflag [#allocation6], %s4706
        %s4708 = sand.u32 %s157, 1
        %s4709 = smul.addr %s4708, 128
        %s4710 = scalar_lea.vmem [#allocation5], %s4709
        // Predicated region
        $region49: #{tpu_custom_call.1} parent=39 // pred_check
          %p4711 = pneg %p167
        $region50: #{tpu_custom_call.1} parent=39 // pred_check_branch
          %4713 = sbr.rel (%p4711) target = $region52
        $region51: #{tpu_custom_call.1} parent=39 // pred_region
          %s4714 = smul.u32 16, %s28
          %s4716 = ssub.s32 2048, 2048
          %4717 = vsyncadd %s4707, %s4716
          %s4718 = sadd.s32 %s27, %s4714
          %s4719 = smul.addr %s4718, 128
          %s4720 = scalar_lea.hbm %s5, %s4719
          %s4721 = sshll.u32 %s4710, 4
          %s4722 = int_to_ptr.vmem [resolvable:$true] %s4721
          %4727 = dma.vmem_to_hbm [thread:$0]  %s4722, 2048, %s4720, %s4707, 128, 128, 8
        $region52: #{tpu_custom_call.1} parent=39 // pred_fallthru
          _
        // Predicated region
        $region53: #{tpu_custom_call.1} parent=39 // pred_check
          %p4728 = pneg %p193
        $region54: #{tpu_custom_call.1} parent=39 // pred_check_branch
          %4730 = sbr.rel (%p4728) target = $region56
        $region55: #{tpu_custom_call.1} parent=39 // pred_region
          %s4732 = ssub.s32 128, 128
          %4733 = vsyncadd [#allocation8], %s4732
          %s4734 = smul.addr %s27, 128
          %s4735 = scalar_lea.hbm %s6, %s4734
          %s4737 = sshll.u32 [#allocation7], 4
          %s4738 = int_to_ptr.vmem [resolvable:$true] %s4737
          %4740 = dma.vmem_to_hbm [thread:$0]  %s4738, 128, %s4735, [#allocation8]
        $region56: #{tpu_custom_call.1} parent=39 // pred_fallthru
          _
        // Predicated region
        $region57: #{tpu_custom_call.1} parent=39 // pred_check
          %p4741 = pneg %p219
        $region58: #{tpu_custom_call.1} parent=39 // pred_check_branch
          %4743 = sbr.rel (%p4741) target = $region60
        $region59: #{tpu_custom_call.1} parent=39 // pred_region
          %s4745 = ssub.s32 128, 128
          %4746 = vsyncadd [#allocation8], %s4745
          %s4747 = smul.addr %s27, 128
          %s4748 = scalar_lea.hbm %s7, %s4747
          %s4750 = sshll.u32 [#allocation9], 4
          %s4751 = int_to_ptr.vmem [resolvable:$true] %s4750
          %4753 = dma.vmem_to_hbm [thread:$0]  %s4751, 128, %s4748, [#allocation8]
        $region60: #{tpu_custom_call.1} parent=39 // pred_fallthru
          _
        // Predicated region
        $region61: #{tpu_custom_call.1} parent=39 // pred_check
          %p4754 = pneg %p193
        $region62: #{tpu_custom_call.1} parent=39 // pred_check_branch
          %4756 = sbr.rel (%p4754) target = $region64
        $region63: #{tpu_custom_call.1} parent=39 // pred_region
          %4757 = dma.done [#allocation8], 128
        $region64: #{tpu_custom_call.1} parent=39 // pred_fallthru
          _
        // Predicated region
        $region65: #{tpu_custom_call.1} parent=39 // pred_check
          %p4758 = pneg %p219
        $region66: #{tpu_custom_call.1} parent=39 // pred_check_branch
          %4760 = sbr.rel (%p4758) target = $region68
        $region67: #{tpu_custom_call.1} parent=39 // pred_region
          %4761 = dma.done [#allocation8], 128
        $region68: #{tpu_custom_call.1} parent=39 // pred_fallthru
          _
      $region40: #{tpu_custom_call.1} parent=5 // pred_fallthru
        _
      %p4762 = scmp.le.s32.totalorder 2, %s18
      // Predicated region
      $region69: #{tpu_custom_call.1} parent=5 // pred_check
        %p4763 = pneg %p4762
      $region70: #{tpu_custom_call.1} parent=5 // pred_check_branch
        %4765 = sbr.rel (%p4763) target = $region72
      $region71: #{tpu_custom_call.1} parent=5 // pred_region
        %s4766 = ssub.s32 %s18, 2
        // Predicated region
        $region73: #{tpu_custom_call.1} parent=71 // pred_check
          %p4767 = pneg %p173
        $region74: #{tpu_custom_call.1} parent=71 // pred_check_branch
          %4769 = sbr.rel (%p4767) target = $region76
        $region75: #{tpu_custom_call.1} parent=71 // pred_region
          %s4770 = sand.u32 %s158, 1
          %s4771 = scalar_lea.sflag [#allocation6], %s4770
          %s4772 = sand.u32 %s158, 1
          %s4773 = smul.addr %s4772, 128
          %s4774 = scalar_lea.vmem [#allocation5], %s4773
          %4775 = dma.done %s4771, 2048
        $region76: #{tpu_custom_call.1} parent=71 // pred_fallthru
          _
      $region72: #{tpu_custom_call.1} parent=5 // pred_fallthru
        _
    $region6: #{tpu_custom_call.1} parent=1 // loop_footer
      %s22 = sadd.s32 1, %s18
    $region7: #{tpu_custom_call.1} parent=1 // loop_footer_branch
      %17 = sbr.rel target = $region3
    $region8: #{tpu_custom_call.1} parent=1 // loop_exit
      _
    %4776 = vsyncpa [#allocation6], 1
    %s4777 = scalar_lea.sflag [#allocation6], 1
    %4778 = vsyncpa %s4777, 1
    %4779 = vsyncpa [#allocation8], 1

</llo_original>
